<compile_context>
chip_gen: v6e
topology: v6e:2x2x1
jax: 0.10.0
libtpu: 0.0.40
codegen_flags: <defaults>
</compile_context>

<pallas_src>
import jax
import jax.numpy as jnp
from jax.experimental import pallas as pl
from jax.experimental.pallas import tpu as pltpu

# ----------------------------- model hyper-parameters -----------------------------
B = 8              # batch (molecules)  -- larger per-call batch per perf review
N = 8              # atoms per molecule (padded)
NODE_F = 16        # node_features
EDGE_F = 8         # edge_features
MSG_F = 16         # message_features
ADJ_DIM = 4        # adjacency_dim (unused by forward, kept for shape fidelity)
OUT_DIM = 8        # output_dim
MESSAGE_STEPS = 6  # message_steps
_EPS = 1e-5


# ----------------------------------- kernel ---------------------------------------
def _build_kernel(nb, natoms, nf, mf, efa, out_dim, steps, offs):
    """Returns the Pallas kernel closed over static sizes and slab row offsets."""
    bn_rows = nb * natoms

    def kernel(nodes_ref, bfm_ref, p_ref, out_ref):
        f32 = jnp.float32

        # ---- node slab: [afm | mask] -------------------------------------------
        afm = nodes_ref[:, :nf]                      # (BN, NF) f32
        mask = nodes_ref[:, nf:nf + 1]               # (BN, 1)  f32

        # ---- unpack the single packed parameter slab (static slices) ------------
        w_msg = p_ref[offs["w_msg"]:offs["w_msg"] + efa * nf, :mf]          # (EFA*NF, MF)
        w_ih = p_ref[offs["w_ih"]:offs["w_ih"] + mf, :3 * nf]               # (MF, 3NF)
        w_hh = p_ref[offs["w_hh"]:offs["w_hh"] + nf, :3 * nf]               # (NF, 3NF)
        w_read = p_ref[offs["w_read"]:offs["w_read"] + 2 * nf, :2 * out_dim]
        b_ih = p_ref[offs["b_ih"]:offs["b_ih"] + 1, :3 * nf]
        b_hh = p_ref[offs["b_hh"]:offs["b_hh"] + 1, :3 * nf]
        b_read = p_ref[offs["b_read"]:offs["b_read"] + 1, :2 * out_dim]
        gamma_m = p_ref[offs["gamma_m"]:offs["gamma_m"] + 1, :mf]
        beta_m = p_ref[offs["beta_m"]:offs["beta_m"] + 1, :mf]
        # used 6x inside the serial loop -> hoist the broadcast once
        gamma_n = jnp.broadcast_to(
            p_ref[offs["gamma_n"]:offs["gamma_n"] + 1, :nf], (bn_rows, nf))
        beta_n = jnp.broadcast_to(
            p_ref[offs["beta_n"]:offs["beta_n"] + 1, :nf], (bn_rows, nf))
        seg = p_ref[offs["seg"]:offs["seg"] + nb, :bn_rows]                 # (B, BN)

        # ---- hoisted loop-invariants --------------------------------------------
        inv_cnt = 1.0 / jnp.sum(mask, axis=0, keepdims=True)                # (1, 1)

        def mask_bn(x, gamma, beta):
            # single fused cross-sublane reduction for mean and E[x^2]
            f = x.shape[1]
            xm = x * mask
            s = jnp.sum(jnp.concatenate([xm, xm * xm], axis=1),
                        axis=0, keepdims=True) * inv_cnt                    # (1, 2F)
            mean = s[:, :f]
            var = jnp.maximum(s[:, f:] - mean * mean, 0.0)                  # clamp
            return ((x - mean) * jax.lax.rsqrt(var + _EPS) * gamma + beta) * mask

        # ---- EdgeNetwork messages (afm fixed -> computed once) -------------------
        #   m = bfm_big @ blockdiag_e(h_masked) @ W_stack     (2 dense matmuls)
        #   blockdiag_e(h)[(e, r), (e', n)] = h[r, n] * (e == e')
        h_masked = afm * mask                                               # (BN, NF)
        zero_blk = jnp.zeros((bn_rows, nf), f32)
        row_blocks = []
        for e in range(efa):                                # static unroll (layout only)
            parts = [zero_blk] * efa
            parts[e] = h_masked
            row_blocks.append(jnp.concatenate(parts, axis=1))               # (BN, EFA*NF)
        h_blkdiag = jnp.concatenate(row_blocks, axis=0)                     # (EFA*BN, EFA*NF)
        g = jnp.dot(h_blkdiag, w_msg, preferred_element_type=f32)           # (EFA*BN, MF)
        m_all = jnp.dot(bfm_ref[...], g, preferred_element_type=f32)        # (BN, MF)

        x = mask_bn(m_all, gamma_m, beta_m)                                 # ma_bn, once

        # ---- message passing: input-gate preactivations are loop-invariant -------
        gi = jnp.dot(x, w_ih, preferred_element_type=f32) + b_ih            # (BN, 3NF)
        gi_rz = gi[:, :2 * nf]                                              # hoisted slices
        gi_n = gi[:, 2 * nf:]

        h = afm                                                             # node_state = afm
        for _ in range(steps):
            gh = jnp.dot(h, w_hh, preferred_element_type=f32) + b_hh        # (BN, 3NF)
            rz = jax.nn.sigmoid(gi_rz + gh[:, :2 * nf])                     # one wide sigmoid
            r = rz[:, :nf]
            z = rz[:, nf:]
            n = jnp.tanh(gi_n + r * gh[:, 2 * nf:])                         # b_hh_n inside gh
            hn = (n + z * (h - n)) * mask                                   # masked GRU out
            h = mask_bn(hn, gamma_n, beta_n)                                # masked BN

        # ---- GraphLevelOutput on cat([h, afm], -1), all f32 -----------------------
        hc = jnp.concatenate([h, afm], axis=1)                              # (BN, 2NF)
        ro = jnp.dot(hc, w_read, preferred_element_type=f32) + b_read       # (BN, 2OUT)
        gate = jax.nn.sigmoid(ro[:, :out_dim])
        val = ro[:, out_dim:]
        gv = gate * val * mask                                              # (BN, OUT)

        # per-molecule masked sum via a tiny f32 segment matmul -> single store
        out_ref[...] = jnp.dot(seg, gv, preferred_element_type=f32)         # (B, OUT)

    return kernel


# ---------------------------------- wrapper ----------------------------------------
def mpnn_forward(afm, bfm, adj, mask, params):
    del adj  # constructed by the PyTorch module but never used in forward()
    f32 = jnp.float32

    nb, natoms, nf = afm.shape
    ef = bfm.shape[-1]
    mf = params["w_msg"].shape[-1]
    out_dim = params["wg_h"].shape[1]
    bn_rows = nb * natoms
    efa = ef + 1                                   # + bias pseudo edge-feature

    # ----- coalesced node slab: [afm | mask] (1 DMA) -----
    nodes = jnp.concatenate(
        [afm.reshape(bn_rows, nf), mask.reshape(bn_rows, 1)], axis=1).astype(f32)

    # ----- block-diagonal, edge-feature-major bond slab (layout work in XLA) -----
    #   bfm_big[b*N+i, e*(B*N) + b*N + j] = bfm_aug[b, i, j, e]
    #   bfm_aug[..., EF] == 1 carries the EdgeNetwork bias term.
    # NOTE: fine at this batch size; for large batches keep bfm per molecule and grid
    # the aggregation instead (see TODO in the header).
    bfm_aug = jnp.concatenate(
        [bfm.astype(f32), jnp.ones((nb, natoms, natoms, 1), f32)], axis=-1)
    eye_b = jnp.eye(nb, dtype=f32)
    bfm_big = jnp.einsum('bije,bc->biecj', bfm_aug, eye_b).reshape(bn_rows, efa * bn_rows)

    # ----- 2D lane-dense edge weights (rows = (e, n), cols = message features) -----
    w_msg_aug = jnp.concatenate([params["w_msg"], params["b_msg"][None]], axis=0)
    w_msg2 = w_msg_aug.reshape(efa * nf, mf)                                  # (144, 16)

    # ----- fused GRU gate weights (r | z | n on the lane axis) -----
    w_ih_all = jnp.transpose(params["w_ih"], (1, 0, 2)).reshape(mf, 3 * nf)
    w_hh_all = jnp.transpose(params["w_hh"], (1, 0, 2)).reshape(nf, 3 * nf)
    b_ih_all = jnp.transpose(params["b_ih"], (1, 0, 2)).reshape(1, 3 * nf)
    b_hh_all = jnp.transpose(params["b_hh"], (1, 0, 2)).reshape(1, 3 * nf)

    # ----- fused readout weights: rows = [h-half ; afm-half], cols = [gate | value] -----
    w_read = jnp.concatenate(
        [jnp.concatenate([params["wg_h"], params["wv_h"]], axis=1),
         jnp.concatenate([params["wg_a"], params["wv_a"]], axis=1)], axis=0)  # (2NF, 2OUT)
    b_read = jnp.concatenate([params["bg"], params["bv"]], axis=1)            # (1, 2OUT)

    # ----- per-molecule segment-sum matrix for the readout -----
    seg = jnp.repeat(eye_b, natoms, axis=1)                                   # (B, B*N)

    # ----- single packed f32 parameter slab (1 DMA instead of 13) -----
    pieces = [
        ("w_msg", w_msg2), ("w_ih", w_ih_all), ("w_hh", w_hh_all), ("w_read", w_read),
        ("b_ih", b_ih_all), ("b_hh", b_hh_all), ("b_read", b_read),
        ("gamma_m", params["gamma_m"]), ("beta_m", params["beta_m"]),
        ("gamma_n", params["gamma_n"]), ("beta_n", params["beta_n"]),
        ("seg", seg),
    ]
    lane_w = max(p.shape[1] for _, p in pieces)
    offs = {}
    rows = []
    r = 0
    for name, p in pieces:
        p = p.astype(f32)
        offs[name] = r
        padded = jnp.pad(p, ((0, (-p.shape[0]) % 8),        # 8-row aligned offsets
                             (0, lane_w - p.shape[1])))
        rows.append(padded)
        r += padded.shape[0]
    pslab = jnp.concatenate(rows, axis=0)

    kernel = _build_kernel(nb, natoms, nf, mf, efa, out_dim, MESSAGE_STEPS, offs)
    vmem = pl.BlockSpec(memory_space=pltpu.MemorySpace.VMEM)
    return pl.pallas_call(
        kernel,
        out_shape=jax.ShapeDtypeStruct((nb, out_dim), jnp.float32),
        in_specs=[vmem, vmem, vmem],
        out_specs=vmem,
    )(nodes, bfm_big, pslab)


# -------------------------- pure-JAX reference (for checking) ----------------------
def reference_forward(afm, bfm, mask, params):
    mask3 = mask.reshape(afm.shape[0], afm.shape[1], 1).astype(jnp.float32)
    H = afm * mask3
    G = jnp.einsum('bjn,enf->bjef', H, params['w_msg'])
    m = jnp.einsum('bije,bjef->bif', bfm, G)
    m = m + jnp.einsum('bn,nf->bf', jnp.sum(H, axis=1), params['b_msg'])[:, None, :]

    def mask_bn(x, gamma, beta):
        cnt = jnp.sum(mask3)
        xm = x * mask3
        mean = jnp.sum(xm, axis=(0, 1)) / cnt
        var = jnp.sum(xm * xm, axis=(0, 1)) / cnt - mean * mean
        return ((x - mean) * jax.lax.rsqrt(var + _EPS) * gamma + beta) * mask3

    x = mask_bn(m, params['gamma_m'], params['beta_m'])
    h = afm
    for _ in range(MESSAGE_STEPS):
        r = jax.nn.sigmoid(x @ params['w_ih'][0] + params['b_ih'][0]
                           + h @ params['w_hh'][0] + params['b_hh'][0])
        z = jax.nn.sigmoid(x @ params['w_ih'][1] + params['b_ih'][1]
                           + h @ params['w_hh'][1] + params['b_hh'][1])
        n = jnp.tanh(x @ params['w_ih'][2] + params['b_ih'][2]
                     + r * (h @ params['w_hh'][2] + params['b_hh'][2]))
        hn = ((1.0 - z) * n + z * h) * mask3
        h = mask_bn(hn, params['gamma_n'], params['beta_n'])

    gate = jax.nn.sigmoid(h @ params['wg_h'] + afm @ params['wg_a'] + params['bg'])
    val = h @ params['wv_h'] + afm @ params['wv_a'] + params['bv']
    return jnp.sum(gate * val * mask3, axis=1)


# --------------------------- deterministic parameter init --------------------------
def init_params(key):
    ks = jax.random.split(key, 8)

    def w(k, shape, fan_in):
        return jax.random.normal(k, shape, jnp.float32) / jnp.sqrt(jnp.float32(fan_in))

    return {
        # EdgeNetwork: w_msg[e, n, f] = W_edge[f, n, e]; b_msg[n, f] = b_edge[f, n]
        "w_msg": w(ks[0], (EDGE_F, NODE_F, MSG_F), EDGE_F),
        "b_msg": jnp.zeros((NODE_F, MSG_F), jnp.float32),
        # GRUCell (gates r, z, n stacked on the leading axis); biases init to 0
        "w_ih": w(ks[1], (3, MSG_F, NODE_F), MSG_F),
        "w_hh": w(ks[2], (3, NODE_F, NODE_F), NODE_F),
        "b_ih": jnp.zeros((3, 1, NODE_F), jnp.float32),
        "b_hh": jnp.zeros((3, 1, NODE_F), jnp.float32),
        # MaskBatchNorm1d params
        "gamma_m": jnp.ones((1, MSG_F), jnp.float32),
        "beta_m": jnp.zeros((1, MSG_F), jnp.float32),
        "gamma_n": jnp.ones((1, NODE_F), jnp.float32),
        "beta_n": jnp.zeros((1, NODE_F), jnp.float32),
        # GraphLevelOutput: Linear(cat([h, afm])) split into the h-half and afm-half
        "wg_h": w(ks[3], (NODE_F, OUT_DIM), 2 * NODE_F),
        "wg_a": w(ks[4], (NODE_F, OUT_DIM), 2 * NODE_F),
        "bg": jnp.zeros((1, OUT_DIM), jnp.float32),
        "wv_h": w(ks[5], (NODE_F, OUT_DIM), 2 * NODE_F),
        "wv_a": w(ks[6], (NODE_F, OUT_DIM), 2 * NODE_F),
        "bv": jnp.zeros((1, OUT_DIM), jnp.float32),
    }


if __name__ == "__main__":
    key = jax.random.PRNGKey(0)
    k_afm, k_bfm, k_adj, k_par = jax.random.split(key, 4)

    afm = jax.random.normal(k_afm, (B, N, NODE_F), jnp.float32)
    bfm = jax.random.normal(k_bfm, (B, N, N, EDGE_F), jnp.float32)
    adj = jax.random.bernoulli(k_adj, 0.4, (B, N, N, ADJ_DIM)).astype(jnp.float32)
    n_valid = jnp.array([6, 8, 5, 7, 8, 4, 6, 8])   # real atoms per molecule
    mask = (jnp.arange(N)[None, :] < n_valid[:, None]).astype(jnp.float32).reshape(B, N, 1)

    params = init_params(k_par)

    out = jax.block_until_ready(mpnn_forward(afm, bfm, adj, mask, params))

    with jax.default_matmul_precision("highest"):
        ref = jax.block_until_ready(reference_forward(afm, bfm, mask, params))

    assert out.shape == (B, OUT_DIM), out.shape
    assert bool(jnp.all(jnp.isfinite(out)))
    # All-f32 kernel (no bf16 round-trips) typically matches the full-f32 reference to
    # ~1e-5; the asserted tolerance is kept conservative for MXU f32 pass variations.
    assert bool(jnp.allclose(out, ref, atol=2e-2, rtol=2e-2)), (out, ref)
    print("KERNEL_OK")
</pallas_src>

<mosaic_0001>
module attributes {stable_mosaic.version = 11 : i64} {
  func.func @kernel(%arg0: memref<64x17xf32, #tpu.memory_space<vmem>>, %arg1: memref<64x576xf32, #tpu.memory_space<vmem>>, %arg2: memref<272x64xf32, #tpu.memory_space<vmem>>, %arg3: memref<8x8xf32, #tpu.memory_space<vmem>>) attributes {dimension_semantics = [], scalar_prefetch = 0 : i64, scratch_operands = 0 : i64, tpu.core_type = #tpu.core_type<tc>} {
    %c0 = arith.constant 0 : index
    %c0_0 = arith.constant 0 : index
    %0 = vector.load %arg0[%c0, %c0_0] : memref<64x17xf32, #tpu.memory_space<vmem>>, vector<64x16xf32>
    %c0_1 = arith.constant 0 : index
    %c16 = arith.constant 16 : index
    %1 = vector.load %arg0[%c0_1, %c16] : memref<64x17xf32, #tpu.memory_space<vmem>>, vector<64x1xf32>
    %c0_2 = arith.constant 0 : index
    %c0_3 = arith.constant 0 : index
    %2 = vector.load %arg2[%c0_2, %c0_3] : memref<272x64xf32, #tpu.memory_space<vmem>>, vector<144x16xf32>
    %c144 = arith.constant 144 : index
    %c0_4 = arith.constant 0 : index
    %3 = vector.load %arg2[%c144, %c0_4] : memref<272x64xf32, #tpu.memory_space<vmem>>, vector<16x48xf32>
    %c160 = arith.constant 160 : index
    %c0_5 = arith.constant 0 : index
    %4 = vector.load %arg2[%c160, %c0_5] : memref<272x64xf32, #tpu.memory_space<vmem>>, vector<16x48xf32>
    %c176 = arith.constant 176 : index
    %c0_6 = arith.constant 0 : index
    %5 = vector.load %arg2[%c176, %c0_6] : memref<272x64xf32, #tpu.memory_space<vmem>>, vector<32x16xf32>
    %c208 = arith.constant 208 : index
    %c0_7 = arith.constant 0 : index
    %6 = vector.load %arg2[%c208, %c0_7] : memref<272x64xf32, #tpu.memory_space<vmem>>, vector<1x48xf32>
    %c216 = arith.constant 216 : index
    %c0_8 = arith.constant 0 : index
    %7 = vector.load %arg2[%c216, %c0_8] : memref<272x64xf32, #tpu.memory_space<vmem>>, vector<1x48xf32>
    %c224 = arith.constant 224 : index
    %c0_9 = arith.constant 0 : index
    %8 = vector.load %arg2[%c224, %c0_9] : memref<272x64xf32, #tpu.memory_space<vmem>>, vector<1x16xf32>
    %c232 = arith.constant 232 : index
    %c0_10 = arith.constant 0 : index
    %9 = vector.load %arg2[%c232, %c0_10] : memref<272x64xf32, #tpu.memory_space<vmem>>, vector<1x16xf32>
    %c240 = arith.constant 240 : index
    %c0_11 = arith.constant 0 : index
    %10 = vector.load %arg2[%c240, %c0_11] : memref<272x64xf32, #tpu.memory_space<vmem>>, vector<1x16xf32>
    %c248 = arith.constant 248 : index
    %c0_12 = arith.constant 0 : index
    %11 = vector.load %arg2[%c248, %c0_12] : memref<272x64xf32, #tpu.memory_space<vmem>>, vector<1x16xf32>
    %12 = vector.shape_cast %11 : vector<1x16xf32> to vector<1x16xf32>
    %13 = vector.broadcast %12 : vector<1x16xf32> to vector<64x16xf32>
    %c256 = arith.constant 256 : index
    %c0_13 = arith.constant 0 : index
    %14 = vector.load %arg2[%c256, %c0_13] : memref<272x64xf32, #tpu.memory_space<vmem>>, vector<1x16xf32>
    %15 = vector.shape_cast %14 : vector<1x16xf32> to vector<1x16xf32>
    %16 = vector.broadcast %15 : vector<1x16xf32> to vector<64x16xf32>
    %c264 = arith.constant 264 : index
    %c0_14 = arith.constant 0 : index
    %17 = vector.load %arg2[%c264, %c0_14] : memref<272x64xf32, #tpu.memory_space<vmem>>, vector<8x64xf32>
    %cst = arith.constant dense<0.000000e+00> : vector<1xf32>
    %18 = vector.multi_reduction <add>, %1, %cst [0] : vector<64x1xf32> to vector<1xf32>
    %19 = vector.shape_cast %18 : vector<1xf32> to vector<1x1xf32>
    %cst_15 = arith.constant 1.000000e+00 : f32
    %20 = vector.broadcast %cst_15 : f32 to vector<1x1xf32>
    %21 = arith.divf %20, %19 : vector<1x1xf32>
    %22 = vector.broadcast %1 : vector<64x1xf32> to vector<64x16xf32>
    %23 = arith.mulf %0, %22 : vector<64x16xf32>
    %cst_16 = arith.constant 0.000000e+00 : f32
    %24 = vector.broadcast %cst_16 : f32 to vector<64x16xf32>
    %25 = tpu.concatenate %23, %24, %24, %24, %24, %24, %24, %24, %24 in 1 : vector<64x16xf32>, vector<64x16xf32>, vector<64x16xf32>, vector<64x16xf32>, vector<64x16xf32>, vector<64x16xf32>, vector<64x16xf32>, vector<64x16xf32>, vector<64x16xf32> -> vector<64x144xf32>
    %26 = tpu.concatenate %24, %23, %24, %24, %24, %24, %24, %24, %24 in 1 : vector<64x16xf32>, vector<64x16xf32>, vector<64x16xf32>, vector<64x16xf32>, vector<64x16xf32>, vector<64x16xf32>, vector<64x16xf32>, vector<64x16xf32>, vector<64x16xf32> -> vector<64x144xf32>
    %27 = tpu.concatenate %24, %24, %23, %24, %24, %24, %24, %24, %24 in 1 : vector<64x16xf32>, vector<64x16xf32>, vector<64x16xf32>, vector<64x16xf32>, vector<64x16xf32>, vector<64x16xf32>, vector<64x16xf32>, vector<64x16xf32>, vector<64x16xf32> -> vector<64x144xf32>
    %28 = tpu.concatenate %24, %24, %24, %23, %24, %24, %24, %24, %24 in 1 : vector<64x16xf32>, vector<64x16xf32>, vector<64x16xf32>, vector<64x16xf32>, vector<64x16xf32>, vector<64x16xf32>, vector<64x16xf32>, vector<64x16xf32>, vector<64x16xf32> -> vector<64x144xf32>
    %29 = tpu.concatenate %24, %24, %24, %24, %23, %24, %24, %24, %24 in 1 : vector<64x16xf32>, vector<64x16xf32>, vector<64x16xf32>, vector<64x16xf32>, vector<64x16xf32>, vector<64x16xf32>, vector<64x16xf32>, vector<64x16xf32>, vector<64x16xf32> -> vector<64x144xf32>
    %30 = tpu.concatenate %24, %24, %24, %24, %24, %23, %24, %24, %24 in 1 : vector<64x16xf32>, vector<64x16xf32>, vector<64x16xf32>, vector<64x16xf32>, vector<64x16xf32>, vector<64x16xf32>, vector<64x16xf32>, vector<64x16xf32>, vector<64x16xf32> -> vector<64x144xf32>
    %31 = tpu.concatenate %24, %24, %24, %24, %24, %24, %23, %24, %24 in 1 : vector<64x16xf32>, vector<64x16xf32>, vector<64x16xf32>, vector<64x16xf32>, vector<64x16xf32>, vector<64x16xf32>, vector<64x16xf32>, vector<64x16xf32>, vector<64x16xf32> -> vector<64x144xf32>
    %32 = tpu.concatenate %24, %24, %24, %24, %24, %24, %24, %23, %24 in 1 : vector<64x16xf32>, vector<64x16xf32>, vector<64x16xf32>, vector<64x16xf32>, vector<64x16xf32>, vector<64x16xf32>, vector<64x16xf32>, vector<64x16xf32>, vector<64x16xf32> -> vector<64x144xf32>
    %33 = tpu.concatenate %24, %24, %24, %24, %24, %24, %24, %24, %23 in 1 : vector<64x16xf32>, vector<64x16xf32>, vector<64x16xf32>, vector<64x16xf32>, vector<64x16xf32>, vector<64x16xf32>, vector<64x16xf32>, vector<64x16xf32>, vector<64x16xf32> -> vector<64x144xf32>
    %34 = tpu.concatenate %25, %26, %27, %28, %29, %30, %31, %32, %33 in 0 : vector<64x144xf32>, vector<64x144xf32>, vector<64x144xf32>, vector<64x144xf32>, vector<64x144xf32>, vector<64x144xf32>, vector<64x144xf32>, vector<64x144xf32>, vector<64x144xf32> -> vector<576x144xf32>
    %cst_17 = arith.constant dense<0.000000e+00> : vector<576x16xf32>
    %35 = tpu.matmul %34, %2, %cst_17 {dimension_numbers = #tpu.dot_dimension_numbers<[1], [0], [0], [1], [0, 0, 1, 1], [], []>} : vector<576x144xf32>, vector<144x16xf32>, vector<576x16xf32> -> vector<576x16xf32>
    %c0_18 = arith.constant 0 : index
    %c0_19 = arith.constant 0 : index
    %36 = vector.load %arg1[%c0_18, %c0_19] : memref<64x576xf32, #tpu.memory_space<vmem>>, vector<64x576xf32>
    %cst_20 = arith.constant dense<0.000000e+00> : vector<64x16xf32>
    %37 = tpu.matmul %36, %35, %cst_20 {dimension_numbers = #tpu.dot_dimension_numbers<[1], [0], [0], [1], [0, 0, 1, 1], [], []>} : vector<64x576xf32>, vector<576x16xf32>, vector<64x16xf32> -> vector<64x16xf32>
    %38 = vector.broadcast %1 : vector<64x1xf32> to vector<64x16xf32>
    %39 = arith.mulf %37, %38 : vector<64x16xf32>
    %40 = arith.mulf %39, %39 : vector<64x16xf32>
    %41 = tpu.concatenate %39, %40 in 1 : vector<64x16xf32>, vector<64x16xf32> -> vector<64x32xf32>
    %cst_21 = arith.constant dense<0.000000e+00> : vector<32xf32>
    %42 = vector.multi_reduction <add>, %41, %cst_21 [0] : vector<64x32xf32> to vector<32xf32>
    %43 = vector.shape_cast %42 : vector<32xf32> to vector<1x32xf32>
    %44 = vector.broadcast %21 : vector<1x1xf32> to vector<1x32xf32>
    %45 = arith.mulf %43, %44 : vector<1x32xf32>
    %46 = vector.extract_strided_slice %45 {offsets = [0, 0], sizes = [1, 16], strides = [1, 1]} : vector<1x32xf32> to vector<1x16xf32>
    %47 = vector.extract_strided_slice %45 {offsets = [0, 16], sizes = [1, 16], strides = [1, 1]} : vector<1x32xf32> to vector<1x16xf32>
    %48 = arith.mulf %46, %46 : vector<1x16xf32>
    %49 = arith.subf %47, %48 : vector<1x16xf32>
    %cst_22 = arith.constant 0.000000e+00 : f32
    %50 = vector.broadcast %cst_22 : f32 to vector<1x16xf32>
    %51 = arith.maximumf %49, %50 : vector<1x16xf32>
    %52 = vector.broadcast %46 : vector<1x16xf32> to vector<64x16xf32>
    %53 = arith.subf %37, %52 : vector<64x16xf32>
    %cst_23 = arith.constant 9.99999974E-6 : f32
    %54 = vector.broadcast %cst_23 : f32 to vector<1x16xf32>
    %55 = arith.addf %51, %54 : vector<1x16xf32>
    %56 = math.rsqrt %55 : vector<1x16xf32>
    %57 = vector.broadcast %56 : vector<1x16xf32> to vector<64x16xf32>
    %58 = arith.mulf %53, %57 : vector<64x16xf32>
    %59 = vector.broadcast %9 : vector<1x16xf32> to vector<64x16xf32>
    %60 = arith.mulf %58, %59 : vector<64x16xf32>
    %61 = vector.broadcast %10 : vector<1x16xf32> to vector<64x16xf32>
    %62 = arith.addf %60, %61 : vector<64x16xf32>
    %63 = vector.broadcast %1 : vector<64x1xf32> to vector<64x16xf32>
    %64 = arith.mulf %62, %63 : vector<64x16xf32>
    %cst_24 = arith.constant dense<0.000000e+00> : vector<64x48xf32>
    %65 = tpu.matmul %64, %3, %cst_24 {dimension_numbers = #tpu.dot_dimension_numbers<[1], [0], [0], [1], [0, 0, 1, 1], [], []>} : vector<64x16xf32>, vector<16x48xf32>, vector<64x48xf32> -> vector<64x48xf32>
    %66 = vector.broadcast %6 : vector<1x48xf32> to vector<64x48xf32>
    %67 = arith.addf %65, %66 : vector<64x48xf32>
    %68 = vector.extract_strided_slice %67 {offsets = [0, 0], sizes = [64, 32], strides = [1, 1]} : vector<64x48xf32> to vector<64x32xf32>
    %69 = vector.extract_strided_slice %67 {offsets = [0, 32], sizes = [64, 16], strides = [1, 1]} : vector<64x48xf32> to vector<64x16xf32>
    %cst_25 = arith.constant dense<0.000000e+00> : vector<64x48xf32>
    %70 = tpu.matmul %0, %4, %cst_25 {dimension_numbers = #tpu.dot_dimension_numbers<[1], [0], [0], [1], [0, 0, 1, 1], [], []>} : vector<64x16xf32>, vector<16x48xf32>, vector<64x48xf32> -> vector<64x48xf32>
    %71 = vector.broadcast %7 : vector<1x48xf32> to vector<64x48xf32>
    %72 = arith.addf %70, %71 : vector<64x48xf32>
    %73 = vector.extract_strided_slice %72 {offsets = [0, 0], sizes = [64, 32], strides = [1, 1]} : vector<64x48xf32> to vector<64x32xf32>
    %74 = arith.addf %68, %73 : vector<64x32xf32>
    %75 = arith.negf %74 : vector<64x32xf32>
    %76 = math.exp %75 : vector<64x32xf32>
    %cst_26 = arith.constant 1.000000e+00 : f32
    %77 = vector.broadcast %cst_26 : f32 to vector<64x32xf32>
    %78 = arith.addf %77, %76 : vector<64x32xf32>
    %79 = arith.divf %77, %78 : vector<64x32xf32>
    %80 = vector.extract_strided_slice %79 {offsets = [0, 0], sizes = [64, 16], strides = [1, 1]} : vector<64x32xf32> to vector<64x16xf32>
    %81 = vector.extract_strided_slice %79 {offsets = [0, 16], sizes = [64, 16], strides = [1, 1]} : vector<64x32xf32> to vector<64x16xf32>
    %82 = vector.extract_strided_slice %72 {offsets = [0, 32], sizes = [64, 16], strides = [1, 1]} : vector<64x48xf32> to vector<64x16xf32>
    %83 = arith.mulf %80, %82 : vector<64x16xf32>
    %84 = arith.addf %69, %83 : vector<64x16xf32>
    %85 = math.tanh %84 : vector<64x16xf32>
    %86 = arith.subf %0, %85 : vector<64x16xf32>
    %87 = arith.mulf %81, %86 : vector<64x16xf32>
    %88 = arith.addf %85, %87 : vector<64x16xf32>
    %89 = vector.broadcast %1 : vector<64x1xf32> to vector<64x16xf32>
    %90 = arith.mulf %88, %89 : vector<64x16xf32>
    %91 = vector.broadcast %1 : vector<64x1xf32> to vector<64x16xf32>
    %92 = arith.mulf %90, %91 : vector<64x16xf32>
    %93 = arith.mulf %92, %92 : vector<64x16xf32>
    %94 = tpu.concatenate %92, %93 in 1 : vector<64x16xf32>, vector<64x16xf32> -> vector<64x32xf32>
    %cst_27 = arith.constant dense<0.000000e+00> : vector<32xf32>
    %95 = vector.multi_reduction <add>, %94, %cst_27 [0] : vector<64x32xf32> to vector<32xf32>
    %96 = vector.shape_cast %95 : vector<32xf32> to vector<1x32xf32>
    %97 = vector.broadcast %21 : vector<1x1xf32> to vector<1x32xf32>
    %98 = arith.mulf %96, %97 : vector<1x32xf32>
    %99 = vector.extract_strided_slice %98 {offsets = [0, 0], sizes = [1, 16], strides = [1, 1]} : vector<1x32xf32> to vector<1x16xf32>
    %100 = vector.extract_strided_slice %98 {offsets = [0, 16], sizes = [1, 16], strides = [1, 1]} : vector<1x32xf32> to vector<1x16xf32>
    %101 = arith.mulf %99, %99 : vector<1x16xf32>
    %102 = arith.subf %100, %101 : vector<1x16xf32>
    %cst_28 = arith.constant 0.000000e+00 : f32
    %103 = vector.broadcast %cst_28 : f32 to vector<1x16xf32>
    %104 = arith.maximumf %102, %103 : vector<1x16xf32>
    %105 = vector.broadcast %99 : vector<1x16xf32> to vector<64x16xf32>
    %106 = arith.subf %90, %105 : vector<64x16xf32>
    %cst_29 = arith.constant 9.99999974E-6 : f32
    %107 = vector.broadcast %cst_29 : f32 to vector<1x16xf32>
    %108 = arith.addf %104, %107 : vector<1x16xf32>
    %109 = math.rsqrt %108 : vector<1x16xf32>
    %110 = vector.broadcast %109 : vector<1x16xf32> to vector<64x16xf32>
    %111 = arith.mulf %106, %110 : vector<64x16xf32>
    %112 = arith.mulf %111, %13 : vector<64x16xf32>
    %113 = arith.addf %112, %16 : vector<64x16xf32>
    %114 = vector.broadcast %1 : vector<64x1xf32> to vector<64x16xf32>
    %115 = arith.mulf %113, %114 : vector<64x16xf32>
    %cst_30 = arith.constant dense<0.000000e+00> : vector<64x48xf32>
    %116 = tpu.matmul %115, %4, %cst_30 {dimension_numbers = #tpu.dot_dimension_numbers<[1], [0], [0], [1], [0, 0, 1, 1], [], []>} : vector<64x16xf32>, vector<16x48xf32>, vector<64x48xf32> -> vector<64x48xf32>
    %117 = vector.broadcast %7 : vector<1x48xf32> to vector<64x48xf32>
    %118 = arith.addf %116, %117 : vector<64x48xf32>
    %119 = vector.extract_strided_slice %118 {offsets = [0, 0], sizes = [64, 32], strides = [1, 1]} : vector<64x48xf32> to vector<64x32xf32>
    %120 = arith.addf %68, %119 : vector<64x32xf32>
    %121 = arith.negf %120 : vector<64x32xf32>
    %122 = math.exp %121 : vector<64x32xf32>
    %cst_31 = arith.constant 1.000000e+00 : f32
    %123 = vector.broadcast %cst_31 : f32 to vector<64x32xf32>
    %124 = arith.addf %123, %122 : vector<64x32xf32>
    %125 = arith.divf %123, %124 : vector<64x32xf32>
    %126 = vector.extract_strided_slice %125 {offsets = [0, 0], sizes = [64, 16], strides = [1, 1]} : vector<64x32xf32> to vector<64x16xf32>
    %127 = vector.extract_strided_slice %125 {offsets = [0, 16], sizes = [64, 16], strides = [1, 1]} : vector<64x32xf32> to vector<64x16xf32>
    %128 = vector.extract_strided_slice %118 {offsets = [0, 32], sizes = [64, 16], strides = [1, 1]} : vector<64x48xf32> to vector<64x16xf32>
    %129 = arith.mulf %126, %128 : vector<64x16xf32>
    %130 = arith.addf %69, %129 : vector<64x16xf32>
    %131 = math.tanh %130 : vector<64x16xf32>
    %132 = arith.subf %115, %131 : vector<64x16xf32>
    %133 = arith.mulf %127, %132 : vector<64x16xf32>
    %134 = arith.addf %131, %133 : vector<64x16xf32>
    %135 = vector.broadcast %1 : vector<64x1xf32> to vector<64x16xf32>
    %136 = arith.mulf %134, %135 : vector<64x16xf32>
    %137 = vector.broadcast %1 : vector<64x1xf32> to vector<64x16xf32>
    %138 = arith.mulf %136, %137 : vector<64x16xf32>
    %139 = arith.mulf %138, %138 : vector<64x16xf32>
    %140 = tpu.concatenate %138, %139 in 1 : vector<64x16xf32>, vector<64x16xf32> -> vector<64x32xf32>
    %cst_32 = arith.constant dense<0.000000e+00> : vector<32xf32>
    %141 = vector.multi_reduction <add>, %140, %cst_32 [0] : vector<64x32xf32> to vector<32xf32>
    %142 = vector.shape_cast %141 : vector<32xf32> to vector<1x32xf32>
    %143 = vector.broadcast %21 : vector<1x1xf32> to vector<1x32xf32>
    %144 = arith.mulf %142, %143 : vector<1x32xf32>
    %145 = vector.extract_strided_slice %144 {offsets = [0, 0], sizes = [1, 16], strides = [1, 1]} : vector<1x32xf32> to vector<1x16xf32>
    %146 = vector.extract_strided_slice %144 {offsets = [0, 16], sizes = [1, 16], strides = [1, 1]} : vector<1x32xf32> to vector<1x16xf32>
    %147 = arith.mulf %145, %145 : vector<1x16xf32>
    %148 = arith.subf %146, %147 : vector<1x16xf32>
    %cst_33 = arith.constant 0.000000e+00 : f32
    %149 = vector.broadcast %cst_33 : f32 to vector<1x16xf32>
    %150 = arith.maximumf %148, %149 : vector<1x16xf32>
    %151 = vector.broadcast %145 : vector<1x16xf32> to vector<64x16xf32>
    %152 = arith.subf %136, %151 : vector<64x16xf32>
    %cst_34 = arith.constant 9.99999974E-6 : f32
    %153 = vector.broadcast %cst_34 : f32 to vector<1x16xf32>
    %154 = arith.addf %150, %153 : vector<1x16xf32>
    %155 = math.rsqrt %154 : vector<1x16xf32>
    %156 = vector.broadcast %155 : vector<1x16xf32> to vector<64x16xf32>
    %157 = arith.mulf %152, %156 : vector<64x16xf32>
    %158 = arith.mulf %157, %13 : vector<64x16xf32>
    %159 = arith.addf %158, %16 : vector<64x16xf32>
    %160 = vector.broadcast %1 : vector<64x1xf32> to vector<64x16xf32>
    %161 = arith.mulf %159, %160 : vector<64x16xf32>
    %cst_35 = arith.constant dense<0.000000e+00> : vector<64x48xf32>
    %162 = tpu.matmul %161, %4, %cst_35 {dimension_numbers = #tpu.dot_dimension_numbers<[1], [0], [0], [1], [0, 0, 1, 1], [], []>} : vector<64x16xf32>, vector<16x48xf32>, vector<64x48xf32> -> vector<64x48xf32>
    %163 = vector.broadcast %7 : vector<1x48xf32> to vector<64x48xf32>
    %164 = arith.addf %162, %163 : vector<64x48xf32>
    %165 = vector.extract_strided_slice %164 {offsets = [0, 0], sizes = [64, 32], strides = [1, 1]} : vector<64x48xf32> to vector<64x32xf32>
    %166 = arith.addf %68, %165 : vector<64x32xf32>
    %167 = arith.negf %166 : vector<64x32xf32>
    %168 = math.exp %167 : vector<64x32xf32>
    %cst_36 = arith.constant 1.000000e+00 : f32
    %169 = vector.broadcast %cst_36 : f32 to vector<64x32xf32>
    %170 = arith.addf %169, %168 : vector<64x32xf32>
    %171 = arith.divf %169, %170 : vector<64x32xf32>
    %172 = vector.extract_strided_slice %171 {offsets = [0, 0], sizes = [64, 16], strides = [1, 1]} : vector<64x32xf32> to vector<64x16xf32>
    %173 = vector.extract_strided_slice %171 {offsets = [0, 16], sizes = [64, 16], strides = [1, 1]} : vector<64x32xf32> to vector<64x16xf32>
    %174 = vector.extract_strided_slice %164 {offsets = [0, 32], sizes = [64, 16], strides = [1, 1]} : vector<64x48xf32> to vector<64x16xf32>
    %175 = arith.mulf %172, %174 : vector<64x16xf32>
    %176 = arith.addf %69, %175 : vector<64x16xf32>
    %177 = math.tanh %176 : vector<64x16xf32>
    %178 = arith.subf %161, %177 : vector<64x16xf32>
    %179 = arith.mulf %173, %178 : vector<64x16xf32>
    %180 = arith.addf %177, %179 : vector<64x16xf32>
    %181 = vector.broadcast %1 : vector<64x1xf32> to vector<64x16xf32>
    %182 = arith.mulf %180, %181 : vector<64x16xf32>
    %183 = vector.broadcast %1 : vector<64x1xf32> to vector<64x16xf32>
    %184 = arith.mulf %182, %183 : vector<64x16xf32>
    %185 = arith.mulf %184, %184 : vector<64x16xf32>
    %186 = tpu.concatenate %184, %185 in 1 : vector<64x16xf32>, vector<64x16xf32> -> vector<64x32xf32>
    %cst_37 = arith.constant dense<0.000000e+00> : vector<32xf32>
    %187 = vector.multi_reduction <add>, %186, %cst_37 [0] : vector<64x32xf32> to vector<32xf32>
    %188 = vector.shape_cast %187 : vector<32xf32> to vector<1x32xf32>
    %189 = vector.broadcast %21 : vector<1x1xf32> to vector<1x32xf32>
    %190 = arith.mulf %188, %189 : vector<1x32xf32>
    %191 = vector.extract_strided_slice %190 {offsets = [0, 0], sizes = [1, 16], strides = [1, 1]} : vector<1x32xf32> to vector<1x16xf32>
    %192 = vector.extract_strided_slice %190 {offsets = [0, 16], sizes = [1, 16], strides = [1, 1]} : vector<1x32xf32> to vector<1x16xf32>
    %193 = arith.mulf %191, %191 : vector<1x16xf32>
    %194 = arith.subf %192, %193 : vector<1x16xf32>
    %cst_38 = arith.constant 0.000000e+00 : f32
    %195 = vector.broadcast %cst_38 : f32 to vector<1x16xf32>
    %196 = arith.maximumf %194, %195 : vector<1x16xf32>
    %197 = vector.broadcast %191 : vector<1x16xf32> to vector<64x16xf32>
    %198 = arith.subf %182, %197 : vector<64x16xf32>
    %cst_39 = arith.constant 9.99999974E-6 : f32
    %199 = vector.broadcast %cst_39 : f32 to vector<1x16xf32>
    %200 = arith.addf %196, %199 : vector<1x16xf32>
    %201 = math.rsqrt %200 : vector<1x16xf32>
    %202 = vector.broadcast %201 : vector<1x16xf32> to vector<64x16xf32>
    %203 = arith.mulf %198, %202 : vector<64x16xf32>
    %204 = arith.mulf %203, %13 : vector<64x16xf32>
    %205 = arith.addf %204, %16 : vector<64x16xf32>
    %206 = vector.broadcast %1 : vector<64x1xf32> to vector<64x16xf32>
    %207 = arith.mulf %205, %206 : vector<64x16xf32>
    %cst_40 = arith.constant dense<0.000000e+00> : vector<64x48xf32>
    %208 = tpu.matmul %207, %4, %cst_40 {dimension_numbers = #tpu.dot_dimension_numbers<[1], [0], [0], [1], [0, 0, 1, 1], [], []>} : vector<64x16xf32>, vector<16x48xf32>, vector<64x48xf32> -> vector<64x48xf32>
    %209 = vector.broadcast %7 : vector<1x48xf32> to vector<64x48xf32>
    %210 = arith.addf %208, %209 : vector<64x48xf32>
    %211 = vector.extract_strided_slice %210 {offsets = [0, 0], sizes = [64, 32], strides = [1, 1]} : vector<64x48xf32> to vector<64x32xf32>
    %212 = arith.addf %68, %211 : vector<64x32xf32>
    %213 = arith.negf %212 : vector<64x32xf32>
    %214 = math.exp %213 : vector<64x32xf32>
    %cst_41 = arith.constant 1.000000e+00 : f32
    %215 = vector.broadcast %cst_41 : f32 to vector<64x32xf32>
    %216 = arith.addf %215, %214 : vector<64x32xf32>
    %217 = arith.divf %215, %216 : vector<64x32xf32>
    %218 = vector.extract_strided_slice %217 {offsets = [0, 0], sizes = [64, 16], strides = [1, 1]} : vector<64x32xf32> to vector<64x16xf32>
    %219 = vector.extract_strided_slice %217 {offsets = [0, 16], sizes = [64, 16], strides = [1, 1]} : vector<64x32xf32> to vector<64x16xf32>
    %220 = vector.extract_strided_slice %210 {offsets = [0, 32], sizes = [64, 16], strides = [1, 1]} : vector<64x48xf32> to vector<64x16xf32>
    %221 = arith.mulf %218, %220 : vector<64x16xf32>
    %222 = arith.addf %69, %221 : vector<64x16xf32>
    %223 = math.tanh %222 : vector<64x16xf32>
    %224 = arith.subf %207, %223 : vector<64x16xf32>
    %225 = arith.mulf %219, %224 : vector<64x16xf32>
    %226 = arith.addf %223, %225 : vector<64x16xf32>
    %227 = vector.broadcast %1 : vector<64x1xf32> to vector<64x16xf32>
    %228 = arith.mulf %226, %227 : vector<64x16xf32>
    %229 = vector.broadcast %1 : vector<64x1xf32> to vector<64x16xf32>
    %230 = arith.mulf %228, %229 : vector<64x16xf32>
    %231 = arith.mulf %230, %230 : vector<64x16xf32>
    %232 = tpu.concatenate %230, %231 in 1 : vector<64x16xf32>, vector<64x16xf32> -> vector<64x32xf32>
    %cst_42 = arith.constant dense<0.000000e+00> : vector<32xf32>
    %233 = vector.multi_reduction <add>, %232, %cst_42 [0] : vector<64x32xf32> to vector<32xf32>
    %234 = vector.shape_cast %233 : vector<32xf32> to vector<1x32xf32>
    %235 = vector.broadcast %21 : vector<1x1xf32> to vector<1x32xf32>
    %236 = arith.mulf %234, %235 : vector<1x32xf32>
    %237 = vector.extract_strided_slice %236 {offsets = [0, 0], sizes = [1, 16], strides = [1, 1]} : vector<1x32xf32> to vector<1x16xf32>
    %238 = vector.extract_strided_slice %236 {offsets = [0, 16], sizes = [1, 16], strides = [1, 1]} : vector<1x32xf32> to vector<1x16xf32>
    %239 = arith.mulf %237, %237 : vector<1x16xf32>
    %240 = arith.subf %238, %239 : vector<1x16xf32>
    %cst_43 = arith.constant 0.000000e+00 : f32
    %241 = vector.broadcast %cst_43 : f32 to vector<1x16xf32>
    %242 = arith.maximumf %240, %241 : vector<1x16xf32>
    %243 = vector.broadcast %237 : vector<1x16xf32> to vector<64x16xf32>
    %244 = arith.subf %228, %243 : vector<64x16xf32>
    %cst_44 = arith.constant 9.99999974E-6 : f32
    %245 = vector.broadcast %cst_44 : f32 to vector<1x16xf32>
    %246 = arith.addf %242, %245 : vector<1x16xf32>
    %247 = math.rsqrt %246 : vector<1x16xf32>
    %248 = vector.broadcast %247 : vector<1x16xf32> to vector<64x16xf32>
    %249 = arith.mulf %244, %248 : vector<64x16xf32>
    %250 = arith.mulf %249, %13 : vector<64x16xf32>
    %251 = arith.addf %250, %16 : vector<64x16xf32>
    %252 = vector.broadcast %1 : vector<64x1xf32> to vector<64x16xf32>
    %253 = arith.mulf %251, %252 : vector<64x16xf32>
    %cst_45 = arith.constant dense<0.000000e+00> : vector<64x48xf32>
    %254 = tpu.matmul %253, %4, %cst_45 {dimension_numbers = #tpu.dot_dimension_numbers<[1], [0], [0], [1], [0, 0, 1, 1], [], []>} : vector<64x16xf32>, vector<16x48xf32>, vector<64x48xf32> -> vector<64x48xf32>
    %255 = vector.broadcast %7 : vector<1x48xf32> to vector<64x48xf32>
    %256 = arith.addf %254, %255 : vector<64x48xf32>
    %257 = vector.extract_strided_slice %256 {offsets = [0, 0], sizes = [64, 32], strides = [1, 1]} : vector<64x48xf32> to vector<64x32xf32>
    %258 = arith.addf %68, %257 : vector<64x32xf32>
    %259 = arith.negf %258 : vector<64x32xf32>
    %260 = math.exp %259 : vector<64x32xf32>
    %cst_46 = arith.constant 1.000000e+00 : f32
    %261 = vector.broadcast %cst_46 : f32 to vector<64x32xf32>
    %262 = arith.addf %261, %260 : vector<64x32xf32>
    %263 = arith.divf %261, %262 : vector<64x32xf32>
    %264 = vector.extract_strided_slice %263 {offsets = [0, 0], sizes = [64, 16], strides = [1, 1]} : vector<64x32xf32> to vector<64x16xf32>
    %265 = vector.extract_strided_slice %263 {offsets = [0, 16], sizes = [64, 16], strides = [1, 1]} : vector<64x32xf32> to vector<64x16xf32>
    %266 = vector.extract_strided_slice %256 {offsets = [0, 32], sizes = [64, 16], strides = [1, 1]} : vector<64x48xf32> to vector<64x16xf32>
    %267 = arith.mulf %264, %266 : vector<64x16xf32>
    %268 = arith.addf %69, %267 : vector<64x16xf32>
    %269 = math.tanh %268 : vector<64x16xf32>
    %270 = arith.subf %253, %269 : vector<64x16xf32>
    %271 = arith.mulf %265, %270 : vector<64x16xf32>
    %272 = arith.addf %269, %271 : vector<64x16xf32>
    %273 = vector.broadcast %1 : vector<64x1xf32> to vector<64x16xf32>
    %274 = arith.mulf %272, %273 : vector<64x16xf32>
    %275 = vector.broadcast %1 : vector<64x1xf32> to vector<64x16xf32>
    %276 = arith.mulf %274, %275 : vector<64x16xf32>
    %277 = arith.mulf %276, %276 : vector<64x16xf32>
    %278 = tpu.concatenate %276, %277 in 1 : vector<64x16xf32>, vector<64x16xf32> -> vector<64x32xf32>
    %cst_47 = arith.constant dense<0.000000e+00> : vector<32xf32>
    %279 = vector.multi_reduction <add>, %278, %cst_47 [0] : vector<64x32xf32> to vector<32xf32>
    %280 = vector.shape_cast %279 : vector<32xf32> to vector<1x32xf32>
    %281 = vector.broadcast %21 : vector<1x1xf32> to vector<1x32xf32>
    %282 = arith.mulf %280, %281 : vector<1x32xf32>
    %283 = vector.extract_strided_slice %282 {offsets = [0, 0], sizes = [1, 16], strides = [1, 1]} : vector<1x32xf32> to vector<1x16xf32>
    %284 = vector.extract_strided_slice %282 {offsets = [0, 16], sizes = [1, 16], strides = [1, 1]} : vector<1x32xf32> to vector<1x16xf32>
    %285 = arith.mulf %283, %283 : vector<1x16xf32>
    %286 = arith.subf %284, %285 : vector<1x16xf32>
    %cst_48 = arith.constant 0.000000e+00 : f32
    %287 = vector.broadcast %cst_48 : f32 to vector<1x16xf32>
    %288 = arith.maximumf %286, %287 : vector<1x16xf32>
    %289 = vector.broadcast %283 : vector<1x16xf32> to vector<64x16xf32>
    %290 = arith.subf %274, %289 : vector<64x16xf32>
    %cst_49 = arith.constant 9.99999974E-6 : f32
    %291 = vector.broadcast %cst_49 : f32 to vector<1x16xf32>
    %292 = arith.addf %288, %291 : vector<1x16xf32>
    %293 = math.rsqrt %292 : vector<1x16xf32>
    %294 = vector.broadcast %293 : vector<1x16xf32> to vector<64x16xf32>
    %295 = arith.mulf %290, %294 : vector<64x16xf32>
    %296 = arith.mulf %295, %13 : vector<64x16xf32>
    %297 = arith.addf %296, %16 : vector<64x16xf32>
    %298 = vector.broadcast %1 : vector<64x1xf32> to vector<64x16xf32>
    %299 = arith.mulf %297, %298 : vector<64x16xf32>
    %cst_50 = arith.constant dense<0.000000e+00> : vector<64x48xf32>
    %300 = tpu.matmul %299, %4, %cst_50 {dimension_numbers = #tpu.dot_dimension_numbers<[1], [0], [0], [1], [0, 0, 1, 1], [], []>} : vector<64x16xf32>, vector<16x48xf32>, vector<64x48xf32> -> vector<64x48xf32>
    %301 = vector.broadcast %7 : vector<1x48xf32> to vector<64x48xf32>
    %302 = arith.addf %300, %301 : vector<64x48xf32>
    %303 = vector.extract_strided_slice %302 {offsets = [0, 0], sizes = [64, 32], strides = [1, 1]} : vector<64x48xf32> to vector<64x32xf32>
    %304 = arith.addf %68, %303 : vector<64x32xf32>
    %305 = arith.negf %304 : vector<64x32xf32>
    %306 = math.exp %305 : vector<64x32xf32>
    %cst_51 = arith.constant 1.000000e+00 : f32
    %307 = vector.broadcast %cst_51 : f32 to vector<64x32xf32>
    %308 = arith.addf %307, %306 : vector<64x32xf32>
    %309 = arith.divf %307, %308 : vector<64x32xf32>
    %310 = vector.extract_strided_slice %309 {offsets = [0, 0], sizes = [64, 16], strides = [1, 1]} : vector<64x32xf32> to vector<64x16xf32>
    %311 = vector.extract_strided_slice %309 {offsets = [0, 16], sizes = [64, 16], strides = [1, 1]} : vector<64x32xf32> to vector<64x16xf32>
    %312 = vector.extract_strided_slice %302 {offsets = [0, 32], sizes = [64, 16], strides = [1, 1]} : vector<64x48xf32> to vector<64x16xf32>
    %313 = arith.mulf %310, %312 : vector<64x16xf32>
    %314 = arith.addf %69, %313 : vector<64x16xf32>
    %315 = math.tanh %314 : vector<64x16xf32>
    %316 = arith.subf %299, %315 : vector<64x16xf32>
    %317 = arith.mulf %311, %316 : vector<64x16xf32>
    %318 = arith.addf %315, %317 : vector<64x16xf32>
    %319 = vector.broadcast %1 : vector<64x1xf32> to vector<64x16xf32>
    %320 = arith.mulf %318, %319 : vector<64x16xf32>
    %321 = vector.broadcast %1 : vector<64x1xf32> to vector<64x16xf32>
    %322 = arith.mulf %320, %321 : vector<64x16xf32>
    %323 = arith.mulf %322, %322 : vector<64x16xf32>
    %324 = tpu.concatenate %322, %323 in 1 : vector<64x16xf32>, vector<64x16xf32> -> vector<64x32xf32>
    %cst_52 = arith.constant dense<0.000000e+00> : vector<32xf32>
    %325 = vector.multi_reduction <add>, %324, %cst_52 [0] : vector<64x32xf32> to vector<32xf32>
    %326 = vector.shape_cast %325 : vector<32xf32> to vector<1x32xf32>
    %327 = vector.broadcast %21 : vector<1x1xf32> to vector<1x32xf32>
    %328 = arith.mulf %326, %327 : vector<1x32xf32>
    %329 = vector.extract_strided_slice %328 {offsets = [0, 0], sizes = [1, 16], strides = [1, 1]} : vector<1x32xf32> to vector<1x16xf32>
    %330 = vector.extract_strided_slice %328 {offsets = [0, 16], sizes = [1, 16], strides = [1, 1]} : vector<1x32xf32> to vector<1x16xf32>
    %331 = arith.mulf %329, %329 : vector<1x16xf32>
    %332 = arith.subf %330, %331 : vector<1x16xf32>
    %cst_53 = arith.constant 0.000000e+00 : f32
    %333 = vector.broadcast %cst_53 : f32 to vector<1x16xf32>
    %334 = arith.maximumf %332, %333 : vector<1x16xf32>
    %335 = vector.broadcast %329 : vector<1x16xf32> to vector<64x16xf32>
    %336 = arith.subf %320, %335 : vector<64x16xf32>
    %cst_54 = arith.constant 9.99999974E-6 : f32
    %337 = vector.broadcast %cst_54 : f32 to vector<1x16xf32>
    %338 = arith.addf %334, %337 : vector<1x16xf32>
    %339 = math.rsqrt %338 : vector<1x16xf32>
    %340 = vector.broadcast %339 : vector<1x16xf32> to vector<64x16xf32>
    %341 = arith.mulf %336, %340 : vector<64x16xf32>
    %342 = arith.mulf %341, %13 : vector<64x16xf32>
    %343 = arith.addf %342, %16 : vector<64x16xf32>
    %344 = vector.broadcast %1 : vector<64x1xf32> to vector<64x16xf32>
    %345 = arith.mulf %343, %344 : vector<64x16xf32>
    %346 = tpu.concatenate %345, %0 in 1 : vector<64x16xf32>, vector<64x16xf32> -> vector<64x32xf32>
    %cst_55 = arith.constant dense<0.000000e+00> : vector<64x16xf32>
    %347 = tpu.matmul %346, %5, %cst_55 {dimension_numbers = #tpu.dot_dimension_numbers<[1], [0], [0], [1], [0, 0, 1, 1], [], []>} : vector<64x32xf32>, vector<32x16xf32>, vector<64x16xf32> -> vector<64x16xf32>
    %348 = vector.broadcast %8 : vector<1x16xf32> to vector<64x16xf32>
    %349 = arith.addf %347, %348 : vector<64x16xf32>
    %350 = vector.extract_strided_slice %349 {offsets = [0, 0], sizes = [64, 8], strides = [1, 1]} : vector<64x16xf32> to vector<64x8xf32>
    %351 = arith.negf %350 : vector<64x8xf32>
    %352 = math.exp %351 : vector<64x8xf32>
    %cst_56 = arith.constant 1.000000e+00 : f32
    %353 = vector.broadcast %cst_56 : f32 to vector<64x8xf32>
    %354 = arith.addf %353, %352 : vector<64x8xf32>
    %355 = arith.divf %353, %354 : vector<64x8xf32>
    %356 = vector.extract_strided_slice %349 {offsets = [0, 8], sizes = [64, 8], strides = [1, 1]} : vector<64x16xf32> to vector<64x8xf32>
    %357 = arith.mulf %355, %356 : vector<64x8xf32>
    %358 = vector.broadcast %1 : vector<64x1xf32> to vector<64x8xf32>
    %359 = arith.mulf %357, %358 : vector<64x8xf32>
    %cst_57 = arith.constant dense<0.000000e+00> : vector<8x8xf32>
    %360 = tpu.matmul %17, %359, %cst_57 {dimension_numbers = #tpu.dot_dimension_numbers<[1], [0], [0], [1], [0, 0, 1, 1], [], []>} : vector<8x64xf32>, vector<64x8xf32>, vector<8x8xf32> -> vector<8x8xf32>
    %c0_58 = arith.constant 0 : index
    %c0_59 = arith.constant 0 : index
    %361 = vector.load %arg3[%c0_58, %c0_59] : memref<8x8xf32, #tpu.memory_space<vmem>>, vector<8x8xf32>
    tpu.vector_store %arg3[%c0_58, %c0_59], %360 {strides = array<i32>} : memref<8x8xf32, #tpu.memory_space<vmem>>, vector<8x8xf32>,
    return
  }
}

</mosaic_0001>

<llo_original>
// kernel: tpu_custom_call.1
$region0: #{tpu_custom_call.1}
  #allocation0 [shape = 'u32[]', space=smem, size = 0x4, offset = 0x4, fixed_abs, tag = 'smem constant byte address 0x4 - core index']
  #allocation1 [shape = 'u32[144,128]{1,0:T(1,128)}', space=vmem, size = 0x12000, scoped, tag = 'internal scratch']
  %s0 = inlined_call_operand.vmem [shape: f32[64,17], index: 0, kind: input, shape index: {}]
  %s1 = inlined_call_operand.vmem [shape: f32[64,576], index: 1, kind: input, shape index: {}]
  %s2 = inlined_call_operand.vmem [shape: f32[272,64], index: 2, kind: input, shape index: {}]
  %s3 = inlined_call_operand.hbm [shape: f32[8,8], index: 3, kind: output, shape index: {}]
  %s4 = sld [smem:[#allocation0]]
  $region22: #{tpu_custom_call.1} parent=0
    _
  %s6 = ssub.s32 1, %s4
  %s7 = scalar_select 0, %s6, %s4
  $region1: #{tpu_custom_call.1} parent=0
    #allocation2 [shape = 'u8[4096]{0}', space=vmem, size = 0x1000, scoped, tag = 'output window, operand 0, single buffered']
    #allocation3 [shape = 's32[1]{0}', space=sflag, size = 0x4, scoped, tag = 'scoped memory for tpu_custom_call.1']
    %8 = vsyncpa [#allocation3], 0
    // Predicated region
    $region2: #{tpu_custom_call.1} parent=1 // pred_check
      _
    $region3: #{tpu_custom_call.1} parent=1 // pred_check_branch
      %10 = sbr.rel (0) target = $region5
    $region4: #{tpu_custom_call.1} parent=1 // pred_region
      _
    $region5: #{tpu_custom_call.1} parent=1 // pred_fallthru
      _
    // Predicated region
    $region6: #{tpu_custom_call.1} parent=1 // pred_check
      _
    $region7: #{tpu_custom_call.1} parent=1 // pred_check_branch
      %12 = sbr.rel (0) target = $region9
    $region8: #{tpu_custom_call.1} parent=1 // pred_region
      _
    $region9: #{tpu_custom_call.1} parent=1 // pred_fallthru
      _
    // Predicated region
    $region10: #{tpu_custom_call.1} parent=1 // pred_check
      _
    $region11: #{tpu_custom_call.1} parent=1 // pred_check_branch
      %14 = sbr.rel (0) target = $region13
    $region12: #{tpu_custom_call.1} parent=1 // pred_region
      _
    $region13: #{tpu_custom_call.1} parent=1 // pred_fallthru
      _
    %v15 = vld [vmem:[%s0] sm:$0xff]
    %v16 = vld [vmem:[%s0 + $0x8] sm:$0xff]
    %v17 = vld [vmem:[%s0 + $0x10] sm:$0xff]
    %v18 = vld [vmem:[%s0 + $0x18] sm:$0xff]
    %v19 = vld [vmem:[%s0 + $0x20] sm:$0xff]
    %v20 = vld [vmem:[%s0 + $0x28] sm:$0xff]
    %v21 = vld [vmem:[%s0 + $0x30] sm:$0xff]
    %v22 = vld [vmem:[%s0 + $0x38] sm:$0xff]
    %v23 = vld [vmem:[%s2] sm:$0xff]
    %v24 = vld [vmem:[%s2 + $0x8] sm:$0xff]
    %v25 = vld [vmem:[%s2 + $0x10] sm:$0xff]
    %v26 = vld [vmem:[%s2 + $0x18] sm:$0xff]
    %v27 = vld [vmem:[%s2 + $0x20] sm:$0xff]
    %v28 = vld [vmem:[%s2 + $0x28] sm:$0xff]
    %v29 = vld [vmem:[%s2 + $0x30] sm:$0xff]
    %v30 = vld [vmem:[%s2 + $0x38] sm:$0xff]
    %v31 = vld [vmem:[%s2 + $0x40] sm:$0xff]
    %v32 = vld [vmem:[%s2 + $0x48] sm:$0xff]
    %v33 = vld [vmem:[%s2 + $0x50] sm:$0xff]
    %v34 = vld [vmem:[%s2 + $0x58] sm:$0xff]
    %v35 = vld [vmem:[%s2 + $0x60] sm:$0xff]
    %v36 = vld [vmem:[%s2 + $0x68] sm:$0xff]
    %v37 = vld [vmem:[%s2 + $0x70] sm:$0xff]
    %v38 = vld [vmem:[%s2 + $0x78] sm:$0xff]
    %v39 = vld [vmem:[%s2 + $0x80] sm:$0xff]
    %v40 = vld [vmem:[%s2 + $0x88] sm:$0xff]
    %v41 = vld [vmem:[%s2 + $0x90] sm:$0xff]
    %v42 = vld [vmem:[%s2 + $0x98] sm:$0xff]
    %v43 = vld [vmem:[%s2 + $0xa0] sm:$0xff]
    %v44 = vld [vmem:[%s2 + $0xa8] sm:$0xff]
    %v45 = vld [vmem:[%s2 + $0xb0] sm:$0xff]
    %v46 = vld [vmem:[%s2 + $0xb8] sm:$0xff]
    %v47 = vld [vmem:[%s2 + $0xc0] sm:$0xff]
    %v48 = vld [vmem:[%s2 + $0xc8] sm:$0xff]
    %v49 = vld [vmem:[%s2 + $0xd0] sm:$0x1]
    %v50 = vld [vmem:[%s2 + $0xd8] sm:$0x1]
    %v51 = vld [vmem:[%s2 + $0xe0] sm:$0x1]
    %v52 = vld [vmem:[%s2 + $0xe8] sm:$0x1]
    %v53 = vld [vmem:[%s2 + $0xf0] sm:$0x1]
    %v54 = vld [vmem:[%s2 + $0xf8] sm:$0x1]
    %v55 = vlaneseq
    %v56 = vshrl.u32 %v55, 7
    %v57 = vsub.s32 0, %v56
    %v58 = vrot.slane %v54, %v57
    %v59 = vld [vmem:[%s2 + $0x100] sm:$0x1]
    %v60 = vlaneseq
    %v61 = vshrl.u32 %v60, 7
    %v62 = vsub.s32 0, %v61
    %v63 = vrot.slane %v59, %v62
    %v64 = vld [vmem:[%s2 + $0x108] sm:$0xff]
    %vm65 = vcmask 138368
    %v66 = vsel %vm65, %v15, 0.0
    %v67 = vsel %vm65, %v16, 0.0
    %v68 = vadd.f32 %v66, %v67
    %v69 = vsel %vm65, %v17, 0.0
    %v70 = vadd.f32 %v68, %v69
    %v71 = vsel %vm65, %v18, 0.0
    %v72 = vadd.f32 %v70, %v71
    %v73 = vsel %vm65, %v19, 0.0
    %v74 = vadd.f32 %v72, %v73
    %v75 = vsel %vm65, %v20, 0.0
    %v76 = vadd.f32 %v74, %v75
    %v77 = vsel %vm65, %v21, 0.0
    %v78 = vadd.f32 %v76, %v77
    %v79 = vsel %vm65, %v22, 0.0
    %v80 = vadd.f32 %v78, %v79
    %v81 = vrot.slane %v80, 4
    %v82 = vadd.f32 %v80, %v81
    %v83 = vrot.slane %v82, 2
    %v84 = vadd.f32 %v82, %v83
    %v85 = vrot.slane %v84, 1
    %v86 = vadd.f32 %v84, %v85
    %v87 = vrcp.pop %v86
    %v88 = vmul.f32 1.0, %v87
    %90 = vset.pattern.permute.xlu0 16
    %91 = vperm.xlu0 %90, %v15
    %v92 = vpop.permute.xlu0 %91
    %95 = vset.pattern.permute.xlu0 16
    %96 = vperm.xlu0 %95, %v16
    %v97 = vpop.permute.xlu0 %96
    %100 = vset.pattern.permute.xlu0 16
    %101 = vperm.xlu0 %100, %v17
    %v102 = vpop.permute.xlu0 %101
    %105 = vset.pattern.permute.xlu0 16
    %106 = vperm.xlu0 %105, %v18
    %v107 = vpop.permute.xlu0 %106
    %110 = vset.pattern.permute.xlu0 16
    %111 = vperm.xlu0 %110, %v19
    %v112 = vpop.permute.xlu0 %111
    %115 = vset.pattern.permute.xlu0 16
    %116 = vperm.xlu0 %115, %v20
    %v117 = vpop.permute.xlu0 %116
    %120 = vset.pattern.permute.xlu0 16
    %121 = vperm.xlu0 %120, %v21
    %v122 = vpop.permute.xlu0 %121
    %125 = vset.pattern.permute.xlu0 16
    %126 = vperm.xlu0 %125, %v22
    %v127 = vpop.permute.xlu0 %126
    %v129 = vmul.f32 %v15, %v92
    %v130 = vmul.f32 %v16, %v97
    %v131 = vmul.f32 %v17, %v102
    %v132 = vmul.f32 %v18, %v107
    %v133 = vmul.f32 %v19, %v112
    %v134 = vmul.f32 %v20, %v117
    %v135 = vmul.f32 %v21, %v122
    %v136 = vmul.f32 %v22, %v127
    %vm137 = vcmask 130048
    %v138 = vsel %vm137, %v129, 0.0
    %v139 = vsel %vm137, %v130, 0.0
    %v140 = vsel %vm137, %v131, 0.0
    %v141 = vsel %vm137, %v132, 0.0
    %v142 = vsel %vm137, %v133, 0.0
    %v143 = vsel %vm137, %v134, 0.0
    %v144 = vsel %vm137, %v135, 0.0
    %v145 = vsel %vm137, %v136, 0.0
    %vm146 = vcmask 261120
    %v147 = vsel %vm146, %v138, 0.0
    %v148 = vsel %vm146, %v139, 0.0
    %v149 = vsel %vm146, %v140, 0.0
    %v150 = vsel %vm146, %v141, 0.0
    %v151 = vsel %vm146, %v142, 0.0
    %v152 = vsel %vm146, %v143, 0.0
    %v153 = vsel %vm146, %v144, 0.0
    %v154 = vsel %vm146, %v145, 0.0
    %vm155 = vcmask 392192
    %v156 = vsel %vm155, %v147, 0.0
    %v157 = vsel %vm155, %v148, 0.0
    %v158 = vsel %vm155, %v149, 0.0
    %v159 = vsel %vm155, %v150, 0.0
    %v160 = vsel %vm155, %v151, 0.0
    %v161 = vsel %vm155, %v152, 0.0
    %v162 = vsel %vm155, %v153, 0.0
    %v163 = vsel %vm155, %v154, 0.0
    %vm164 = vcmask 523264
    %v165 = vsel %vm164, %v156, 0.0
    %v166 = vsel %vm164, %v157, 0.0
    %v167 = vsel %vm164, %v158, 0.0
    %v168 = vsel %vm164, %v159, 0.0
    %v169 = vsel %vm164, %v160, 0.0
    %v170 = vsel %vm164, %v161, 0.0
    %v171 = vsel %vm164, %v162, 0.0
    %v172 = vsel %vm164, %v163, 0.0
    %vm173 = vcmask 654336
    %v174 = vsel %vm173, %v165, 0.0
    %v175 = vsel %vm173, %v166, 0.0
    %v176 = vsel %vm173, %v167, 0.0
    %v177 = vsel %vm173, %v168, 0.0
    %v178 = vsel %vm173, %v169, 0.0
    %v179 = vsel %vm173, %v170, 0.0
    %v180 = vsel %vm173, %v171, 0.0
    %v181 = vsel %vm173, %v172, 0.0
    %vm182 = vcmask 785408
    %v183 = vsel %vm182, %v174, 0.0
    %v184 = vsel %vm182, %v175, 0.0
    %v185 = vsel %vm182, %v176, 0.0
    %v186 = vsel %vm182, %v177, 0.0
    %v187 = vsel %vm182, %v178, 0.0
    %v188 = vsel %vm182, %v179, 0.0
    %v189 = vsel %vm182, %v180, 0.0
    %v190 = vsel %vm182, %v181, 0.0
    %vm191 = vcmask 916480
    %v192 = vsel %vm191, %v183, 0.0
    %v193 = vsel %vm191, %v184, 0.0
    %v194 = vsel %vm191, %v185, 0.0
    %v195 = vsel %vm191, %v186, 0.0
    %v196 = vsel %vm191, %v187, 0.0
    %v197 = vsel %vm191, %v188, 0.0
    %v198 = vsel %vm191, %v189, 0.0
    %v199 = vsel %vm191, %v190, 0.0
    %208 = vrot.lane.b32.xlu0 %v129, 16
    %v209 = vpop.permute.xlu0 %208
    %210 = vrot.lane.b32.xlu0 %v130, 16
    %v211 = vpop.permute.xlu0 %210
    %212 = vrot.lane.b32.xlu0 %v131, 16
    %v213 = vpop.permute.xlu0 %212
    %214 = vrot.lane.b32.xlu0 %v132, 16
    %v215 = vpop.permute.xlu0 %214
    %216 = vrot.lane.b32.xlu0 %v133, 16
    %v217 = vpop.permute.xlu0 %216
    %218 = vrot.lane.b32.xlu0 %v134, 16
    %v219 = vpop.permute.xlu0 %218
    %220 = vrot.lane.b32.xlu0 %v135, 16
    %v221 = vpop.permute.xlu0 %220
    %222 = vrot.lane.b32.xlu0 %v136, 16
    %v223 = vpop.permute.xlu0 %222
    %v232 = vsel %vm137, 0.0, %v209
    %v233 = vsel %vm137, 0.0, %v211
    %v234 = vsel %vm137, 0.0, %v213
    %v235 = vsel %vm137, 0.0, %v215
    %v236 = vsel %vm137, 0.0, %v217
    %v237 = vsel %vm137, 0.0, %v219
    %v238 = vsel %vm137, 0.0, %v221
    %v239 = vsel %vm137, 0.0, %v223
    %v240 = vsel %vm146, %v232, 0.0
    %v241 = vsel %vm146, %v233, 0.0
    %v242 = vsel %vm146, %v234, 0.0
    %v243 = vsel %vm146, %v235, 0.0
    %v244 = vsel %vm146, %v236, 0.0
    %v245 = vsel %vm146, %v237, 0.0
    %v246 = vsel %vm146, %v238, 0.0
    %v247 = vsel %vm146, %v239, 0.0
    %v248 = vsel %vm155, %v240, 0.0
    %v249 = vsel %vm155, %v241, 0.0
    %v250 = vsel %vm155, %v242, 0.0
    %v251 = vsel %vm155, %v243, 0.0
    %v252 = vsel %vm155, %v244, 0.0
    %v253 = vsel %vm155, %v245, 0.0
    %v254 = vsel %vm155, %v246, 0.0
    %v255 = vsel %vm155, %v247, 0.0
    %v256 = vsel %vm164, %v248, 0.0
    %v257 = vsel %vm164, %v249, 0.0
    %v258 = vsel %vm164, %v250, 0.0
    %v259 = vsel %vm164, %v251, 0.0
    %v260 = vsel %vm164, %v252, 0.0
    %v261 = vsel %vm164, %v253, 0.0
    %v262 = vsel %vm164, %v254, 0.0
    %v263 = vsel %vm164, %v255, 0.0
    %v264 = vsel %vm173, %v256, 0.0
    %v265 = vsel %vm173, %v257, 0.0
    %v266 = vsel %vm173, %v258, 0.0
    %v267 = vsel %vm173, %v259, 0.0
    %v268 = vsel %vm173, %v260, 0.0
    %v269 = vsel %vm173, %v261, 0.0
    %v270 = vsel %vm173, %v262, 0.0
    %v271 = vsel %vm173, %v263, 0.0
    %v272 = vsel %vm182, %v264, 0.0
    %v273 = vsel %vm182, %v265, 0.0
    %v274 = vsel %vm182, %v266, 0.0
    %v275 = vsel %vm182, %v267, 0.0
    %v276 = vsel %vm182, %v268, 0.0
    %v277 = vsel %vm182, %v269, 0.0
    %v278 = vsel %vm182, %v270, 0.0
    %v279 = vsel %vm182, %v271, 0.0
    %v280 = vsel %vm191, %v272, 0.0
    %v281 = vsel %vm191, %v273, 0.0
    %v282 = vsel %vm191, %v274, 0.0
    %v283 = vsel %vm191, %v275, 0.0
    %v284 = vsel %vm191, %v276, 0.0
    %v285 = vsel %vm191, %v277, 0.0
    %v286 = vsel %vm191, %v278, 0.0
    %v287 = vsel %vm191, %v279, 0.0
    %288 = vrot.lane.b32.xlu0 %v129, 32
    %v289 = vpop.permute.xlu0 %288
    %290 = vrot.lane.b32.xlu0 %v130, 32
    %v291 = vpop.permute.xlu0 %290
    %292 = vrot.lane.b32.xlu0 %v131, 32
    %v293 = vpop.permute.xlu0 %292
    %294 = vrot.lane.b32.xlu0 %v132, 32
    %v295 = vpop.permute.xlu0 %294
    %296 = vrot.lane.b32.xlu0 %v133, 32
    %v297 = vpop.permute.xlu0 %296
    %298 = vrot.lane.b32.xlu0 %v134, 32
    %v299 = vpop.permute.xlu0 %298
    %300 = vrot.lane.b32.xlu0 %v135, 32
    %v301 = vpop.permute.xlu0 %300
    %302 = vrot.lane.b32.xlu0 %v136, 32
    %v303 = vpop.permute.xlu0 %302
    %v312 = vsel %vm146, 0.0, %v289
    %v313 = vsel %vm146, 0.0, %v291
    %v314 = vsel %vm146, 0.0, %v293
    %v315 = vsel %vm146, 0.0, %v295
    %v316 = vsel %vm146, 0.0, %v297
    %v317 = vsel %vm146, 0.0, %v299
    %v318 = vsel %vm146, 0.0, %v301
    %v319 = vsel %vm146, 0.0, %v303
    %v320 = vsel %vm155, %v312, 0.0
    %v321 = vsel %vm155, %v313, 0.0
    %v322 = vsel %vm155, %v314, 0.0
    %v323 = vsel %vm155, %v315, 0.0
    %v324 = vsel %vm155, %v316, 0.0
    %v325 = vsel %vm155, %v317, 0.0
    %v326 = vsel %vm155, %v318, 0.0
    %v327 = vsel %vm155, %v319, 0.0
    %v328 = vsel %vm164, %v320, 0.0
    %v329 = vsel %vm164, %v321, 0.0
    %v330 = vsel %vm164, %v322, 0.0
    %v331 = vsel %vm164, %v323, 0.0
    %v332 = vsel %vm164, %v324, 0.0
    %v333 = vsel %vm164, %v325, 0.0
    %v334 = vsel %vm164, %v326, 0.0
    %v335 = vsel %vm164, %v327, 0.0
    %v336 = vsel %vm173, %v328, 0.0
    %v337 = vsel %vm173, %v329, 0.0
    %v338 = vsel %vm173, %v330, 0.0
    %v339 = vsel %vm173, %v331, 0.0
    %v340 = vsel %vm173, %v332, 0.0
    %v341 = vsel %vm173, %v333, 0.0
    %v342 = vsel %vm173, %v334, 0.0
    %v343 = vsel %vm173, %v335, 0.0
    %v344 = vsel %vm182, %v336, 0.0
    %v345 = vsel %vm182, %v337, 0.0
    %v346 = vsel %vm182, %v338, 0.0
    %v347 = vsel %vm182, %v339, 0.0
    %v348 = vsel %vm182, %v340, 0.0
    %v349 = vsel %vm182, %v341, 0.0
    %v350 = vsel %vm182, %v342, 0.0
    %v351 = vsel %vm182, %v343, 0.0
    %v352 = vsel %vm191, %v344, 0.0
    %v353 = vsel %vm191, %v345, 0.0
    %v354 = vsel %vm191, %v346, 0.0
    %v355 = vsel %vm191, %v347, 0.0
    %v356 = vsel %vm191, %v348, 0.0
    %v357 = vsel %vm191, %v349, 0.0
    %v358 = vsel %vm191, %v350, 0.0
    %v359 = vsel %vm191, %v351, 0.0
    %360 = vrot.lane.b32.xlu0 %v129, 48
    %v361 = vpop.permute.xlu0 %360
    %362 = vrot.lane.b32.xlu0 %v130, 48
    %v363 = vpop.permute.xlu0 %362
    %364 = vrot.lane.b32.xlu0 %v131, 48
    %v365 = vpop.permute.xlu0 %364
    %366 = vrot.lane.b32.xlu0 %v132, 48
    %v367 = vpop.permute.xlu0 %366
    %368 = vrot.lane.b32.xlu0 %v133, 48
    %v369 = vpop.permute.xlu0 %368
    %370 = vrot.lane.b32.xlu0 %v134, 48
    %v371 = vpop.permute.xlu0 %370
    %372 = vrot.lane.b32.xlu0 %v135, 48
    %v373 = vpop.permute.xlu0 %372
    %374 = vrot.lane.b32.xlu0 %v136, 48
    %v375 = vpop.permute.xlu0 %374
    %v384 = vsel %vm155, 0.0, %v361
    %v385 = vsel %vm155, 0.0, %v363
    %v386 = vsel %vm155, 0.0, %v365
    %v387 = vsel %vm155, 0.0, %v367
    %v388 = vsel %vm155, 0.0, %v369
    %v389 = vsel %vm155, 0.0, %v371
    %v390 = vsel %vm155, 0.0, %v373
    %v391 = vsel %vm155, 0.0, %v375
    %v392 = vsel %vm164, %v384, 0.0
    %v393 = vsel %vm164, %v385, 0.0
    %v394 = vsel %vm164, %v386, 0.0
    %v395 = vsel %vm164, %v387, 0.0
    %v396 = vsel %vm164, %v388, 0.0
    %v397 = vsel %vm164, %v389, 0.0
    %v398 = vsel %vm164, %v390, 0.0
    %v399 = vsel %vm164, %v391, 0.0
    %v400 = vsel %vm173, %v392, 0.0
    %v401 = vsel %vm173, %v393, 0.0
    %v402 = vsel %vm173, %v394, 0.0
    %v403 = vsel %vm173, %v395, 0.0
    %v404 = vsel %vm173, %v396, 0.0
    %v405 = vsel %vm173, %v397, 0.0
    %v406 = vsel %vm173, %v398, 0.0
    %v407 = vsel %vm173, %v399, 0.0
    %v408 = vsel %vm182, %v400, 0.0
    %v409 = vsel %vm182, %v401, 0.0
    %v410 = vsel %vm182, %v402, 0.0
    %v411 = vsel %vm182, %v403, 0.0
    %v412 = vsel %vm182, %v404, 0.0
    %v413 = vsel %vm182, %v405, 0.0
    %v414 = vsel %vm182, %v406, 0.0
    %v415 = vsel %vm182, %v407, 0.0
    %v416 = vsel %vm191, %v408, 0.0
    %v417 = vsel %vm191, %v409, 0.0
    %v418 = vsel %vm191, %v410, 0.0
    %v419 = vsel %vm191, %v411, 0.0
    %v420 = vsel %vm191, %v412, 0.0
    %v421 = vsel %vm191, %v413, 0.0
    %v422 = vsel %vm191, %v414, 0.0
    %v423 = vsel %vm191, %v415, 0.0
    %424 = vrot.lane.b32.xlu0 %v129, 64
    %v425 = vpop.permute.xlu0 %424
    %426 = vrot.lane.b32.xlu0 %v130, 64
    %v427 = vpop.permute.xlu0 %426
    %428 = vrot.lane.b32.xlu0 %v131, 64
    %v429 = vpop.permute.xlu0 %428
    %430 = vrot.lane.b32.xlu0 %v132, 64
    %v431 = vpop.permute.xlu0 %430
    %432 = vrot.lane.b32.xlu0 %v133, 64
    %v433 = vpop.permute.xlu0 %432
    %434 = vrot.lane.b32.xlu0 %v134, 64
    %v435 = vpop.permute.xlu0 %434
    %436 = vrot.lane.b32.xlu0 %v135, 64
    %v437 = vpop.permute.xlu0 %436
    %438 = vrot.lane.b32.xlu0 %v136, 64
    %v439 = vpop.permute.xlu0 %438
    %v448 = vsel %vm164, 0.0, %v425
    %v449 = vsel %vm164, 0.0, %v427
    %v450 = vsel %vm164, 0.0, %v429
    %v451 = vsel %vm164, 0.0, %v431
    %v452 = vsel %vm164, 0.0, %v433
    %v453 = vsel %vm164, 0.0, %v435
    %v454 = vsel %vm164, 0.0, %v437
    %v455 = vsel %vm164, 0.0, %v439
    %v456 = vsel %vm173, %v448, 0.0
    %v457 = vsel %vm173, %v449, 0.0
    %v458 = vsel %vm173, %v450, 0.0
    %v459 = vsel %vm173, %v451, 0.0
    %v460 = vsel %vm173, %v452, 0.0
    %v461 = vsel %vm173, %v453, 0.0
    %v462 = vsel %vm173, %v454, 0.0
    %v463 = vsel %vm173, %v455, 0.0
    %v464 = vsel %vm182, %v456, 0.0
    %v465 = vsel %vm182, %v457, 0.0
    %v466 = vsel %vm182, %v458, 0.0
    %v467 = vsel %vm182, %v459, 0.0
    %v468 = vsel %vm182, %v460, 0.0
    %v469 = vsel %vm182, %v461, 0.0
    %v470 = vsel %vm182, %v462, 0.0
    %v471 = vsel %vm182, %v463, 0.0
    %v472 = vsel %vm191, %v464, 0.0
    %v473 = vsel %vm191, %v465, 0.0
    %v474 = vsel %vm191, %v466, 0.0
    %v475 = vsel %vm191, %v467, 0.0
    %v476 = vsel %vm191, %v468, 0.0
    %v477 = vsel %vm191, %v469, 0.0
    %v478 = vsel %vm191, %v470, 0.0
    %v479 = vsel %vm191, %v471, 0.0
    %480 = vrot.lane.b32.xlu0 %v129, 80
    %v481 = vpop.permute.xlu0 %480
    %482 = vrot.lane.b32.xlu0 %v130, 80
    %v483 = vpop.permute.xlu0 %482
    %484 = vrot.lane.b32.xlu0 %v131, 80
    %v485 = vpop.permute.xlu0 %484
    %486 = vrot.lane.b32.xlu0 %v132, 80
    %v487 = vpop.permute.xlu0 %486
    %488 = vrot.lane.b32.xlu0 %v133, 80
    %v489 = vpop.permute.xlu0 %488
    %490 = vrot.lane.b32.xlu0 %v134, 80
    %v491 = vpop.permute.xlu0 %490
    %492 = vrot.lane.b32.xlu0 %v135, 80
    %v493 = vpop.permute.xlu0 %492
    %494 = vrot.lane.b32.xlu0 %v136, 80
    %v495 = vpop.permute.xlu0 %494
    %v504 = vsel %vm173, 0.0, %v481
    %v505 = vsel %vm173, 0.0, %v483
    %v506 = vsel %vm173, 0.0, %v485
    %v507 = vsel %vm173, 0.0, %v487
    %v508 = vsel %vm173, 0.0, %v489
    %v509 = vsel %vm173, 0.0, %v491
    %v510 = vsel %vm173, 0.0, %v493
    %v511 = vsel %vm173, 0.0, %v495
    %v512 = vsel %vm182, %v504, 0.0
    %v513 = vsel %vm182, %v505, 0.0
    %v514 = vsel %vm182, %v506, 0.0
    %v515 = vsel %vm182, %v507, 0.0
    %v516 = vsel %vm182, %v508, 0.0
    %v517 = vsel %vm182, %v509, 0.0
    %v518 = vsel %vm182, %v510, 0.0
    %v519 = vsel %vm182, %v511, 0.0
    %v520 = vsel %vm191, %v512, 0.0
    %v521 = vsel %vm191, %v513, 0.0
    %v522 = vsel %vm191, %v514, 0.0
    %v523 = vsel %vm191, %v515, 0.0
    %v524 = vsel %vm191, %v516, 0.0
    %v525 = vsel %vm191, %v517, 0.0
    %v526 = vsel %vm191, %v518, 0.0
    %v527 = vsel %vm191, %v519, 0.0
    %528 = vrot.lane.b32.xlu0 %v129, 96
    %v529 = vpop.permute.xlu0 %528
    %530 = vrot.lane.b32.xlu0 %v130, 96
    %v531 = vpop.permute.xlu0 %530
    %532 = vrot.lane.b32.xlu0 %v131, 96
    %v533 = vpop.permute.xlu0 %532
    %534 = vrot.lane.b32.xlu0 %v132, 96
    %v535 = vpop.permute.xlu0 %534
    %536 = vrot.lane.b32.xlu0 %v133, 96
    %v537 = vpop.permute.xlu0 %536
    %538 = vrot.lane.b32.xlu0 %v134, 96
    %v539 = vpop.permute.xlu0 %538
    %540 = vrot.lane.b32.xlu0 %v135, 96
    %v541 = vpop.permute.xlu0 %540
    %542 = vrot.lane.b32.xlu0 %v136, 96
    %v543 = vpop.permute.xlu0 %542
    %v552 = vsel %vm182, 0.0, %v529
    %v553 = vsel %vm182, 0.0, %v531
    %v554 = vsel %vm182, 0.0, %v533
    %v555 = vsel %vm182, 0.0, %v535
    %v556 = vsel %vm182, 0.0, %v537
    %v557 = vsel %vm182, 0.0, %v539
    %v558 = vsel %vm182, 0.0, %v541
    %v559 = vsel %vm182, 0.0, %v543
    %v560 = vsel %vm191, %v552, 0.0
    %v561 = vsel %vm191, %v553, 0.0
    %v562 = vsel %vm191, %v554, 0.0
    %v563 = vsel %vm191, %v555, 0.0
    %v564 = vsel %vm191, %v556, 0.0
    %v565 = vsel %vm191, %v557, 0.0
    %v566 = vsel %vm191, %v558, 0.0
    %v567 = vsel %vm191, %v559, 0.0
    %568 = vrot.lane.b32.xlu0 %v129, 112
    %v569 = vpop.permute.xlu0 %568
    %570 = vrot.lane.b32.xlu0 %v130, 112
    %v571 = vpop.permute.xlu0 %570
    %572 = vrot.lane.b32.xlu0 %v131, 112
    %v573 = vpop.permute.xlu0 %572
    %574 = vrot.lane.b32.xlu0 %v132, 112
    %v575 = vpop.permute.xlu0 %574
    %576 = vrot.lane.b32.xlu0 %v133, 112
    %v577 = vpop.permute.xlu0 %576
    %578 = vrot.lane.b32.xlu0 %v134, 112
    %v579 = vpop.permute.xlu0 %578
    %580 = vrot.lane.b32.xlu0 %v135, 112
    %v581 = vpop.permute.xlu0 %580
    %582 = vrot.lane.b32.xlu0 %v136, 112
    %v583 = vpop.permute.xlu0 %582
    %v592 = vsel %vm191, 0.0, %v569
    %v593 = vsel %vm191, 0.0, %v571
    %v594 = vsel %vm191, 0.0, %v573
    %v595 = vsel %vm191, 0.0, %v575
    %v596 = vsel %vm191, 0.0, %v577
    %v597 = vsel %vm191, 0.0, %v579
    %v598 = vsel %vm191, 0.0, %v581
    %v599 = vsel %vm191, 0.0, %v583
    %v601 = vsel %vm137, 0.0, 0
    %v603 = vsel %vm137, %v129, 0
    %v605 = vsel %vm137, %v130, 0
    %v607 = vsel %vm137, %v131, 0
    %v609 = vsel %vm137, %v132, 0
    %v611 = vsel %vm137, %v133, 0
    %v613 = vsel %vm137, %v134, 0
    %v615 = vsel %vm137, %v135, 0
    %v617 = vsel %vm137, %v136, 0
    %619 = vmatprep.subr.mxu0 0.0
    %620 = vmatpush1.msra.mxu0 %v38
    %621 = vmatprep.subr.mxu0 0.0
    %622 = vmatpush1.msra.mxu0 %v37
    %623 = vmatprep.subr.mxu0 0.0
    %624 = vmatpush1.msra.mxu0 %v36
    %625 = vmatprep.subr.mxu0 0.0
    %626 = vmatpush1.msra.mxu0 %v35
    %627 = vmatprep.subr.mxu0 0.0
    %628 = vmatpush1.msra.mxu0 %v34
    %629 = vmatprep.subr.mxu0 0.0
    %630 = vmatpush1.msra.mxu0 %v33
    %631 = vmatprep.subr.mxu0 0.0
    %632 = vmatpush1.msra.mxu0 %v32
    %633 = vmatprep.subr.mxu0 0.0
    %634 = vmatpush1.msra.mxu0 %v31
    %635 = vmatprep.subr.mxu0 0.0
    %636 = vmatpush1.msra.mxu0 %v30
    %637 = vmatprep.subr.mxu0 0.0
    %638 = vmatpush1.msra.mxu0 %v29
    %639 = vmatprep.subr.mxu0 0.0
    %640 = vmatpush1.msra.mxu0 %v28
    %641 = vmatprep.subr.mxu0 0.0
    %642 = vmatpush1.msra.mxu0 %v27
    %643 = vmatprep.subr.mxu0 0.0
    %644 = vmatpush1.msra.mxu0 %v26
    %645 = vmatprep.subr.mxu0 0.0
    %646 = vmatpush1.msra.mxu0 %v25
    %647 = vmatprep.subr.mxu0 0.0
    %648 = vmatpush1.msra.mxu0 %v24
    %649 = vmatprep.subr.mxu0 0.0
    %650 = vmatpush1.msra.mxu0 %v23
    %651 = vmatprep.subr.mxu0 0.0
    %652 = vmatpush2.msra.mxu0 0.0
    %653 = vmatprep.subr.mxu0 0.0
    %654 = vmatpush2.msra.mxu0 0.0
    %655 = vmatprep.subr.mxu0 0.0
    %656 = vmatpush2.msra.mxu0 0.0
    %657 = vmatprep.subr.mxu0 0.0
    %658 = vmatpush2.msra.mxu0 0.0
    %659 = vmatprep.subr.mxu0 0.0
    %660 = vmatpush2.msra.mxu0 0.0
    %661 = vmatprep.subr.mxu0 0.0
    %662 = vmatpush2.msra.mxu0 0.0
    %663 = vmatprep.subr.mxu0 0.0
    %664 = vmatpush2.msra.mxu0 0.0
    %665 = vmatprep.subr.mxu0 0.0
    %666 = vmatpush2.msra.mxu0 0.0
    %667 = vmatprep.subr.mxu0 0.0
    %668 = vmatpush2.msra.mxu0 0.0
    %669 = vmatprep.subr.mxu0 0.0
    %670 = vmatpush2.msra.mxu0 0.0
    %671 = vmatprep.subr.mxu0 0.0
    %672 = vmatpush2.msra.mxu0 0.0
    %673 = vmatprep.subr.mxu0 0.0
    %674 = vmatpush2.msra.mxu0 0.0
    %675 = vmatprep.subr.mxu0 0.0
    %676 = vmatpush2.msra.mxu0 0.0
    %677 = vmatprep.subr.mxu0 0.0
    %678 = vmatpush2.msra.mxu0 0.0
    %679 = vmatprep.subr.mxu0 0.0
    %680 = vmatpush2.msra.mxu0 %v40
    %681 = vmatprep.subr.mxu0 0.0
    %682 = vmatpush2.msra.mxu0 %v39
    %683 = vmatprep.mubr.f32.mxu0 %v601
    %684 = vmatmul.mubr.f32.gmra.mxu0 %v192
    %v685 = vpop.f32.mrf.mxu0
    %v686 = vadd.f32 0.0, %v685
    %v687 = vpop.f32.mrf.mxu0
    %688 = vmatprep.mubr.f32.mxu0 %v601
    %689 = vmatmul.mubr.f32.gmra.mxu0 %v193
    %v690 = vpop.f32.mrf.mxu0
    %v691 = vadd.f32 0.0, %v690
    %v692 = vpop.f32.mrf.mxu0
    %693 = vmatprep.mubr.f32.mxu0 %v601
    %694 = vmatmul.mubr.f32.gmra.mxu0 %v194
    %v695 = vpop.f32.mrf.mxu0
    %v696 = vadd.f32 0.0, %v695
    %v697 = vpop.f32.mrf.mxu0
    %698 = vmatprep.mubr.f32.mxu0 %v601
    %699 = vmatmul.mubr.f32.gmra.mxu0 %v195
    %v700 = vpop.f32.mrf.mxu0
    %v701 = vadd.f32 0.0, %v700
    %v702 = vpop.f32.mrf.mxu0
    %703 = vmatprep.mubr.f32.mxu0 %v601
    %704 = vmatmul.mubr.f32.gmra.mxu0 %v196
    %v705 = vpop.f32.mrf.mxu0
    %v706 = vadd.f32 0.0, %v705
    %v707 = vpop.f32.mrf.mxu0
    %708 = vmatprep.mubr.f32.mxu0 %v601
    %709 = vmatmul.mubr.f32.gmra.mxu0 %v197
    %v710 = vpop.f32.mrf.mxu0
    %v711 = vadd.f32 0.0, %v710
    %v712 = vpop.f32.mrf.mxu0
    %713 = vmatprep.mubr.f32.mxu0 %v601
    %714 = vmatmul.mubr.f32.gmra.mxu0 %v198
    %v715 = vpop.f32.mrf.mxu0
    %v716 = vadd.f32 0.0, %v715
    %v717 = vpop.f32.mrf.mxu0
    %718 = vmatprep.mubr.f32.mxu0 %v601
    %719 = vmatmul.mubr.f32.gmra.mxu0 %v199
    %v720 = vpop.f32.mrf.mxu0
    %v721 = vadd.f32 0.0, %v720
    %v722 = vpop.f32.mrf.mxu0
    %723 = vmatprep.mubr.f32.mxu0 %v601
    %724 = vmatmul.mubr.f32.gmra.mxu0 %v280
    %v725 = vpop.f32.mrf.mxu0
    %v726 = vadd.f32 0.0, %v725
    %v727 = vpop.f32.mrf.mxu0
    %728 = vmatprep.mubr.f32.mxu0 %v601
    %729 = vmatmul.mubr.f32.gmra.mxu0 %v281
    %v730 = vpop.f32.mrf.mxu0
    %v731 = vadd.f32 0.0, %v730
    %v732 = vpop.f32.mrf.mxu0
    %733 = vmatprep.mubr.f32.mxu0 %v601
    %734 = vmatmul.mubr.f32.gmra.mxu0 %v282
    %v735 = vpop.f32.mrf.mxu0
    %v736 = vadd.f32 0.0, %v735
    %v737 = vpop.f32.mrf.mxu0
    %738 = vmatprep.mubr.f32.mxu0 %v601
    %739 = vmatmul.mubr.f32.gmra.mxu0 %v283
    %v740 = vpop.f32.mrf.mxu0
    %v741 = vadd.f32 0.0, %v740
    %v742 = vpop.f32.mrf.mxu0
    %743 = vmatprep.mubr.f32.mxu0 %v601
    %744 = vmatmul.mubr.f32.gmra.mxu0 %v284
    %v745 = vpop.f32.mrf.mxu0
    %v746 = vadd.f32 0.0, %v745
    %v747 = vpop.f32.mrf.mxu0
    %748 = vmatprep.mubr.f32.mxu0 %v601
    %749 = vmatmul.mubr.f32.gmra.mxu0 %v285
    %v750 = vpop.f32.mrf.mxu0
    %v751 = vadd.f32 0.0, %v750
    %v752 = vpop.f32.mrf.mxu0
    %753 = vmatprep.mubr.f32.mxu0 %v601
    %754 = vmatmul.mubr.f32.gmra.mxu0 %v286
    %v755 = vpop.f32.mrf.mxu0
    %v756 = vadd.f32 0.0, %v755
    %v757 = vpop.f32.mrf.mxu0
    %758 = vmatprep.mubr.f32.mxu0 %v601
    %759 = vmatmul.mubr.f32.gmra.mxu0 %v287
    %v760 = vpop.f32.mrf.mxu0
    %v761 = vadd.f32 0.0, %v760
    %v762 = vpop.f32.mrf.mxu0
    %763 = vmatprep.mubr.f32.mxu0 %v601
    %764 = vmatmul.mubr.f32.gmra.mxu0 %v352
    %v765 = vpop.f32.mrf.mxu0
    %v766 = vadd.f32 0.0, %v765
    %v767 = vpop.f32.mrf.mxu0
    %768 = vmatprep.mubr.f32.mxu0 %v601
    %769 = vmatmul.mubr.f32.gmra.mxu0 %v353
    %v770 = vpop.f32.mrf.mxu0
    %v771 = vadd.f32 0.0, %v770
    %v772 = vpop.f32.mrf.mxu0
    %773 = vmatprep.mubr.f32.mxu0 %v601
    %774 = vmatmul.mubr.f32.gmra.mxu0 %v354
    %v775 = vpop.f32.mrf.mxu0
    %v776 = vadd.f32 0.0, %v775
    %v777 = vpop.f32.mrf.mxu0
    %778 = vmatprep.mubr.f32.mxu0 %v601
    %779 = vmatmul.mubr.f32.gmra.mxu0 %v355
    %v780 = vpop.f32.mrf.mxu0
    %v781 = vadd.f32 0.0, %v780
    %v782 = vpop.f32.mrf.mxu0
    %783 = vmatprep.mubr.f32.mxu0 %v601
    %784 = vmatmul.mubr.f32.gmra.mxu0 %v356
    %v785 = vpop.f32.mrf.mxu0
    %v786 = vadd.f32 0.0, %v785
    %v787 = vpop.f32.mrf.mxu0
    %788 = vmatprep.mubr.f32.mxu0 %v601
    %789 = vmatmul.mubr.f32.gmra.mxu0 %v357
    %v790 = vpop.f32.mrf.mxu0
    %v791 = vadd.f32 0.0, %v790
    %v792 = vpop.f32.mrf.mxu0
    %793 = vmatprep.mubr.f32.mxu0 %v601
    %794 = vmatmul.mubr.f32.gmra.mxu0 %v358
    %v795 = vpop.f32.mrf.mxu0
    %v796 = vadd.f32 0.0, %v795
    %v797 = vpop.f32.mrf.mxu0
    %798 = vmatprep.mubr.f32.mxu0 %v601
    %799 = vmatmul.mubr.f32.gmra.mxu0 %v359
    %v800 = vpop.f32.mrf.mxu0
    %v801 = vadd.f32 0.0, %v800
    %v802 = vpop.f32.mrf.mxu0
    %803 = vmatprep.mubr.f32.mxu0 %v601
    %804 = vmatmul.mubr.f32.gmra.mxu0 %v416
    %v805 = vpop.f32.mrf.mxu0
    %v806 = vadd.f32 0.0, %v805
    %v807 = vpop.f32.mrf.mxu0
    %808 = vmatprep.mubr.f32.mxu0 %v601
    %809 = vmatmul.mubr.f32.gmra.mxu0 %v417
    %v810 = vpop.f32.mrf.mxu0
    %v811 = vadd.f32 0.0, %v810
    %v812 = vpop.f32.mrf.mxu0
    %813 = vmatprep.mubr.f32.mxu0 %v601
    %814 = vmatmul.mubr.f32.gmra.mxu0 %v418
    %v815 = vpop.f32.mrf.mxu0
    %v816 = vadd.f32 0.0, %v815
    %v817 = vpop.f32.mrf.mxu0
    %818 = vmatprep.mubr.f32.mxu0 %v601
    %819 = vmatmul.mubr.f32.gmra.mxu0 %v419
    %v820 = vpop.f32.mrf.mxu0
    %v821 = vadd.f32 0.0, %v820
    %v822 = vpop.f32.mrf.mxu0
    %823 = vmatprep.mubr.f32.mxu0 %v601
    %824 = vmatmul.mubr.f32.gmra.mxu0 %v420
    %v825 = vpop.f32.mrf.mxu0
    %v826 = vadd.f32 0.0, %v825
    %v827 = vpop.f32.mrf.mxu0
    %828 = vmatprep.mubr.f32.mxu0 %v601
    %829 = vmatmul.mubr.f32.gmra.mxu0 %v421
    %v830 = vpop.f32.mrf.mxu0
    %v831 = vadd.f32 0.0, %v830
    %v832 = vpop.f32.mrf.mxu0
    %833 = vmatprep.mubr.f32.mxu0 %v601
    %834 = vmatmul.mubr.f32.gmra.mxu0 %v422
    %v835 = vpop.f32.mrf.mxu0
    %v836 = vadd.f32 0.0, %v835
    %v837 = vpop.f32.mrf.mxu0
    %838 = vmatprep.mubr.f32.mxu0 %v601
    %839 = vmatmul.mubr.f32.gmra.mxu0 %v423
    %v840 = vpop.f32.mrf.mxu0
    %v841 = vadd.f32 0.0, %v840
    %v842 = vpop.f32.mrf.mxu0
    %843 = vmatprep.mubr.f32.mxu0 %v601
    %844 = vmatmul.mubr.f32.gmra.mxu0 %v472
    %v845 = vpop.f32.mrf.mxu0
    %v846 = vadd.f32 0.0, %v845
    %v847 = vpop.f32.mrf.mxu0
    %848 = vmatprep.mubr.f32.mxu0 %v601
    %849 = vmatmul.mubr.f32.gmra.mxu0 %v473
    %v850 = vpop.f32.mrf.mxu0
    %v851 = vadd.f32 0.0, %v850
    %v852 = vpop.f32.mrf.mxu0
    %853 = vmatprep.mubr.f32.mxu0 %v601
    %854 = vmatmul.mubr.f32.gmra.mxu0 %v474
    %v855 = vpop.f32.mrf.mxu0
    %v856 = vadd.f32 0.0, %v855
    %v857 = vpop.f32.mrf.mxu0
    %858 = vmatprep.mubr.f32.mxu0 %v601
    %859 = vmatmul.mubr.f32.gmra.mxu0 %v475
    %v860 = vpop.f32.mrf.mxu0
    %v861 = vadd.f32 0.0, %v860
    %v862 = vpop.f32.mrf.mxu0
    %863 = vmatprep.mubr.f32.mxu0 %v601
    %864 = vmatmul.mubr.f32.gmra.mxu0 %v476
    %v865 = vpop.f32.mrf.mxu0
    %v866 = vadd.f32 0.0, %v865
    %v867 = vpop.f32.mrf.mxu0
    %868 = vmatprep.mubr.f32.mxu0 %v601
    %869 = vmatmul.mubr.f32.gmra.mxu0 %v477
    %v870 = vpop.f32.mrf.mxu0
    %v871 = vadd.f32 0.0, %v870
    %v872 = vpop.f32.mrf.mxu0
    %873 = vmatprep.mubr.f32.mxu0 %v601
    %874 = vmatmul.mubr.f32.gmra.mxu0 %v478
    %v875 = vpop.f32.mrf.mxu0
    %v876 = vadd.f32 0.0, %v875
    %v877 = vpop.f32.mrf.mxu0
    %878 = vmatprep.mubr.f32.mxu0 %v601
    %879 = vmatmul.mubr.f32.gmra.mxu0 %v479
    %v880 = vpop.f32.mrf.mxu0
    %v881 = vadd.f32 0.0, %v880
    %v882 = vpop.f32.mrf.mxu0
    %883 = vmatprep.mubr.f32.mxu0 %v601
    %884 = vmatmul.mubr.f32.gmra.mxu0 %v520
    %v885 = vpop.f32.mrf.mxu0
    %v886 = vadd.f32 0.0, %v885
    %v887 = vpop.f32.mrf.mxu0
    %888 = vmatprep.mubr.f32.mxu0 %v601
    %889 = vmatmul.mubr.f32.gmra.mxu0 %v521
    %v890 = vpop.f32.mrf.mxu0
    %v891 = vadd.f32 0.0, %v890
    %v892 = vpop.f32.mrf.mxu0
    %893 = vmatprep.mubr.f32.mxu0 %v601
    %894 = vmatmul.mubr.f32.gmra.mxu0 %v522
    %v895 = vpop.f32.mrf.mxu0
    %v896 = vadd.f32 0.0, %v895
    %v897 = vpop.f32.mrf.mxu0
    %898 = vmatprep.mubr.f32.mxu0 %v601
    %899 = vmatmul.mubr.f32.gmra.mxu0 %v523
    %v900 = vpop.f32.mrf.mxu0
    %v901 = vadd.f32 0.0, %v900
    %v902 = vpop.f32.mrf.mxu0
    %903 = vmatprep.mubr.f32.mxu0 %v601
    %904 = vmatmul.mubr.f32.gmra.mxu0 %v524
    %v905 = vpop.f32.mrf.mxu0
    %v906 = vadd.f32 0.0, %v905
    %v907 = vpop.f32.mrf.mxu0
    %908 = vmatprep.mubr.f32.mxu0 %v601
    %909 = vmatmul.mubr.f32.gmra.mxu0 %v525
    %v910 = vpop.f32.mrf.mxu0
    %v911 = vadd.f32 0.0, %v910
    %v912 = vpop.f32.mrf.mxu0
    %913 = vmatprep.mubr.f32.mxu0 %v601
    %914 = vmatmul.mubr.f32.gmra.mxu0 %v526
    %v915 = vpop.f32.mrf.mxu0
    %v916 = vadd.f32 0.0, %v915
    %v917 = vpop.f32.mrf.mxu0
    %918 = vmatprep.mubr.f32.mxu0 %v601
    %919 = vmatmul.mubr.f32.gmra.mxu0 %v527
    %v920 = vpop.f32.mrf.mxu0
    %v921 = vadd.f32 0.0, %v920
    %v922 = vpop.f32.mrf.mxu0
    %923 = vmatprep.mubr.f32.mxu0 %v601
    %924 = vmatmul.mubr.f32.gmra.mxu0 %v560
    %v925 = vpop.f32.mrf.mxu0
    %v926 = vadd.f32 0.0, %v925
    %v927 = vpop.f32.mrf.mxu0
    %928 = vmatprep.mubr.f32.mxu0 %v601
    %929 = vmatmul.mubr.f32.gmra.mxu0 %v561
    %v930 = vpop.f32.mrf.mxu0
    %v931 = vadd.f32 0.0, %v930
    %v932 = vpop.f32.mrf.mxu0
    %933 = vmatprep.mubr.f32.mxu0 %v601
    %934 = vmatmul.mubr.f32.gmra.mxu0 %v562
    %v935 = vpop.f32.mrf.mxu0
    %v936 = vadd.f32 0.0, %v935
    %v937 = vpop.f32.mrf.mxu0
    %938 = vmatprep.mubr.f32.mxu0 %v601
    %939 = vmatmul.mubr.f32.gmra.mxu0 %v563
    %v940 = vpop.f32.mrf.mxu0
    %v941 = vadd.f32 0.0, %v940
    %v942 = vpop.f32.mrf.mxu0
    %943 = vmatprep.mubr.f32.mxu0 %v601
    %944 = vmatmul.mubr.f32.gmra.mxu0 %v564
    %v945 = vpop.f32.mrf.mxu0
    %v946 = vadd.f32 0.0, %v945
    %v947 = vpop.f32.mrf.mxu0
    %948 = vmatprep.mubr.f32.mxu0 %v601
    %949 = vmatmul.mubr.f32.gmra.mxu0 %v565
    %v950 = vpop.f32.mrf.mxu0
    %v951 = vadd.f32 0.0, %v950
    %v952 = vpop.f32.mrf.mxu0
    %953 = vmatprep.mubr.f32.mxu0 %v601
    %954 = vmatmul.mubr.f32.gmra.mxu0 %v566
    %v955 = vpop.f32.mrf.mxu0
    %v956 = vadd.f32 0.0, %v955
    %v957 = vpop.f32.mrf.mxu0
    %958 = vmatprep.mubr.f32.mxu0 %v601
    %959 = vmatmul.mubr.f32.gmra.mxu0 %v567
    %v960 = vpop.f32.mrf.mxu0
    %v961 = vadd.f32 0.0, %v960
    %v962 = vpop.f32.mrf.mxu0
    %963 = vmatprep.mubr.f32.mxu0 %v601
    %964 = vmatmul.mubr.f32.gmra.mxu0 %v592
    %v965 = vpop.f32.mrf.mxu0
    %v966 = vadd.f32 0.0, %v965
    %v967 = vpop.f32.mrf.mxu0
    %968 = vmatprep.mubr.f32.mxu0 %v601
    %969 = vmatmul.mubr.f32.gmra.mxu0 %v593
    %v970 = vpop.f32.mrf.mxu0
    %v971 = vadd.f32 0.0, %v970
    %v972 = vpop.f32.mrf.mxu0
    %973 = vmatprep.mubr.f32.mxu0 %v601
    %974 = vmatmul.mubr.f32.gmra.mxu0 %v594
    %v975 = vpop.f32.mrf.mxu0
    %v976 = vadd.f32 0.0, %v975
    %v977 = vpop.f32.mrf.mxu0
    %978 = vmatprep.mubr.f32.mxu0 %v601
    %979 = vmatmul.mubr.f32.gmra.mxu0 %v595
    %v980 = vpop.f32.mrf.mxu0
    %v981 = vadd.f32 0.0, %v980
    %v982 = vpop.f32.mrf.mxu0
    %983 = vmatprep.mubr.f32.mxu0 %v601
    %984 = vmatmul.mubr.f32.gmra.mxu0 %v596
    %v985 = vpop.f32.mrf.mxu0
    %v986 = vadd.f32 0.0, %v985
    %v987 = vpop.f32.mrf.mxu0
    %988 = vmatprep.mubr.f32.mxu0 %v601
    %989 = vmatmul.mubr.f32.gmra.mxu0 %v597
    %v990 = vpop.f32.mrf.mxu0
    %v991 = vadd.f32 0.0, %v990
    %v992 = vpop.f32.mrf.mxu0
    %993 = vmatprep.mubr.f32.mxu0 %v601
    %994 = vmatmul.mubr.f32.gmra.mxu0 %v598
    %v995 = vpop.f32.mrf.mxu0
    %v996 = vadd.f32 0.0, %v995
    %v997 = vpop.f32.mrf.mxu0
    %998 = vmatprep.mubr.f32.mxu0 %v601
    %999 = vmatmul.mubr.f32.gmra.mxu0 %v599
    %v1000 = vpop.f32.mrf.mxu0
    %v1001 = vadd.f32 0.0, %v1000
    %v1002 = vpop.f32.mrf.mxu0
    %1003 = vmatprep.mubr.f32.mxu0 %v603
    %1004 = vmatmul.mubr.f32.gmra.mxu0 0.0
    %v1005 = vpop.f32.mrf.mxu0
    %v1006 = vadd.f32 0.0, %v1005
    %v1007 = vpop.f32.mrf.mxu0
    %1008 = vmatprep.mubr.f32.mxu0 %v605
    %1009 = vmatmul.mubr.f32.gmra.mxu0 0.0
    %v1010 = vpop.f32.mrf.mxu0
    %v1011 = vadd.f32 0.0, %v1010
    %v1012 = vpop.f32.mrf.mxu0
    %1013 = vmatprep.mubr.f32.mxu0 %v607
    %1014 = vmatmul.mubr.f32.gmra.mxu0 0.0
    %v1015 = vpop.f32.mrf.mxu0
    %v1016 = vadd.f32 0.0, %v1015
    %v1017 = vpop.f32.mrf.mxu0
    %1018 = vmatprep.mubr.f32.mxu0 %v609
    %1019 = vmatmul.mubr.f32.gmra.mxu0 0.0
    %v1020 = vpop.f32.mrf.mxu0
    %v1021 = vadd.f32 0.0, %v1020
    %v1022 = vpop.f32.mrf.mxu0
    %1023 = vmatprep.mubr.f32.mxu0 %v611
    %1024 = vmatmul.mubr.f32.gmra.mxu0 0.0
    %v1025 = vpop.f32.mrf.mxu0
    %v1026 = vadd.f32 0.0, %v1025
    %v1027 = vpop.f32.mrf.mxu0
    %1028 = vmatprep.mubr.f32.mxu0 %v613
    %1029 = vmatmul.mubr.f32.gmra.mxu0 0.0
    %v1030 = vpop.f32.mrf.mxu0
    %v1031 = vadd.f32 0.0, %v1030
    %v1032 = vpop.f32.mrf.mxu0
    %1033 = vmatprep.mubr.f32.mxu0 %v615
    %1034 = vmatmul.mubr.f32.gmra.mxu0 0.0
    %v1035 = vpop.f32.mrf.mxu0
    %v1036 = vadd.f32 0.0, %v1035
    %v1037 = vpop.f32.mrf.mxu0
    %1038 = vmatprep.mubr.f32.mxu0 %v617
    %1039 = vmatmul.mubr.f32.gmra.mxu0 0.0
    %v1040 = vpop.f32.mrf.mxu0
    %v1041 = vadd.f32 0.0, %v1040
    %v1042 = vpop.f32.mrf.mxu0
    %1043 = vdwg.mxu0
    %v1044 = vld [vmem:[%s1] sm:$0xff]
    %v1045 = vld [vmem:[%s1 + $0x8] sm:$0xff]
    %v1046 = vld [vmem:[%s1 + $0x10] sm:$0xff]
    %v1047 = vld [vmem:[%s1 + $0x18] sm:$0xff]
    %v1048 = vld [vmem:[%s1 + $0x20] sm:$0xff]
    %v1049 = vld [vmem:[%s1 + $0x28] sm:$0xff]
    %v1050 = vld [vmem:[%s1 + $0x30] sm:$0xff]
    %v1051 = vld [vmem:[%s1 + $0x38] sm:$0xff]
    %v1052 = vld [vmem:[%s1 + $0x40] sm:$0xff]
    %v1053 = vld [vmem:[%s1 + $0x48] sm:$0xff]
    %v1054 = vld [vmem:[%s1 + $0x50] sm:$0xff]
    %v1055 = vld [vmem:[%s1 + $0x58] sm:$0xff]
    %v1056 = vld [vmem:[%s1 + $0x60] sm:$0xff]
    %v1057 = vld [vmem:[%s1 + $0x68] sm:$0xff]
    %v1058 = vld [vmem:[%s1 + $0x70] sm:$0xff]
    %v1059 = vld [vmem:[%s1 + $0x78] sm:$0xff]
    %v1060 = vld [vmem:[%s1 + $0x80] sm:$0xff]
    %v1061 = vld [vmem:[%s1 + $0x88] sm:$0xff]
    %v1062 = vld [vmem:[%s1 + $0x90] sm:$0xff]
    %v1063 = vld [vmem:[%s1 + $0x98] sm:$0xff]
    %v1064 = vld [vmem:[%s1 + $0xa0] sm:$0xff]
    %v1065 = vld [vmem:[%s1 + $0xa8] sm:$0xff]
    %v1066 = vld [vmem:[%s1 + $0xb0] sm:$0xff]
    %v1067 = vld [vmem:[%s1 + $0xb8] sm:$0xff]
    %v1068 = vld [vmem:[%s1 + $0xc0] sm:$0xff]
    %v1069 = vld [vmem:[%s1 + $0xc8] sm:$0xff]
    %v1070 = vld [vmem:[%s1 + $0xd0] sm:$0xff]
    %v1071 = vld [vmem:[%s1 + $0xd8] sm:$0xff]
    %v1072 = vld [vmem:[%s1 + $0xe0] sm:$0xff]
    %v1073 = vld [vmem:[%s1 + $0xe8] sm:$0xff]
    %v1074 = vld [vmem:[%s1 + $0xf0] sm:$0xff]
    %v1075 = vld [vmem:[%s1 + $0xf8] sm:$0xff]
    %v1076 = vld [vmem:[%s1 + $0x100] sm:$0xff]
    %v1077 = vld [vmem:[%s1 + $0x108] sm:$0xff]
    %v1078 = vld [vmem:[%s1 + $0x110] sm:$0xff]
    %v1079 = vld [vmem:[%s1 + $0x118] sm:$0xff]
    %v1080 = vld [vmem:[%s1 + $0x120] sm:$0xff]
    %v1081 = vld [vmem:[%s1 + $0x128] sm:$0xff]
    %v1082 = vld [vmem:[%s1 + $0x130] sm:$0xff]
    %v1083 = vld [vmem:[%s1 + $0x138] sm:$0xff]
    %v1085 = vsel %vm164, %v1048, 0
    %v1088 = vsel %vm164, %v1053, 0
    %v1091 = vsel %vm164, %v1058, 0
    %v1094 = vsel %vm164, %v1063, 0
    %v1097 = vsel %vm164, %v1068, 0
    %v1100 = vsel %vm164, %v1073, 0
    %v1103 = vsel %vm164, %v1078, 0
    %v1106 = vsel %vm164, %v1083, 0
    %1108 = vmatprep.subr.mxu0 0.0
    %1109 = vmatpush1.msra.mxu0 %v761
    %1110 = vmatprep.subr.mxu0 0.0
    %1111 = vmatpush1.msra.mxu0 %v756
    %1112 = vmatprep.subr.mxu0 0.0
    %1113 = vmatpush1.msra.mxu0 %v751
    %1114 = vmatprep.subr.mxu0 0.0
    %1115 = vmatpush1.msra.mxu0 %v746
    %1116 = vmatprep.subr.mxu0 0.0
    %1117 = vmatpush1.msra.mxu0 %v741
    %1118 = vmatprep.subr.mxu0 0.0
    %1119 = vmatpush1.msra.mxu0 %v736
    %1120 = vmatprep.subr.mxu0 0.0
    %1121 = vmatpush1.msra.mxu0 %v731
    %1122 = vmatprep.subr.mxu0 0.0
    %1123 = vmatpush1.msra.mxu0 %v726
    %1124 = vmatprep.subr.mxu0 0.0
    %1125 = vmatpush1.msra.mxu0 %v721
    %1126 = vmatprep.subr.mxu0 0.0
    %1127 = vmatpush1.msra.mxu0 %v716
    %1128 = vmatprep.subr.mxu0 0.0
    %1129 = vmatpush1.msra.mxu0 %v711
    %1130 = vmatprep.subr.mxu0 0.0
    %1131 = vmatpush1.msra.mxu0 %v706
    %1132 = vmatprep.subr.mxu0 0.0
    %1133 = vmatpush1.msra.mxu0 %v701
    %1134 = vmatprep.subr.mxu0 0.0
    %1135 = vmatpush1.msra.mxu0 %v696
    %1136 = vmatprep.subr.mxu0 0.0
    %1137 = vmatpush1.msra.mxu0 %v691
    %1138 = vmatprep.subr.mxu0 0.0
    %1139 = vmatpush1.msra.mxu0 %v686
    %1140 = vmatprep.subr.mxu0 0.0
    %1141 = vmatpush2.msra.mxu0 %v841
    %1142 = vmatprep.subr.mxu0 0.0
    %1143 = vmatpush2.msra.mxu0 %v836
    %1144 = vmatprep.subr.mxu0 0.0
    %1145 = vmatpush2.msra.mxu0 %v831
    %1146 = vmatprep.subr.mxu0 0.0
    %1147 = vmatpush2.msra.mxu0 %v826
    %1148 = vmatprep.subr.mxu0 0.0
    %1149 = vmatpush2.msra.mxu0 %v821
    %1150 = vmatprep.subr.mxu0 0.0
    %1151 = vmatpush2.msra.mxu0 %v816
    %1152 = vmatprep.subr.mxu0 0.0
    %1153 = vmatpush2.msra.mxu0 %v811
    %1154 = vmatprep.subr.mxu0 0.0
    %1155 = vmatpush2.msra.mxu0 %v806
    %1156 = vmatprep.subr.mxu0 0.0
    %1157 = vmatpush2.msra.mxu0 %v801
    %1158 = vmatprep.subr.mxu0 0.0
    %1159 = vmatpush2.msra.mxu0 %v796
    %1160 = vmatprep.subr.mxu0 0.0
    %1161 = vmatpush2.msra.mxu0 %v791
    %1162 = vmatprep.subr.mxu0 0.0
    %1163 = vmatpush2.msra.mxu0 %v786
    %1164 = vmatprep.subr.mxu0 0.0
    %1165 = vmatpush2.msra.mxu0 %v781
    %1166 = vmatprep.subr.mxu0 0.0
    %1167 = vmatpush2.msra.mxu0 %v776
    %1168 = vmatprep.subr.mxu0 0.0
    %1169 = vmatpush2.msra.mxu0 %v771
    %1170 = vmatprep.subr.mxu0 0.0
    %1171 = vmatpush2.msra.mxu0 %v766
    %1172 = vmatprep.mubr.f32.mxu0 %v1045
    %1173 = vmatmul.mubr.f32.gmra.mxu0 %v1044
    %v1174 = vpop.f32.mrf.mxu0
    %v1175 = vadd.f32 0.0, %v1174
    %v1176 = vpop.f32.mrf.mxu0
    %1177 = vmatprep.mubr.f32.mxu0 %v1050
    %1178 = vmatmul.mubr.f32.gmra.mxu0 %v1049
    %v1179 = vpop.f32.mrf.mxu0
    %v1180 = vadd.f32 0.0, %v1179
    %v1181 = vpop.f32.mrf.mxu0
    %1182 = vmatprep.mubr.f32.mxu0 %v1055
    %1183 = vmatmul.mubr.f32.gmra.mxu0 %v1054
    %v1184 = vpop.f32.mrf.mxu0
    %v1185 = vadd.f32 0.0, %v1184
    %v1186 = vpop.f32.mrf.mxu0
    %1187 = vmatprep.mubr.f32.mxu0 %v1060
    %1188 = vmatmul.mubr.f32.gmra.mxu0 %v1059
    %v1189 = vpop.f32.mrf.mxu0
    %v1190 = vadd.f32 0.0, %v1189
    %v1191 = vpop.f32.mrf.mxu0
    %1192 = vmatprep.mubr.f32.mxu0 %v1065
    %1193 = vmatmul.mubr.f32.gmra.mxu0 %v1064
    %v1194 = vpop.f32.mrf.mxu0
    %v1195 = vadd.f32 0.0, %v1194
    %v1196 = vpop.f32.mrf.mxu0
    %1197 = vmatprep.mubr.f32.mxu0 %v1070
    %1198 = vmatmul.mubr.f32.gmra.mxu0 %v1069
    %v1199 = vpop.f32.mrf.mxu0
    %v1200 = vadd.f32 0.0, %v1199
    %v1201 = vpop.f32.mrf.mxu0
    %1202 = vmatprep.mubr.f32.mxu0 %v1075
    %1203 = vmatmul.mubr.f32.gmra.mxu0 %v1074
    %v1204 = vpop.f32.mrf.mxu0
    %v1205 = vadd.f32 0.0, %v1204
    %v1206 = vpop.f32.mrf.mxu0
    %1207 = vmatprep.mubr.f32.mxu0 %v1080
    %1208 = vmatmul.mubr.f32.gmra.mxu0 %v1079
    %v1209 = vpop.f32.mrf.mxu0
    %v1210 = vadd.f32 0.0, %v1209
    %v1211 = vpop.f32.mrf.mxu0
    %1212 = vdwg.mxu0
    %1213 = vmatprep.subr.mxu0 0.0
    %1214 = vmatpush1.msra.mxu0 %v921
    %1215 = vmatprep.subr.mxu0 0.0
    %1216 = vmatpush1.msra.mxu0 %v916
    %1217 = vmatprep.subr.mxu0 0.0
    %1218 = vmatpush1.msra.mxu0 %v911
    %1219 = vmatprep.subr.mxu0 0.0
    %1220 = vmatpush1.msra.mxu0 %v906
    %1221 = vmatprep.subr.mxu0 0.0
    %1222 = vmatpush1.msra.mxu0 %v901
    %1223 = vmatprep.subr.mxu0 0.0
    %1224 = vmatpush1.msra.mxu0 %v896
    %1225 = vmatprep.subr.mxu0 0.0
    %1226 = vmatpush1.msra.mxu0 %v891
    %1227 = vmatprep.subr.mxu0 0.0
    %1228 = vmatpush1.msra.mxu0 %v886
    %1229 = vmatprep.subr.mxu0 0.0
    %1230 = vmatpush1.msra.mxu0 %v881
    %1231 = vmatprep.subr.mxu0 0.0
    %1232 = vmatpush1.msra.mxu0 %v876
    %1233 = vmatprep.subr.mxu0 0.0
    %1234 = vmatpush1.msra.mxu0 %v871
    %1235 = vmatprep.subr.mxu0 0.0
    %1236 = vmatpush1.msra.mxu0 %v866
    %1237 = vmatprep.subr.mxu0 0.0
    %1238 = vmatpush1.msra.mxu0 %v861
    %1239 = vmatprep.subr.mxu0 0.0
    %1240 = vmatpush1.msra.mxu0 %v856
    %1241 = vmatprep.subr.mxu0 0.0
    %1242 = vmatpush1.msra.mxu0 %v851
    %1243 = vmatprep.subr.mxu0 0.0
    %1244 = vmatpush1.msra.mxu0 %v846
    %1245 = vmatprep.subr.mxu0 0.0
    %1246 = vmatpush2.msra.mxu0 %v1001
    %1247 = vmatprep.subr.mxu0 0.0
    %1248 = vmatpush2.msra.mxu0 %v996
    %1249 = vmatprep.subr.mxu0 0.0
    %1250 = vmatpush2.msra.mxu0 %v991
    %1251 = vmatprep.subr.mxu0 0.0
    %1252 = vmatpush2.msra.mxu0 %v986
    %1253 = vmatprep.subr.mxu0 0.0
    %1254 = vmatpush2.msra.mxu0 %v981
    %1255 = vmatprep.subr.mxu0 0.0
    %1256 = vmatpush2.msra.mxu0 %v976
    %1257 = vmatprep.subr.mxu0 0.0
    %1258 = vmatpush2.msra.mxu0 %v971
    %1259 = vmatprep.subr.mxu0 0.0
    %1260 = vmatpush2.msra.mxu0 %v966
    %1261 = vmatprep.subr.mxu0 0.0
    %1262 = vmatpush2.msra.mxu0 %v961
    %1263 = vmatprep.subr.mxu0 0.0
    %1264 = vmatpush2.msra.mxu0 %v956
    %1265 = vmatprep.subr.mxu0 0.0
    %1266 = vmatpush2.msra.mxu0 %v951
    %1267 = vmatprep.subr.mxu0 0.0
    %1268 = vmatpush2.msra.mxu0 %v946
    %1269 = vmatprep.subr.mxu0 0.0
    %1270 = vmatpush2.msra.mxu0 %v941
    %1271 = vmatprep.subr.mxu0 0.0
    %1272 = vmatpush2.msra.mxu0 %v936
    %1273 = vmatprep.subr.mxu0 0.0
    %1274 = vmatpush2.msra.mxu0 %v931
    %1275 = vmatprep.subr.mxu0 0.0
    %1276 = vmatpush2.msra.mxu0 %v926
    %1277 = vmatprep.mubr.f32.mxu0 %v1047
    %1278 = vmatmul.mubr.f32.gmra.mxu0 %v1046
    %v1279 = vpop.f32.mrf.mxu0
    %v1280 = vadd.f32 %v1175, %v1279
    %v1281 = vpop.f32.mrf.mxu0
    %1282 = vmatprep.mubr.f32.mxu0 %v1052
    %1283 = vmatmul.mubr.f32.gmra.mxu0 %v1051
    %v1284 = vpop.f32.mrf.mxu0
    %v1285 = vadd.f32 %v1180, %v1284
    %v1286 = vpop.f32.mrf.mxu0
    %1287 = vmatprep.mubr.f32.mxu0 %v1057
    %1288 = vmatmul.mubr.f32.gmra.mxu0 %v1056
    %v1289 = vpop.f32.mrf.mxu0
    %v1290 = vadd.f32 %v1185, %v1289
    %v1291 = vpop.f32.mrf.mxu0
    %1292 = vmatprep.mubr.f32.mxu0 %v1062
    %1293 = vmatmul.mubr.f32.gmra.mxu0 %v1061
    %v1294 = vpop.f32.mrf.mxu0
    %v1295 = vadd.f32 %v1190, %v1294
    %v1296 = vpop.f32.mrf.mxu0
    %1297 = vmatprep.mubr.f32.mxu0 %v1067
    %1298 = vmatmul.mubr.f32.gmra.mxu0 %v1066
    %v1299 = vpop.f32.mrf.mxu0
    %v1300 = vadd.f32 %v1195, %v1299
    %v1301 = vpop.f32.mrf.mxu0
    %1302 = vmatprep.mubr.f32.mxu0 %v1072
    %1303 = vmatmul.mubr.f32.gmra.mxu0 %v1071
    %v1304 = vpop.f32.mrf.mxu0
    %v1305 = vadd.f32 %v1200, %v1304
    %v1306 = vpop.f32.mrf.mxu0
    %1307 = vmatprep.mubr.f32.mxu0 %v1077
    %1308 = vmatmul.mubr.f32.gmra.mxu0 %v1076
    %v1309 = vpop.f32.mrf.mxu0
    %v1310 = vadd.f32 %v1205, %v1309
    %v1311 = vpop.f32.mrf.mxu0
    %1312 = vmatprep.mubr.f32.mxu0 %v1082
    %1313 = vmatmul.mubr.f32.gmra.mxu0 %v1081
    %v1314 = vpop.f32.mrf.mxu0
    %v1315 = vadd.f32 %v1210, %v1314
    %v1316 = vpop.f32.mrf.mxu0
    %1317 = vdwg.mxu0
    %1318 = vmatprep.subr.mxu0 0.0
    %1319 = vmatpush1.msra.mxu0 0.0
    %1320 = vmatprep.subr.mxu0 0.0
    %1321 = vmatpush1.msra.mxu0 0.0
    %1322 = vmatprep.subr.mxu0 0.0
    %1323 = vmatpush1.msra.mxu0 0.0
    %1324 = vmatprep.subr.mxu0 0.0
    %1325 = vmatpush1.msra.mxu0 0.0
    %1326 = vmatprep.subr.mxu0 0.0
    %1327 = vmatpush1.msra.mxu0 0.0
    %1328 = vmatprep.subr.mxu0 0.0
    %1329 = vmatpush1.msra.mxu0 0.0
    %1330 = vmatprep.subr.mxu0 0.0
    %1331 = vmatpush1.msra.mxu0 0.0
    %1332 = vmatprep.subr.mxu0 0.0
    %1333 = vmatpush1.msra.mxu0 0.0
    %1334 = vmatprep.subr.mxu0 0.0
    %1335 = vmatpush1.msra.mxu0 %v1041
    %1336 = vmatprep.subr.mxu0 0.0
    %1337 = vmatpush1.msra.mxu0 %v1036
    %1338 = vmatprep.subr.mxu0 0.0
    %1339 = vmatpush1.msra.mxu0 %v1031
    %1340 = vmatprep.subr.mxu0 0.0
    %1341 = vmatpush1.msra.mxu0 %v1026
    %1342 = vmatprep.subr.mxu0 0.0
    %1343 = vmatpush1.msra.mxu0 %v1021
    %1344 = vmatprep.subr.mxu0 0.0
    %1345 = vmatpush1.msra.mxu0 %v1016
    %1346 = vmatprep.subr.mxu0 0.0
    %1347 = vmatpush1.msra.mxu0 %v1011
    %1348 = vmatprep.subr.mxu0 0.0
    %1349 = vmatpush1.msra.mxu0 %v1006
    %1350 = vmatprep.subr.mxu0 0.0
    %1351 = vmatpush2.msra.mxu0 0.0
    %1352 = vmatprep.subr.mxu0 0.0
    %1353 = vmatpush2.msra.mxu0 0.0
    %1354 = vmatprep.subr.mxu0 0.0
    %1355 = vmatpush2.msra.mxu0 0.0
    %1356 = vmatprep.subr.mxu0 0.0
    %1357 = vmatpush2.msra.mxu0 0.0
    %1358 = vmatprep.subr.mxu0 0.0
    %1359 = vmatpush2.msra.mxu0 0.0
    %1360 = vmatprep.subr.mxu0 0.0
    %1361 = vmatpush2.msra.mxu0 0.0
    %1362 = vmatprep.subr.mxu0 0.0
    %1363 = vmatpush2.msra.mxu0 0.0
    %1364 = vmatprep.subr.mxu0 0.0
    %1365 = vmatpush2.msra.mxu0 0.0
    %1366 = vmatprep.subr.mxu0 0.0
    %1367 = vmatpush2.msra.mxu0 0.0
    %1368 = vmatprep.subr.mxu0 0.0
    %1369 = vmatpush2.msra.mxu0 0.0
    %1370 = vmatprep.subr.mxu0 0.0
    %1371 = vmatpush2.msra.mxu0 0.0
    %1372 = vmatprep.subr.mxu0 0.0
    %1373 = vmatpush2.msra.mxu0 0.0
    %1374 = vmatprep.subr.mxu0 0.0
    %1375 = vmatpush2.msra.mxu0 0.0
    %1376 = vmatprep.subr.mxu0 0.0
    %1377 = vmatpush2.msra.mxu0 0.0
    %1378 = vmatprep.subr.mxu0 0.0
    %1379 = vmatpush2.msra.mxu0 0.0
    %1380 = vmatprep.subr.mxu0 0.0
    %1381 = vmatpush2.msra.mxu0 0.0
    %1382 = vmatprep.mubr.f32.mxu0 0.0
    %1383 = vmatmul.mubr.f32.gmra.mxu0 %v1085
    %v1384 = vpop.f32.mrf.mxu0
    %v1385 = vadd.f32 %v1280, %v1384
    %v1386 = vpop.f32.mrf.mxu0
    %1387 = vmatprep.mubr.f32.mxu0 0.0
    %1388 = vmatmul.mubr.f32.gmra.mxu0 %v1088
    %v1389 = vpop.f32.mrf.mxu0
    %v1390 = vadd.f32 %v1285, %v1389
    %v1391 = vpop.f32.mrf.mxu0
    %1392 = vmatprep.mubr.f32.mxu0 0.0
    %1393 = vmatmul.mubr.f32.gmra.mxu0 %v1091
    %v1394 = vpop.f32.mrf.mxu0
    %v1395 = vadd.f32 %v1290, %v1394
    %v1396 = vpop.f32.mrf.mxu0
    %1397 = vmatprep.mubr.f32.mxu0 0.0
    %1398 = vmatmul.mubr.f32.gmra.mxu0 %v1094
    %v1399 = vpop.f32.mrf.mxu0
    %v1400 = vadd.f32 %v1295, %v1399
    %v1401 = vpop.f32.mrf.mxu0
    %1402 = vmatprep.mubr.f32.mxu0 0.0
    %1403 = vmatmul.mubr.f32.gmra.mxu0 %v1097
    %v1404 = vpop.f32.mrf.mxu0
    %v1405 = vadd.f32 %v1300, %v1404
    %v1406 = vpop.f32.mrf.mxu0
    %1407 = vmatprep.mubr.f32.mxu0 0.0
    %1408 = vmatmul.mubr.f32.gmra.mxu0 %v1100
    %v1409 = vpop.f32.mrf.mxu0
    %v1410 = vadd.f32 %v1305, %v1409
    %v1411 = vpop.f32.mrf.mxu0
    %1412 = vmatprep.mubr.f32.mxu0 0.0
    %1413 = vmatmul.mubr.f32.gmra.mxu0 %v1103
    %v1414 = vpop.f32.mrf.mxu0
    %v1415 = vadd.f32 %v1310, %v1414
    %v1416 = vpop.f32.mrf.mxu0
    %1417 = vmatprep.mubr.f32.mxu0 0.0
    %1418 = vmatmul.mubr.f32.gmra.mxu0 %v1106
    %v1419 = vpop.f32.mrf.mxu0
    %v1420 = vadd.f32 %v1315, %v1419
    %v1421 = vpop.f32.mrf.mxu0
    %1422 = vdwg.mxu0
    %v1423 = vmul.f32 %v1385, %v92
    %v1424 = vmul.f32 %v1390, %v97
    %v1425 = vmul.f32 %v1395, %v102
    %v1426 = vmul.f32 %v1400, %v107
    %v1427 = vmul.f32 %v1405, %v112
    %v1428 = vmul.f32 %v1410, %v117
    %v1429 = vmul.f32 %v1415, %v122
    %v1430 = vmul.f32 %v1420, %v127
    %v1431 = vmul.f32 %v1423, %v1423
    %v1432 = vmul.f32 %v1424, %v1424
    %v1433 = vmul.f32 %v1425, %v1425
    %v1434 = vmul.f32 %v1426, %v1426
    %v1435 = vmul.f32 %v1427, %v1427
    %v1436 = vmul.f32 %v1428, %v1428
    %v1437 = vmul.f32 %v1429, %v1429
    %v1438 = vmul.f32 %v1430, %v1430
    %1447 = vrot.lane.b32.xlu0 %v1431, 16
    %v1448 = vpop.permute.xlu0 %1447
    %1449 = vrot.lane.b32.xlu0 %v1432, 16
    %v1450 = vpop.permute.xlu0 %1449
    %1451 = vrot.lane.b32.xlu0 %v1433, 16
    %v1452 = vpop.permute.xlu0 %1451
    %1453 = vrot.lane.b32.xlu0 %v1434, 16
    %v1454 = vpop.permute.xlu0 %1453
    %1455 = vrot.lane.b32.xlu0 %v1435, 16
    %v1456 = vpop.permute.xlu0 %1455
    %1457 = vrot.lane.b32.xlu0 %v1436, 16
    %v1458 = vpop.permute.xlu0 %1457
    %1459 = vrot.lane.b32.xlu0 %v1437, 16
    %v1460 = vpop.permute.xlu0 %1459
    %1461 = vrot.lane.b32.xlu0 %v1438, 16
    %v1462 = vpop.permute.xlu0 %1461
    %v1471 = vsel %vm137, %v1423, %v1448
    %v1472 = vsel %vm137, %v1424, %v1450
    %v1473 = vsel %vm137, %v1425, %v1452
    %v1474 = vsel %vm137, %v1426, %v1454
    %v1475 = vsel %vm137, %v1427, %v1456
    %v1476 = vsel %vm137, %v1428, %v1458
    %v1477 = vsel %vm137, %v1429, %v1460
    %v1478 = vsel %vm137, %v1430, %v1462
    %v1479 = vsel %vm146, %v1471, 0.0
    %v1480 = vsel %vm146, %v1472, 0.0
    %v1481 = vadd.f32 %v1479, %v1480
    %v1482 = vsel %vm146, %v1473, 0.0
    %v1483 = vadd.f32 %v1481, %v1482
    %v1484 = vsel %vm146, %v1474, 0.0
    %v1485 = vadd.f32 %v1483, %v1484
    %v1486 = vsel %vm146, %v1475, 0.0
    %v1487 = vadd.f32 %v1485, %v1486
    %v1488 = vsel %vm146, %v1476, 0.0
    %v1489 = vadd.f32 %v1487, %v1488
    %v1490 = vsel %vm146, %v1477, 0.0
    %v1491 = vadd.f32 %v1489, %v1490
    %v1492 = vsel %vm146, %v1478, 0.0
    %v1493 = vadd.f32 %v1491, %v1492
    %v1494 = vrot.slane %v1493, 4
    %v1495 = vadd.f32 %v1493, %v1494
    %v1496 = vrot.slane %v1495, 2
    %v1497 = vadd.f32 %v1495, %v1496
    %v1498 = vrot.slane %v1497, 1
    %v1499 = vadd.f32 %v1497, %v1498
    %1501 = vset.pattern.permute.xlu0 16
    %1502 = vperm.xlu0 %1501, %v88
    %v1503 = vpop.permute.xlu0 %1502
    %v1505 = vmul.f32 %v1499, %v1503
    %v1506 = vmul.f32 %v1505, %v1505
    %1508 = vrot.lane.b32.xlu0 %v1506, 16
    %v1509 = vpop.permute.xlu0 %1508
    %v1511 = vsub.f32 %v1505, %v1509
    %v1512 = vmax.f32 %v1511, 0.0
    %v1513 = vsub.f32 %v1385, %v1505
    %v1514 = vsub.f32 %v1390, %v1505
    %v1515 = vsub.f32 %v1395, %v1505
    %v1516 = vsub.f32 %v1400, %v1505
    %v1517 = vsub.f32 %v1405, %v1505
    %v1518 = vsub.f32 %v1410, %v1505
    %v1519 = vsub.f32 %v1415, %v1505
    %v1520 = vsub.f32 %v1420, %v1505
    %v1521 = vadd.f32 %v1512, 1e-05
    %v1522 = vrsqrt.pop %v1521
    %v1523 = vlaneseq
    %v1524 = vshrl.u32 %v1523, 7
    %v1525 = vsub.s32 0, %v1524
    %v1526 = vrot.slane %v1522, %v1525
    %1528 = vrot.lane.b32.xlu0 %v1526, 112
    %v1529 = vpop.permute.xlu0 %1528
    %v1531 = vmul.f32 %v1513, %v1529
    %v1532 = vmul.f32 %v1514, %v1529
    %v1533 = vmul.f32 %v1515, %v1529
    %v1534 = vmul.f32 %v1516, %v1529
    %v1535 = vmul.f32 %v1517, %v1529
    %v1536 = vmul.f32 %v1518, %v1529
    %v1537 = vmul.f32 %v1519, %v1529
    %v1538 = vmul.f32 %v1520, %v1529
    %v1539 = vlaneseq
    %v1540 = vshrl.u32 %v1539, 7
    %v1541 = vsub.s32 0, %v1540
    %v1542 = vrot.slane %v52, %v1541
    %v1543 = vmul.f32 %v1531, %v1542
    %v1544 = vmul.f32 %v1532, %v1542
    %v1545 = vmul.f32 %v1533, %v1542
    %v1546 = vmul.f32 %v1534, %v1542
    %v1547 = vmul.f32 %v1535, %v1542
    %v1548 = vmul.f32 %v1536, %v1542
    %v1549 = vmul.f32 %v1537, %v1542
    %v1550 = vmul.f32 %v1538, %v1542
    %v1551 = vlaneseq
    %v1552 = vshrl.u32 %v1551, 7
    %v1553 = vsub.s32 0, %v1552
    %v1554 = vrot.slane %v53, %v1553
    %v1555 = vadd.f32 %v1543, %v1554
    %v1556 = vadd.f32 %v1544, %v1554
    %v1557 = vadd.f32 %v1545, %v1554
    %v1558 = vadd.f32 %v1546, %v1554
    %v1559 = vadd.f32 %v1547, %v1554
    %v1560 = vadd.f32 %v1548, %v1554
    %v1561 = vadd.f32 %v1549, %v1554
    %v1562 = vadd.f32 %v1550, %v1554
    %v1563 = vmul.f32 %v1555, %v92
    %v1564 = vmul.f32 %v1556, %v97
    %v1565 = vmul.f32 %v1557, %v102
    %v1566 = vmul.f32 %v1558, %v107
    %v1567 = vmul.f32 %v1559, %v112
    %v1568 = vmul.f32 %v1560, %v117
    %v1569 = vmul.f32 %v1561, %v122
    %v1570 = vmul.f32 %v1562, %v127
    %v1571 = vlaneseq
    %v1572 = vshrl.u32 %v1571, 7
    %v1573 = vsub.s32 0, %v1572
    %v1574 = vrot.slane %v49, %v1573
    %v1576 = vsel %vm137, %v1563, 0
    %v1579 = vsel %vm137, %v1564, 0
    %v1582 = vsel %vm137, %v1565, 0
    %v1585 = vsel %vm137, %v1566, 0
    %v1588 = vsel %vm137, %v1567, 0
    %v1591 = vsel %vm137, %v1568, 0
    %v1594 = vsel %vm137, %v1569, 0
    %v1597 = vsel %vm137, %v1570, 0
    %1599 = vmatprep.subr.mxu0 0.0
    %1600 = vmatpush1.msra.mxu0 0.0
    %1601 = vmatprep.subr.mxu0 0.0
    %1602 = vmatpush1.msra.mxu0 0.0
    %1603 = vmatprep.subr.mxu0 0.0
    %1604 = vmatpush1.msra.mxu0 0.0
    %1605 = vmatprep.subr.mxu0 0.0
    %1606 = vmatpush1.msra.mxu0 0.0
    %1607 = vmatprep.subr.mxu0 0.0
    %1608 = vmatpush1.msra.mxu0 0.0
    %1609 = vmatprep.subr.mxu0 0.0
    %1610 = vmatpush1.msra.mxu0 0.0
    %1611 = vmatprep.subr.mxu0 0.0
    %1612 = vmatpush1.msra.mxu0 0.0
    %1613 = vmatprep.subr.mxu0 0.0
    %1614 = vmatpush1.msra.mxu0 0.0
    %1615 = vmatprep.subr.mxu0 0.0
    %1616 = vmatpush1.msra.mxu0 0.0
    %1617 = vmatprep.subr.mxu0 0.0
    %1618 = vmatpush1.msra.mxu0 0.0
    %1619 = vmatprep.subr.mxu0 0.0
    %1620 = vmatpush1.msra.mxu0 0.0
    %1621 = vmatprep.subr.mxu0 0.0
    %1622 = vmatpush1.msra.mxu0 0.0
    %1623 = vmatprep.subr.mxu0 0.0
    %1624 = vmatpush1.msra.mxu0 0.0
    %1625 = vmatprep.subr.mxu0 0.0
    %1626 = vmatpush1.msra.mxu0 0.0
    %1627 = vmatprep.subr.mxu0 0.0
    %1628 = vmatpush1.msra.mxu0 %v42
    %1629 = vmatprep.subr.mxu0 0.0
    %1630 = vmatpush1.msra.mxu0 %v41
    %1631 = vmatprep.subr.mxu0 0.0
    %1632 = vmatpush2.msra.mxu0 0.0
    %1633 = vmatprep.subr.mxu0 0.0
    %1634 = vmatpush2.msra.mxu0 0.0
    %1635 = vmatprep.subr.mxu0 0.0
    %1636 = vmatpush2.msra.mxu0 0.0
    %1637 = vmatprep.subr.mxu0 0.0
    %1638 = vmatpush2.msra.mxu0 0.0
    %1639 = vmatprep.subr.mxu0 0.0
    %1640 = vmatpush2.msra.mxu0 0.0
    %1641 = vmatprep.subr.mxu0 0.0
    %1642 = vmatpush2.msra.mxu0 0.0
    %1643 = vmatprep.subr.mxu0 0.0
    %1644 = vmatpush2.msra.mxu0 0.0
    %1645 = vmatprep.subr.mxu0 0.0
    %1646 = vmatpush2.msra.mxu0 0.0
    %1647 = vmatprep.subr.mxu0 0.0
    %1648 = vmatpush2.msra.mxu0 0.0
    %1649 = vmatprep.subr.mxu0 0.0
    %1650 = vmatpush2.msra.mxu0 0.0
    %1651 = vmatprep.subr.mxu0 0.0
    %1652 = vmatpush2.msra.mxu0 0.0
    %1653 = vmatprep.subr.mxu0 0.0
    %1654 = vmatpush2.msra.mxu0 0.0
    %1655 = vmatprep.subr.mxu0 0.0
    %1656 = vmatpush2.msra.mxu0 0.0
    %1657 = vmatprep.subr.mxu0 0.0
    %1658 = vmatpush2.msra.mxu0 0.0
    %1659 = vmatprep.subr.mxu0 0.0
    %1660 = vmatpush2.msra.mxu0 0.0
    %1661 = vmatprep.subr.mxu0 0.0
    %1662 = vmatpush2.msra.mxu0 0.0
    %1663 = vmatprep.mubr.f32.mxu0 0.0
    %1664 = vmatmul.mubr.f32.gmra.mxu0 %v1576
    %v1665 = vpop.f32.mrf.mxu0
    %v1666 = vadd.f32 %v1574, %v1665
    %v1667 = vpop.f32.mrf.mxu0
    %1668 = vmatprep.mubr.f32.mxu0 0.0
    %1669 = vmatmul.mubr.f32.gmra.mxu0 %v1579
    %v1670 = vpop.f32.mrf.mxu0
    %v1671 = vadd.f32 %v1574, %v1670
    %v1672 = vpop.f32.mrf.mxu0
    %1673 = vmatprep.mubr.f32.mxu0 0.0
    %1674 = vmatmul.mubr.f32.gmra.mxu0 %v1582
    %v1675 = vpop.f32.mrf.mxu0
    %v1676 = vadd.f32 %v1574, %v1675
    %v1677 = vpop.f32.mrf.mxu0
    %1678 = vmatprep.mubr.f32.mxu0 0.0
    %1679 = vmatmul.mubr.f32.gmra.mxu0 %v1585
    %v1680 = vpop.f32.mrf.mxu0
    %v1681 = vadd.f32 %v1574, %v1680
    %v1682 = vpop.f32.mrf.mxu0
    %1683 = vmatprep.mubr.f32.mxu0 0.0
    %1684 = vmatmul.mubr.f32.gmra.mxu0 %v1588
    %v1685 = vpop.f32.mrf.mxu0
    %v1686 = vadd.f32 %v1574, %v1685
    %v1687 = vpop.f32.mrf.mxu0
    %1688 = vmatprep.mubr.f32.mxu0 0.0
    %1689 = vmatmul.mubr.f32.gmra.mxu0 %v1591
    %v1690 = vpop.f32.mrf.mxu0
    %v1691 = vadd.f32 %v1574, %v1690
    %v1692 = vpop.f32.mrf.mxu0
    %1693 = vmatprep.mubr.f32.mxu0 0.0
    %1694 = vmatmul.mubr.f32.gmra.mxu0 %v1594
    %v1695 = vpop.f32.mrf.mxu0
    %v1696 = vadd.f32 %v1574, %v1695
    %v1697 = vpop.f32.mrf.mxu0
    %1698 = vmatprep.mubr.f32.mxu0 0.0
    %1699 = vmatmul.mubr.f32.gmra.mxu0 %v1597
    %v1700 = vpop.f32.mrf.mxu0
    %v1701 = vadd.f32 %v1574, %v1700
    %v1702 = vpop.f32.mrf.mxu0
    %1703 = vdwg.mxu0
    %v1704 = vlaneseq
    %v1705 = vshrl.u32 %v1704, 7
    %v1706 = vsub.s32 0, %v1705
    %v1707 = vrot.slane %v50, %v1706
    %v1708 = vsel %vm137, %v15, 0
    %v1710 = vsel %vm137, %v16, 0
    %v1712 = vsel %vm137, %v17, 0
    %v1714 = vsel %vm137, %v18, 0
    %v1716 = vsel %vm137, %v19, 0
    %v1718 = vsel %vm137, %v20, 0
    %v1720 = vsel %vm137, %v21, 0
    %v1722 = vsel %vm137, %v22, 0
    %1724 = vmatprep.subr.mxu0 0.0
    %1725 = vmatpush1.msra.mxu0 0.0
    %1726 = vmatprep.subr.mxu0 0.0
    %1727 = vmatpush1.msra.mxu0 0.0
    %1728 = vmatprep.subr.mxu0 0.0
    %1729 = vmatpush1.msra.mxu0 0.0
    %1730 = vmatprep.subr.mxu0 0.0
    %1731 = vmatpush1.msra.mxu0 0.0
    %1732 = vmatprep.subr.mxu0 0.0
    %1733 = vmatpush1.msra.mxu0 0.0
    %1734 = vmatprep.subr.mxu0 0.0
    %1735 = vmatpush1.msra.mxu0 0.0
    %1736 = vmatprep.subr.mxu0 0.0
    %1737 = vmatpush1.msra.mxu0 0.0
    %1738 = vmatprep.subr.mxu0 0.0
    %1739 = vmatpush1.msra.mxu0 0.0
    %1740 = vmatprep.subr.mxu0 0.0
    %1741 = vmatpush1.msra.mxu0 0.0
    %1742 = vmatprep.subr.mxu0 0.0
    %1743 = vmatpush1.msra.mxu0 0.0
    %1744 = vmatprep.subr.mxu0 0.0
    %1745 = vmatpush1.msra.mxu0 0.0
    %1746 = vmatprep.subr.mxu0 0.0
    %1747 = vmatpush1.msra.mxu0 0.0
    %1748 = vmatprep.subr.mxu0 0.0
    %1749 = vmatpush1.msra.mxu0 0.0
    %1750 = vmatprep.subr.mxu0 0.0
    %1751 = vmatpush1.msra.mxu0 0.0
    %1752 = vmatprep.subr.mxu0 0.0
    %1753 = vmatpush1.msra.mxu0 %v44
    %1754 = vmatprep.subr.mxu0 0.0
    %1755 = vmatpush1.msra.mxu0 %v43
    %1756 = vmatprep.subr.mxu0 0.0
    %1757 = vmatpush2.msra.mxu0 0.0
    %1758 = vmatprep.subr.mxu0 0.0
    %1759 = vmatpush2.msra.mxu0 0.0
    %1760 = vmatprep.subr.mxu0 0.0
    %1761 = vmatpush2.msra.mxu0 0.0
    %1762 = vmatprep.subr.mxu0 0.0
    %1763 = vmatpush2.msra.mxu0 0.0
    %1764 = vmatprep.subr.mxu0 0.0
    %1765 = vmatpush2.msra.mxu0 0.0
    %1766 = vmatprep.subr.mxu0 0.0
    %1767 = vmatpush2.msra.mxu0 0.0
    %1768 = vmatprep.subr.mxu0 0.0
    %1769 = vmatpush2.msra.mxu0 0.0
    %1770 = vmatprep.subr.mxu0 0.0
    %1771 = vmatpush2.msra.mxu0 0.0
    %1772 = vmatprep.subr.mxu0 0.0
    %1773 = vmatpush2.msra.mxu0 0.0
    %1774 = vmatprep.subr.mxu0 0.0
    %1775 = vmatpush2.msra.mxu0 0.0
    %1776 = vmatprep.subr.mxu0 0.0
    %1777 = vmatpush2.msra.mxu0 0.0
    %1778 = vmatprep.subr.mxu0 0.0
    %1779 = vmatpush2.msra.mxu0 0.0
    %1780 = vmatprep.subr.mxu0 0.0
    %1781 = vmatpush2.msra.mxu0 0.0
    %1782 = vmatprep.subr.mxu0 0.0
    %1783 = vmatpush2.msra.mxu0 0.0
    %1784 = vmatprep.subr.mxu0 0.0
    %1785 = vmatpush2.msra.mxu0 0.0
    %1786 = vmatprep.subr.mxu0 0.0
    %1787 = vmatpush2.msra.mxu0 0.0
    %1788 = vmatprep.mubr.f32.mxu0 0.0
    %1789 = vmatmul.mubr.f32.gmra.mxu0 %v1708
    %v1790 = vpop.f32.mrf.mxu0
    %v1791 = vadd.f32 %v1707, %v1790
    %v1792 = vpop.f32.mrf.mxu0
    %1793 = vmatprep.mubr.f32.mxu0 0.0
    %1794 = vmatmul.mubr.f32.gmra.mxu0 %v1710
    %v1795 = vpop.f32.mrf.mxu0
    %v1796 = vadd.f32 %v1707, %v1795
    %v1797 = vpop.f32.mrf.mxu0
    %1798 = vmatprep.mubr.f32.mxu0 0.0
    %1799 = vmatmul.mubr.f32.gmra.mxu0 %v1712
    %v1800 = vpop.f32.mrf.mxu0
    %v1801 = vadd.f32 %v1707, %v1800
    %v1802 = vpop.f32.mrf.mxu0
    %1803 = vmatprep.mubr.f32.mxu0 0.0
    %1804 = vmatmul.mubr.f32.gmra.mxu0 %v1714
    %v1805 = vpop.f32.mrf.mxu0
    %v1806 = vadd.f32 %v1707, %v1805
    %v1807 = vpop.f32.mrf.mxu0
    %1808 = vmatprep.mubr.f32.mxu0 0.0
    %1809 = vmatmul.mubr.f32.gmra.mxu0 %v1716
    %v1810 = vpop.f32.mrf.mxu0
    %v1811 = vadd.f32 %v1707, %v1810
    %v1812 = vpop.f32.mrf.mxu0
    %1813 = vmatprep.mubr.f32.mxu0 0.0
    %1814 = vmatmul.mubr.f32.gmra.mxu0 %v1718
    %v1815 = vpop.f32.mrf.mxu0
    %v1816 = vadd.f32 %v1707, %v1815
    %v1817 = vpop.f32.mrf.mxu0
    %1818 = vmatprep.mubr.f32.mxu0 0.0
    %1819 = vmatmul.mubr.f32.gmra.mxu0 %v1720
    %v1820 = vpop.f32.mrf.mxu0
    %v1821 = vadd.f32 %v1707, %v1820
    %v1822 = vpop.f32.mrf.mxu0
    %1823 = vmatprep.mubr.f32.mxu0 0.0
    %1824 = vmatmul.mubr.f32.gmra.mxu0 %v1722
    %v1825 = vpop.f32.mrf.mxu0
    %v1826 = vadd.f32 %v1707, %v1825
    %v1827 = vpop.f32.mrf.mxu0
    %1828 = vdwg.mxu0
    %v1829 = vadd.f32 %v1666, %v1791
    %v1830 = vadd.f32 %v1671, %v1796
    %v1831 = vadd.f32 %v1676, %v1801
    %v1832 = vadd.f32 %v1681, %v1806
    %v1833 = vadd.f32 %v1686, %v1811
    %v1834 = vadd.f32 %v1691, %v1816
    %v1835 = vadd.f32 %v1696, %v1821
    %v1836 = vadd.f32 %v1701, %v1826
    %v1837 = vxor.u32 %v1829, 2147483648
    %v1838 = vxor.u32 %v1830, 2147483648
    %v1839 = vxor.u32 %v1831, 2147483648
    %v1840 = vxor.u32 %v1832, 2147483648
    %v1841 = vxor.u32 %v1833, 2147483648
    %v1842 = vxor.u32 %v1834, 2147483648
    %v1843 = vxor.u32 %v1835, 2147483648
    %v1844 = vxor.u32 %v1836, 2147483648
    %v1845 = vmul.f32 %v1837, 1.442695
    %v1846 = vpow.pop %v1845
    %v1847 = vmul.f32 %v1838, 1.442695
    %v1848 = vpow.pop %v1847
    %v1849 = vmul.f32 %v1839, 1.442695
    %v1850 = vpow.pop %v1849
    %v1851 = vmul.f32 %v1840, 1.442695
    %v1852 = vpow.pop %v1851
    %v1853 = vmul.f32 %v1841, 1.442695
    %v1854 = vpow.pop %v1853
    %v1855 = vmul.f32 %v1842, 1.442695
    %v1856 = vpow.pop %v1855
    %v1857 = vmul.f32 %v1843, 1.442695
    %v1858 = vpow.pop %v1857
    %v1859 = vmul.f32 %v1844, 1.442695
    %v1860 = vpow.pop %v1859
    %v1861 = vadd.f32 %v1846, 1.0
    %v1862 = vadd.f32 %v1848, 1.0
    %v1863 = vadd.f32 %v1850, 1.0
    %v1864 = vadd.f32 %v1852, 1.0
    %v1865 = vadd.f32 %v1854, 1.0
    %v1866 = vadd.f32 %v1856, 1.0
    %v1867 = vadd.f32 %v1858, 1.0
    %v1868 = vadd.f32 %v1860, 1.0
    %v1869 = vrcp.pop %v1861
    %v1870 = vmul.f32 1.0, %v1869
    %v1871 = vrcp.pop %v1862
    %v1872 = vmul.f32 1.0, %v1871
    %v1873 = vrcp.pop %v1863
    %v1874 = vmul.f32 1.0, %v1873
    %v1875 = vrcp.pop %v1864
    %v1876 = vmul.f32 1.0, %v1875
    %v1877 = vrcp.pop %v1865
    %v1878 = vmul.f32 1.0, %v1877
    %v1879 = vrcp.pop %v1866
    %v1880 = vmul.f32 1.0, %v1879
    %v1881 = vrcp.pop %v1867
    %v1882 = vmul.f32 1.0, %v1881
    %v1883 = vrcp.pop %v1868
    %v1884 = vmul.f32 1.0, %v1883
    %1893 = vrot.lane.b32.xlu0 %v1791, 96
    %v1894 = vpop.permute.xlu0 %1893
    %1895 = vrot.lane.b32.xlu0 %v1796, 96
    %v1896 = vpop.permute.xlu0 %1895
    %1897 = vrot.lane.b32.xlu0 %v1801, 96
    %v1898 = vpop.permute.xlu0 %1897
    %1899 = vrot.lane.b32.xlu0 %v1806, 96
    %v1900 = vpop.permute.xlu0 %1899
    %1901 = vrot.lane.b32.xlu0 %v1811, 96
    %v1902 = vpop.permute.xlu0 %1901
    %1903 = vrot.lane.b32.xlu0 %v1816, 96
    %v1904 = vpop.permute.xlu0 %1903
    %1905 = vrot.lane.b32.xlu0 %v1821, 96
    %v1906 = vpop.permute.xlu0 %1905
    %1907 = vrot.lane.b32.xlu0 %v1826, 96
    %v1908 = vpop.permute.xlu0 %1907
    %v1917 = vmul.f32 %v1870, %v1894
    %v1918 = vmul.f32 %v1872, %v1896
    %v1919 = vmul.f32 %v1874, %v1898
    %v1920 = vmul.f32 %v1876, %v1900
    %v1921 = vmul.f32 %v1878, %v1902
    %v1922 = vmul.f32 %v1880, %v1904
    %v1923 = vmul.f32 %v1882, %v1906
    %v1924 = vmul.f32 %v1884, %v1908
    %1933 = vrot.lane.b32.xlu0 %v1917, 32
    %v1934 = vpop.permute.xlu0 %1933
    %1935 = vrot.lane.b32.xlu0 %v1918, 32
    %v1936 = vpop.permute.xlu0 %1935
    %1937 = vrot.lane.b32.xlu0 %v1919, 32
    %v1938 = vpop.permute.xlu0 %1937
    %1939 = vrot.lane.b32.xlu0 %v1920, 32
    %v1940 = vpop.permute.xlu0 %1939
    %1941 = vrot.lane.b32.xlu0 %v1921, 32
    %v1942 = vpop.permute.xlu0 %1941
    %1943 = vrot.lane.b32.xlu0 %v1922, 32
    %v1944 = vpop.permute.xlu0 %1943
    %1945 = vrot.lane.b32.xlu0 %v1923, 32
    %v1946 = vpop.permute.xlu0 %1945
    %1947 = vrot.lane.b32.xlu0 %v1924, 32
    %v1948 = vpop.permute.xlu0 %1947
    %v1957 = vadd.f32 %v1666, %v1934
    %v1958 = vadd.f32 %v1671, %v1936
    %v1959 = vadd.f32 %v1676, %v1938
    %v1960 = vadd.f32 %v1681, %v1940
    %v1961 = vadd.f32 %v1686, %v1942
    %v1962 = vadd.f32 %v1691, %v1944
    %v1963 = vadd.f32 %v1696, %v1946
    %v1964 = vadd.f32 %v1701, %v1948
    %v1965 = vtanh.pop %v1957
    %v1966 = vtanh.pop %v1958
    %v1967 = vtanh.pop %v1959
    %v1968 = vtanh.pop %v1960
    %v1969 = vtanh.pop %v1961
    %v1970 = vtanh.pop %v1962
    %v1971 = vtanh.pop %v1963
    %v1972 = vtanh.pop %v1964
    %1981 = vrot.lane.b32.xlu0 %v1965, 96
    %v1982 = vpop.permute.xlu0 %1981
    %1983 = vrot.lane.b32.xlu0 %v1966, 96
    %v1984 = vpop.permute.xlu0 %1983
    %1985 = vrot.lane.b32.xlu0 %v1967, 96
    %v1986 = vpop.permute.xlu0 %1985
    %1987 = vrot.lane.b32.xlu0 %v1968, 96
    %v1988 = vpop.permute.xlu0 %1987
    %1989 = vrot.lane.b32.xlu0 %v1969, 96
    %v1990 = vpop.permute.xlu0 %1989
    %1991 = vrot.lane.b32.xlu0 %v1970, 96
    %v1992 = vpop.permute.xlu0 %1991
    %1993 = vrot.lane.b32.xlu0 %v1971, 96
    %v1994 = vpop.permute.xlu0 %1993
    %1995 = vrot.lane.b32.xlu0 %v1972, 96
    %v1996 = vpop.permute.xlu0 %1995
    %v2005 = vsub.f32 %v15, %v1982
    %v2006 = vsub.f32 %v16, %v1984
    %v2007 = vsub.f32 %v17, %v1986
    %v2008 = vsub.f32 %v18, %v1988
    %v2009 = vsub.f32 %v19, %v1990
    %v2010 = vsub.f32 %v20, %v1992
    %v2011 = vsub.f32 %v21, %v1994
    %v2012 = vsub.f32 %v22, %v1996
    %2021 = vrot.lane.b32.xlu0 %v2005, 16
    %v2022 = vpop.permute.xlu0 %2021
    %2023 = vrot.lane.b32.xlu0 %v2006, 16
    %v2024 = vpop.permute.xlu0 %2023
    %2025 = vrot.lane.b32.xlu0 %v2007, 16
    %v2026 = vpop.permute.xlu0 %2025
    %2027 = vrot.lane.b32.xlu0 %v2008, 16
    %v2028 = vpop.permute.xlu0 %2027
    %2029 = vrot.lane.b32.xlu0 %v2009, 16
    %v2030 = vpop.permute.xlu0 %2029
    %2031 = vrot.lane.b32.xlu0 %v2010, 16
    %v2032 = vpop.permute.xlu0 %2031
    %2033 = vrot.lane.b32.xlu0 %v2011, 16
    %v2034 = vpop.permute.xlu0 %2033
    %2035 = vrot.lane.b32.xlu0 %v2012, 16
    %v2036 = vpop.permute.xlu0 %2035
    %v2045 = vmul.f32 %v1870, %v2022
    %v2046 = vmul.f32 %v1872, %v2024
    %v2047 = vmul.f32 %v1874, %v2026
    %v2048 = vmul.f32 %v1876, %v2028
    %v2049 = vmul.f32 %v1878, %v2030
    %v2050 = vmul.f32 %v1880, %v2032
    %v2051 = vmul.f32 %v1882, %v2034
    %v2052 = vmul.f32 %v1884, %v2036
    %2061 = vrot.lane.b32.xlu0 %v2045, 16
    %v2062 = vpop.permute.xlu0 %2061
    %2063 = vrot.lane.b32.xlu0 %v2046, 16
    %v2064 = vpop.permute.xlu0 %2063
    %2065 = vrot.lane.b32.xlu0 %v2047, 16
    %v2066 = vpop.permute.xlu0 %2065
    %2067 = vrot.lane.b32.xlu0 %v2048, 16
    %v2068 = vpop.permute.xlu0 %2067
    %2069 = vrot.lane.b32.xlu0 %v2049, 16
    %v2070 = vpop.permute.xlu0 %2069
    %2071 = vrot.lane.b32.xlu0 %v2050, 16
    %v2072 = vpop.permute.xlu0 %2071
    %2073 = vrot.lane.b32.xlu0 %v2051, 16
    %v2074 = vpop.permute.xlu0 %2073
    %2075 = vrot.lane.b32.xlu0 %v2052, 16
    %v2076 = vpop.permute.xlu0 %2075
    %v2085 = vadd.f32 %v1965, %v2062
    %v2086 = vadd.f32 %v1966, %v2064
    %v2087 = vadd.f32 %v1967, %v2066
    %v2088 = vadd.f32 %v1968, %v2068
    %v2089 = vadd.f32 %v1969, %v2070
    %v2090 = vadd.f32 %v1970, %v2072
    %v2091 = vadd.f32 %v1971, %v2074
    %v2092 = vadd.f32 %v1972, %v2076
    %v2093 = vmul.f32 %v2085, %v92
    %v2094 = vmul.f32 %v2086, %v97
    %v2095 = vmul.f32 %v2087, %v102
    %v2096 = vmul.f32 %v2088, %v107
    %v2097 = vmul.f32 %v2089, %v112
    %v2098 = vmul.f32 %v2090, %v117
    %v2099 = vmul.f32 %v2091, %v122
    %v2100 = vmul.f32 %v2092, %v127
    %v2101 = vmul.f32 %v2093, %v92
    %v2102 = vmul.f32 %v2094, %v97
    %v2103 = vmul.f32 %v2095, %v102
    %v2104 = vmul.f32 %v2096, %v107
    %v2105 = vmul.f32 %v2097, %v112
    %v2106 = vmul.f32 %v2098, %v117
    %v2107 = vmul.f32 %v2099, %v122
    %v2108 = vmul.f32 %v2100, %v127
    %v2109 = vmul.f32 %v2101, %v2101
    %v2110 = vmul.f32 %v2102, %v2102
    %v2111 = vmul.f32 %v2103, %v2103
    %v2112 = vmul.f32 %v2104, %v2104
    %v2113 = vmul.f32 %v2105, %v2105
    %v2114 = vmul.f32 %v2106, %v2106
    %v2115 = vmul.f32 %v2107, %v2107
    %v2116 = vmul.f32 %v2108, %v2108
    %2125 = vrot.lane.b32.xlu0 %v2101, 96
    %v2126 = vpop.permute.xlu0 %2125
    %2127 = vrot.lane.b32.xlu0 %v2102, 96
    %v2128 = vpop.permute.xlu0 %2127
    %2129 = vrot.lane.b32.xlu0 %v2103, 96
    %v2130 = vpop.permute.xlu0 %2129
    %2131 = vrot.lane.b32.xlu0 %v2104, 96
    %v2132 = vpop.permute.xlu0 %2131
    %2133 = vrot.lane.b32.xlu0 %v2105, 96
    %v2134 = vpop.permute.xlu0 %2133
    %2135 = vrot.lane.b32.xlu0 %v2106, 96
    %v2136 = vpop.permute.xlu0 %2135
    %2137 = vrot.lane.b32.xlu0 %v2107, 96
    %v2138 = vpop.permute.xlu0 %2137
    %2139 = vrot.lane.b32.xlu0 %v2108, 96
    %v2140 = vpop.permute.xlu0 %2139
    %2157 = vrot.lane.b32.xlu0 %v2109, 112
    %v2158 = vpop.permute.xlu0 %2157
    %2159 = vrot.lane.b32.xlu0 %v2110, 112
    %v2160 = vpop.permute.xlu0 %2159
    %2161 = vrot.lane.b32.xlu0 %v2111, 112
    %v2162 = vpop.permute.xlu0 %2161
    %2163 = vrot.lane.b32.xlu0 %v2112, 112
    %v2164 = vpop.permute.xlu0 %2163
    %2165 = vrot.lane.b32.xlu0 %v2113, 112
    %v2166 = vpop.permute.xlu0 %2165
    %2167 = vrot.lane.b32.xlu0 %v2114, 112
    %v2168 = vpop.permute.xlu0 %2167
    %2169 = vrot.lane.b32.xlu0 %v2115, 112
    %v2170 = vpop.permute.xlu0 %2169
    %2171 = vrot.lane.b32.xlu0 %v2116, 112
    %v2172 = vpop.permute.xlu0 %2171
    %v2181 = vsel %vm137, %v2126, %v2158
    %v2182 = vsel %vm137, %v2128, %v2160
    %v2183 = vsel %vm137, %v2130, %v2162
    %v2184 = vsel %vm137, %v2132, %v2164
    %v2185 = vsel %vm137, %v2134, %v2166
    %v2186 = vsel %vm137, %v2136, %v2168
    %v2187 = vsel %vm137, %v2138, %v2170
    %v2188 = vsel %vm137, %v2140, %v2172
    %v2189 = vsel %vm146, %v2181, 0.0
    %v2190 = vsel %vm146, %v2182, 0.0
    %v2191 = vadd.f32 %v2189, %v2190
    %v2192 = vsel %vm146, %v2183, 0.0
    %v2193 = vadd.f32 %v2191, %v2192
    %v2194 = vsel %vm146, %v2184, 0.0
    %v2195 = vadd.f32 %v2193, %v2194
    %v2196 = vsel %vm146, %v2185, 0.0
    %v2197 = vadd.f32 %v2195, %v2196
    %v2198 = vsel %vm146, %v2186, 0.0
    %v2199 = vadd.f32 %v2197, %v2198
    %v2200 = vsel %vm146, %v2187, 0.0
    %v2201 = vadd.f32 %v2199, %v2200
    %v2202 = vsel %vm146, %v2188, 0.0
    %v2203 = vadd.f32 %v2201, %v2202
    %v2204 = vrot.slane %v2203, 4
    %v2205 = vadd.f32 %v2203, %v2204
    %v2206 = vrot.slane %v2205, 2
    %v2207 = vadd.f32 %v2205, %v2206
    %v2208 = vrot.slane %v2207, 1
    %v2209 = vadd.f32 %v2207, %v2208
    %v2210 = vmul.f32 %v2209, %v1503
    %v2211 = vmul.f32 %v2210, %v2210
    %2213 = vrot.lane.b32.xlu0 %v2211, 16
    %v2214 = vpop.permute.xlu0 %2213
    %v2216 = vsub.f32 %v2210, %v2214
    %v2217 = vmax.f32 %v2216, 0.0
    %2219 = vrot.lane.b32.xlu0 %v2210, 32
    %v2220 = vpop.permute.xlu0 %2219
    %v2222 = vsub.f32 %v2093, %v2220
    %v2223 = vsub.f32 %v2094, %v2220
    %v2224 = vsub.f32 %v2095, %v2220
    %v2225 = vsub.f32 %v2096, %v2220
    %v2226 = vsub.f32 %v2097, %v2220
    %v2227 = vsub.f32 %v2098, %v2220
    %v2228 = vsub.f32 %v2099, %v2220
    %v2229 = vsub.f32 %v2100, %v2220
    %v2230 = vadd.f32 %v2217, 1e-05
    %v2231 = vrsqrt.pop %v2230
    %v2232 = vlaneseq
    %v2233 = vshrl.u32 %v2232, 7
    %v2234 = vsub.s32 0, %v2233
    %v2235 = vrot.slane %v2231, %v2234
    %2237 = vrot.lane.b32.xlu0 %v2235, 16
    %v2238 = vpop.permute.xlu0 %2237
    %v2240 = vmul.f32 %v2222, %v2238
    %v2241 = vmul.f32 %v2223, %v2238
    %v2242 = vmul.f32 %v2224, %v2238
    %v2243 = vmul.f32 %v2225, %v2238
    %v2244 = vmul.f32 %v2226, %v2238
    %v2245 = vmul.f32 %v2227, %v2238
    %v2246 = vmul.f32 %v2228, %v2238
    %v2247 = vmul.f32 %v2229, %v2238
    %2249 = vrot.lane.b32.xlu0 %v58, 32
    %v2250 = vpop.permute.xlu0 %2249
    %v2252 = vmul.f32 %v2240, %v2250
    %v2253 = vmul.f32 %v2241, %v2250
    %v2254 = vmul.f32 %v2242, %v2250
    %v2255 = vmul.f32 %v2243, %v2250
    %v2256 = vmul.f32 %v2244, %v2250
    %v2257 = vmul.f32 %v2245, %v2250
    %v2258 = vmul.f32 %v2246, %v2250
    %v2259 = vmul.f32 %v2247, %v2250
    %2261 = vrot.lane.b32.xlu0 %v63, 32
    %v2262 = vpop.permute.xlu0 %2261
    %v2264 = vadd.f32 %v2252, %v2262
    %v2265 = vadd.f32 %v2253, %v2262
    %v2266 = vadd.f32 %v2254, %v2262
    %v2267 = vadd.f32 %v2255, %v2262
    %v2268 = vadd.f32 %v2256, %v2262
    %v2269 = vadd.f32 %v2257, %v2262
    %v2270 = vadd.f32 %v2258, %v2262
    %v2271 = vadd.f32 %v2259, %v2262
    %v2272 = vmul.f32 %v2264, %v92
    %v2273 = vmul.f32 %v2265, %v97
    %v2274 = vmul.f32 %v2266, %v102
    %v2275 = vmul.f32 %v2267, %v107
    %v2276 = vmul.f32 %v2268, %v112
    %v2277 = vmul.f32 %v2269, %v117
    %v2278 = vmul.f32 %v2270, %v122
    %v2279 = vmul.f32 %v2271, %v127
    %2288 = vrot.lane.b32.xlu0 %v2272, 96
    %v2289 = vpop.permute.xlu0 %2288
    %2290 = vrot.lane.b32.xlu0 %v2273, 96
    %v2291 = vpop.permute.xlu0 %2290
    %2292 = vrot.lane.b32.xlu0 %v2274, 96
    %v2293 = vpop.permute.xlu0 %2292
    %2294 = vrot.lane.b32.xlu0 %v2275, 96
    %v2295 = vpop.permute.xlu0 %2294
    %2296 = vrot.lane.b32.xlu0 %v2276, 96
    %v2297 = vpop.permute.xlu0 %2296
    %2298 = vrot.lane.b32.xlu0 %v2277, 96
    %v2299 = vpop.permute.xlu0 %2298
    %2300 = vrot.lane.b32.xlu0 %v2278, 96
    %v2301 = vpop.permute.xlu0 %2300
    %2302 = vrot.lane.b32.xlu0 %v2279, 96
    %v2303 = vpop.permute.xlu0 %2302
    %v2304 = vsel %vm137, %v2289, 0
    %v2306 = vsel %vm137, %v2291, 0
    %v2308 = vsel %vm137, %v2293, 0
    %v2310 = vsel %vm137, %v2295, 0
    %v2312 = vsel %vm137, %v2297, 0
    %v2314 = vsel %vm137, %v2299, 0
    %v2316 = vsel %vm137, %v2301, 0
    %v2318 = vsel %vm137, %v2303, 0
    %2320 = vmatprep.subr.mxu0 0.0
    %2321 = vmatpush1.msra.mxu0 0.0
    %2322 = vmatprep.subr.mxu0 0.0
    %2323 = vmatpush1.msra.mxu0 0.0
    %2324 = vmatprep.subr.mxu0 0.0
    %2325 = vmatpush1.msra.mxu0 0.0
    %2326 = vmatprep.subr.mxu0 0.0
    %2327 = vmatpush1.msra.mxu0 0.0
    %2328 = vmatprep.subr.mxu0 0.0
    %2329 = vmatpush1.msra.mxu0 0.0
    %2330 = vmatprep.subr.mxu0 0.0
    %2331 = vmatpush1.msra.mxu0 0.0
    %2332 = vmatprep.subr.mxu0 0.0
    %2333 = vmatpush1.msra.mxu0 0.0
    %2334 = vmatprep.subr.mxu0 0.0
    %2335 = vmatpush1.msra.mxu0 0.0
    %2336 = vmatprep.subr.mxu0 0.0
    %2337 = vmatpush1.msra.mxu0 0.0
    %2338 = vmatprep.subr.mxu0 0.0
    %2339 = vmatpush1.msra.mxu0 0.0
    %2340 = vmatprep.subr.mxu0 0.0
    %2341 = vmatpush1.msra.mxu0 0.0
    %2342 = vmatprep.subr.mxu0 0.0
    %2343 = vmatpush1.msra.mxu0 0.0
    %2344 = vmatprep.subr.mxu0 0.0
    %2345 = vmatpush1.msra.mxu0 0.0
    %2346 = vmatprep.subr.mxu0 0.0
    %2347 = vmatpush1.msra.mxu0 0.0
    %2348 = vmatprep.subr.mxu0 0.0
    %2349 = vmatpush1.msra.mxu0 %v44
    %2350 = vmatprep.subr.mxu0 0.0
    %2351 = vmatpush1.msra.mxu0 %v43
    %2352 = vmatprep.subr.mxu0 0.0
    %2353 = vmatpush2.msra.mxu0 0.0
    %2354 = vmatprep.subr.mxu0 0.0
    %2355 = vmatpush2.msra.mxu0 0.0
    %2356 = vmatprep.subr.mxu0 0.0
    %2357 = vmatpush2.msra.mxu0 0.0
    %2358 = vmatprep.subr.mxu0 0.0
    %2359 = vmatpush2.msra.mxu0 0.0
    %2360 = vmatprep.subr.mxu0 0.0
    %2361 = vmatpush2.msra.mxu0 0.0
    %2362 = vmatprep.subr.mxu0 0.0
    %2363 = vmatpush2.msra.mxu0 0.0
    %2364 = vmatprep.subr.mxu0 0.0
    %2365 = vmatpush2.msra.mxu0 0.0
    %2366 = vmatprep.subr.mxu0 0.0
    %2367 = vmatpush2.msra.mxu0 0.0
    %2368 = vmatprep.subr.mxu0 0.0
    %2369 = vmatpush2.msra.mxu0 0.0
    %2370 = vmatprep.subr.mxu0 0.0
    %2371 = vmatpush2.msra.mxu0 0.0
    %2372 = vmatprep.subr.mxu0 0.0
    %2373 = vmatpush2.msra.mxu0 0.0
    %2374 = vmatprep.subr.mxu0 0.0
    %2375 = vmatpush2.msra.mxu0 0.0
    %2376 = vmatprep.subr.mxu0 0.0
    %2377 = vmatpush2.msra.mxu0 0.0
    %2378 = vmatprep.subr.mxu0 0.0
    %2379 = vmatpush2.msra.mxu0 0.0
    %2380 = vmatprep.subr.mxu0 0.0
    %2381 = vmatpush2.msra.mxu0 0.0
    %2382 = vmatprep.subr.mxu0 0.0
    %2383 = vmatpush2.msra.mxu0 0.0
    %2384 = vmatprep.mubr.f32.mxu0 0.0
    %2385 = vmatmul.mubr.f32.gmra.mxu0 %v2304
    %v2386 = vpop.f32.mrf.mxu0
    %v2387 = vadd.f32 %v1707, %v2386
    %v2388 = vpop.f32.mrf.mxu0
    %2389 = vmatprep.mubr.f32.mxu0 0.0
    %2390 = vmatmul.mubr.f32.gmra.mxu0 %v2306
    %v2391 = vpop.f32.mrf.mxu0
    %v2392 = vadd.f32 %v1707, %v2391
    %v2393 = vpop.f32.mrf.mxu0
    %2394 = vmatprep.mubr.f32.mxu0 0.0
    %2395 = vmatmul.mubr.f32.gmra.mxu0 %v2308
    %v2396 = vpop.f32.mrf.mxu0
    %v2397 = vadd.f32 %v1707, %v2396
    %v2398 = vpop.f32.mrf.mxu0
    %2399 = vmatprep.mubr.f32.mxu0 0.0
    %2400 = vmatmul.mubr.f32.gmra.mxu0 %v2310
    %v2401 = vpop.f32.mrf.mxu0
    %v2402 = vadd.f32 %v1707, %v2401
    %v2403 = vpop.f32.mrf.mxu0
    %2404 = vmatprep.mubr.f32.mxu0 0.0
    %2405 = vmatmul.mubr.f32.gmra.mxu0 %v2312
    %v2406 = vpop.f32.mrf.mxu0
    %v2407 = vadd.f32 %v1707, %v2406
    %v2408 = vpop.f32.mrf.mxu0
    %2409 = vmatprep.mubr.f32.mxu0 0.0
    %2410 = vmatmul.mubr.f32.gmra.mxu0 %v2314
    %v2411 = vpop.f32.mrf.mxu0
    %v2412 = vadd.f32 %v1707, %v2411
    %v2413 = vpop.f32.mrf.mxu0
    %2414 = vmatprep.mubr.f32.mxu0 0.0
    %2415 = vmatmul.mubr.f32.gmra.mxu0 %v2316
    %v2416 = vpop.f32.mrf.mxu0
    %v2417 = vadd.f32 %v1707, %v2416
    %v2418 = vpop.f32.mrf.mxu0
    %2419 = vmatprep.mubr.f32.mxu0 0.0
    %2420 = vmatmul.mubr.f32.gmra.mxu0 %v2318
    %v2421 = vpop.f32.mrf.mxu0
    %v2422 = vadd.f32 %v1707, %v2421
    %v2423 = vpop.f32.mrf.mxu0
    %2424 = vdwg.mxu0
    %v2425 = vadd.f32 %v1666, %v2387
    %v2426 = vadd.f32 %v1671, %v2392
    %v2427 = vadd.f32 %v1676, %v2397
    %v2428 = vadd.f32 %v1681, %v2402
    %v2429 = vadd.f32 %v1686, %v2407
    %v2430 = vadd.f32 %v1691, %v2412
    %v2431 = vadd.f32 %v1696, %v2417
    %v2432 = vadd.f32 %v1701, %v2422
    %v2433 = vxor.u32 %v2425, 2147483648
    %v2434 = vxor.u32 %v2426, 2147483648
    %v2435 = vxor.u32 %v2427, 2147483648
    %v2436 = vxor.u32 %v2428, 2147483648
    %v2437 = vxor.u32 %v2429, 2147483648
    %v2438 = vxor.u32 %v2430, 2147483648
    %v2439 = vxor.u32 %v2431, 2147483648
    %v2440 = vxor.u32 %v2432, 2147483648
    %v2441 = vmul.f32 %v2433, 1.442695
    %v2442 = vpow.pop %v2441
    %v2443 = vmul.f32 %v2434, 1.442695
    %v2444 = vpow.pop %v2443
    %v2445 = vmul.f32 %v2435, 1.442695
    %v2446 = vpow.pop %v2445
    %v2447 = vmul.f32 %v2436, 1.442695
    %v2448 = vpow.pop %v2447
    %v2449 = vmul.f32 %v2437, 1.442695
    %v2450 = vpow.pop %v2449
    %v2451 = vmul.f32 %v2438, 1.442695
    %v2452 = vpow.pop %v2451
    %v2453 = vmul.f32 %v2439, 1.442695
    %v2454 = vpow.pop %v2453
    %v2455 = vmul.f32 %v2440, 1.442695
    %v2456 = vpow.pop %v2455
    %v2457 = vadd.f32 %v2442, 1.0
    %v2458 = vadd.f32 %v2444, 1.0
    %v2459 = vadd.f32 %v2446, 1.0
    %v2460 = vadd.f32 %v2448, 1.0
    %v2461 = vadd.f32 %v2450, 1.0
    %v2462 = vadd.f32 %v2452, 1.0
    %v2463 = vadd.f32 %v2454, 1.0
    %v2464 = vadd.f32 %v2456, 1.0
    %v2465 = vrcp.pop %v2457
    %v2466 = vmul.f32 1.0, %v2465
    %v2467 = vrcp.pop %v2458
    %v2468 = vmul.f32 1.0, %v2467
    %v2469 = vrcp.pop %v2459
    %v2470 = vmul.f32 1.0, %v2469
    %v2471 = vrcp.pop %v2460
    %v2472 = vmul.f32 1.0, %v2471
    %v2473 = vrcp.pop %v2461
    %v2474 = vmul.f32 1.0, %v2473
    %v2475 = vrcp.pop %v2462
    %v2476 = vmul.f32 1.0, %v2475
    %v2477 = vrcp.pop %v2463
    %v2478 = vmul.f32 1.0, %v2477
    %v2479 = vrcp.pop %v2464
    %v2480 = vmul.f32 1.0, %v2479
    %2489 = vrot.lane.b32.xlu0 %v2387, 96
    %v2490 = vpop.permute.xlu0 %2489
    %2491 = vrot.lane.b32.xlu0 %v2392, 96
    %v2492 = vpop.permute.xlu0 %2491
    %2493 = vrot.lane.b32.xlu0 %v2397, 96
    %v2494 = vpop.permute.xlu0 %2493
    %2495 = vrot.lane.b32.xlu0 %v2402, 96
    %v2496 = vpop.permute.xlu0 %2495
    %2497 = vrot.lane.b32.xlu0 %v2407, 96
    %v2498 = vpop.permute.xlu0 %2497
    %2499 = vrot.lane.b32.xlu0 %v2412, 96
    %v2500 = vpop.permute.xlu0 %2499
    %2501 = vrot.lane.b32.xlu0 %v2417, 96
    %v2502 = vpop.permute.xlu0 %2501
    %2503 = vrot.lane.b32.xlu0 %v2422, 96
    %v2504 = vpop.permute.xlu0 %2503
    %v2513 = vmul.f32 %v2466, %v2490
    %v2514 = vmul.f32 %v2468, %v2492
    %v2515 = vmul.f32 %v2470, %v2494
    %v2516 = vmul.f32 %v2472, %v2496
    %v2517 = vmul.f32 %v2474, %v2498
    %v2518 = vmul.f32 %v2476, %v2500
    %v2519 = vmul.f32 %v2478, %v2502
    %v2520 = vmul.f32 %v2480, %v2504
    %2529 = vrot.lane.b32.xlu0 %v2513, 32
    %v2530 = vpop.permute.xlu0 %2529
    %2531 = vrot.lane.b32.xlu0 %v2514, 32
    %v2532 = vpop.permute.xlu0 %2531
    %2533 = vrot.lane.b32.xlu0 %v2515, 32
    %v2534 = vpop.permute.xlu0 %2533
    %2535 = vrot.lane.b32.xlu0 %v2516, 32
    %v2536 = vpop.permute.xlu0 %2535
    %2537 = vrot.lane.b32.xlu0 %v2517, 32
    %v2538 = vpop.permute.xlu0 %2537
    %2539 = vrot.lane.b32.xlu0 %v2518, 32
    %v2540 = vpop.permute.xlu0 %2539
    %2541 = vrot.lane.b32.xlu0 %v2519, 32
    %v2542 = vpop.permute.xlu0 %2541
    %2543 = vrot.lane.b32.xlu0 %v2520, 32
    %v2544 = vpop.permute.xlu0 %2543
    %v2553 = vadd.f32 %v1666, %v2530
    %v2554 = vadd.f32 %v1671, %v2532
    %v2555 = vadd.f32 %v1676, %v2534
    %v2556 = vadd.f32 %v1681, %v2536
    %v2557 = vadd.f32 %v1686, %v2538
    %v2558 = vadd.f32 %v1691, %v2540
    %v2559 = vadd.f32 %v1696, %v2542
    %v2560 = vadd.f32 %v1701, %v2544
    %v2561 = vtanh.pop %v2553
    %v2562 = vtanh.pop %v2554
    %v2563 = vtanh.pop %v2555
    %v2564 = vtanh.pop %v2556
    %v2565 = vtanh.pop %v2557
    %v2566 = vtanh.pop %v2558
    %v2567 = vtanh.pop %v2559
    %v2568 = vtanh.pop %v2560
    %v2569 = vsub.f32 %v2272, %v2561
    %v2570 = vsub.f32 %v2273, %v2562
    %v2571 = vsub.f32 %v2274, %v2563
    %v2572 = vsub.f32 %v2275, %v2564
    %v2573 = vsub.f32 %v2276, %v2565
    %v2574 = vsub.f32 %v2277, %v2566
    %v2575 = vsub.f32 %v2278, %v2567
    %v2576 = vsub.f32 %v2279, %v2568
    %2585 = vrot.lane.b32.xlu0 %v2569, 112
    %v2586 = vpop.permute.xlu0 %2585
    %2587 = vrot.lane.b32.xlu0 %v2570, 112
    %v2588 = vpop.permute.xlu0 %2587
    %2589 = vrot.lane.b32.xlu0 %v2571, 112
    %v2590 = vpop.permute.xlu0 %2589
    %2591 = vrot.lane.b32.xlu0 %v2572, 112
    %v2592 = vpop.permute.xlu0 %2591
    %2593 = vrot.lane.b32.xlu0 %v2573, 112
    %v2594 = vpop.permute.xlu0 %2593
    %2595 = vrot.lane.b32.xlu0 %v2574, 112
    %v2596 = vpop.permute.xlu0 %2595
    %2597 = vrot.lane.b32.xlu0 %v2575, 112
    %v2598 = vpop.permute.xlu0 %2597
    %2599 = vrot.lane.b32.xlu0 %v2576, 112
    %v2600 = vpop.permute.xlu0 %2599
    %v2609 = vmul.f32 %v2466, %v2586
    %v2610 = vmul.f32 %v2468, %v2588
    %v2611 = vmul.f32 %v2470, %v2590
    %v2612 = vmul.f32 %v2472, %v2592
    %v2613 = vmul.f32 %v2474, %v2594
    %v2614 = vmul.f32 %v2476, %v2596
    %v2615 = vmul.f32 %v2478, %v2598
    %v2616 = vmul.f32 %v2480, %v2600
    %2625 = vrot.lane.b32.xlu0 %v2609, 16
    %v2626 = vpop.permute.xlu0 %2625
    %2627 = vrot.lane.b32.xlu0 %v2610, 16
    %v2628 = vpop.permute.xlu0 %2627
    %2629 = vrot.lane.b32.xlu0 %v2611, 16
    %v2630 = vpop.permute.xlu0 %2629
    %2631 = vrot.lane.b32.xlu0 %v2612, 16
    %v2632 = vpop.permute.xlu0 %2631
    %2633 = vrot.lane.b32.xlu0 %v2613, 16
    %v2634 = vpop.permute.xlu0 %2633
    %2635 = vrot.lane.b32.xlu0 %v2614, 16
    %v2636 = vpop.permute.xlu0 %2635
    %2637 = vrot.lane.b32.xlu0 %v2615, 16
    %v2638 = vpop.permute.xlu0 %2637
    %2639 = vrot.lane.b32.xlu0 %v2616, 16
    %v2640 = vpop.permute.xlu0 %2639
    %v2649 = vadd.f32 %v2561, %v2626
    %v2650 = vadd.f32 %v2562, %v2628
    %v2651 = vadd.f32 %v2563, %v2630
    %v2652 = vadd.f32 %v2564, %v2632
    %v2653 = vadd.f32 %v2565, %v2634
    %v2654 = vadd.f32 %v2566, %v2636
    %v2655 = vadd.f32 %v2567, %v2638
    %v2656 = vadd.f32 %v2568, %v2640
    %v2657 = vmul.f32 %v2649, %v92
    %v2658 = vmul.f32 %v2650, %v97
    %v2659 = vmul.f32 %v2651, %v102
    %v2660 = vmul.f32 %v2652, %v107
    %v2661 = vmul.f32 %v2653, %v112
    %v2662 = vmul.f32 %v2654, %v117
    %v2663 = vmul.f32 %v2655, %v122
    %v2664 = vmul.f32 %v2656, %v127
    %v2665 = vmul.f32 %v2657, %v92
    %v2666 = vmul.f32 %v2658, %v97
    %v2667 = vmul.f32 %v2659, %v102
    %v2668 = vmul.f32 %v2660, %v107
    %v2669 = vmul.f32 %v2661, %v112
    %v2670 = vmul.f32 %v2662, %v117
    %v2671 = vmul.f32 %v2663, %v122
    %v2672 = vmul.f32 %v2664, %v127
    %v2673 = vmul.f32 %v2665, %v2665
    %v2674 = vmul.f32 %v2666, %v2666
    %v2675 = vmul.f32 %v2667, %v2667
    %v2676 = vmul.f32 %v2668, %v2668
    %v2677 = vmul.f32 %v2669, %v2669
    %v2678 = vmul.f32 %v2670, %v2670
    %v2679 = vmul.f32 %v2671, %v2671
    %v2680 = vmul.f32 %v2672, %v2672
    %2689 = vrot.lane.b32.xlu0 %v2665, 96
    %v2690 = vpop.permute.xlu0 %2689
    %2691 = vrot.lane.b32.xlu0 %v2666, 96
    %v2692 = vpop.permute.xlu0 %2691
    %2693 = vrot.lane.b32.xlu0 %v2667, 96
    %v2694 = vpop.permute.xlu0 %2693
    %2695 = vrot.lane.b32.xlu0 %v2668, 96
    %v2696 = vpop.permute.xlu0 %2695
    %2697 = vrot.lane.b32.xlu0 %v2669, 96
    %v2698 = vpop.permute.xlu0 %2697
    %2699 = vrot.lane.b32.xlu0 %v2670, 96
    %v2700 = vpop.permute.xlu0 %2699
    %2701 = vrot.lane.b32.xlu0 %v2671, 96
    %v2702 = vpop.permute.xlu0 %2701
    %2703 = vrot.lane.b32.xlu0 %v2672, 96
    %v2704 = vpop.permute.xlu0 %2703
    %2721 = vrot.lane.b32.xlu0 %v2673, 112
    %v2722 = vpop.permute.xlu0 %2721
    %2723 = vrot.lane.b32.xlu0 %v2674, 112
    %v2724 = vpop.permute.xlu0 %2723
    %2725 = vrot.lane.b32.xlu0 %v2675, 112
    %v2726 = vpop.permute.xlu0 %2725
    %2727 = vrot.lane.b32.xlu0 %v2676, 112
    %v2728 = vpop.permute.xlu0 %2727
    %2729 = vrot.lane.b32.xlu0 %v2677, 112
    %v2730 = vpop.permute.xlu0 %2729
    %2731 = vrot.lane.b32.xlu0 %v2678, 112
    %v2732 = vpop.permute.xlu0 %2731
    %2733 = vrot.lane.b32.xlu0 %v2679, 112
    %v2734 = vpop.permute.xlu0 %2733
    %2735 = vrot.lane.b32.xlu0 %v2680, 112
    %v2736 = vpop.permute.xlu0 %2735
    %v2745 = vsel %vm137, %v2690, %v2722
    %v2746 = vsel %vm137, %v2692, %v2724
    %v2747 = vsel %vm137, %v2694, %v2726
    %v2748 = vsel %vm137, %v2696, %v2728
    %v2749 = vsel %vm137, %v2698, %v2730
    %v2750 = vsel %vm137, %v2700, %v2732
    %v2751 = vsel %vm137, %v2702, %v2734
    %v2752 = vsel %vm137, %v2704, %v2736
    %v2753 = vsel %vm146, %v2745, 0.0
    %v2754 = vsel %vm146, %v2746, 0.0
    %v2755 = vadd.f32 %v2753, %v2754
    %v2756 = vsel %vm146, %v2747, 0.0
    %v2757 = vadd.f32 %v2755, %v2756
    %v2758 = vsel %vm146, %v2748, 0.0
    %v2759 = vadd.f32 %v2757, %v2758
    %v2760 = vsel %vm146, %v2749, 0.0
    %v2761 = vadd.f32 %v2759, %v2760
    %v2762 = vsel %vm146, %v2750, 0.0
    %v2763 = vadd.f32 %v2761, %v2762
    %v2764 = vsel %vm146, %v2751, 0.0
    %v2765 = vadd.f32 %v2763, %v2764
    %v2766 = vsel %vm146, %v2752, 0.0
    %v2767 = vadd.f32 %v2765, %v2766
    %v2768 = vrot.slane %v2767, 4
    %v2769 = vadd.f32 %v2767, %v2768
    %v2770 = vrot.slane %v2769, 2
    %v2771 = vadd.f32 %v2769, %v2770
    %v2772 = vrot.slane %v2771, 1
    %v2773 = vadd.f32 %v2771, %v2772
    %v2774 = vmul.f32 %v2773, %v1503
    %v2775 = vmul.f32 %v2774, %v2774
    %2777 = vrot.lane.b32.xlu0 %v2775, 16
    %v2778 = vpop.permute.xlu0 %2777
    %v2780 = vsub.f32 %v2774, %v2778
    %v2781 = vmax.f32 %v2780, 0.0
    %2783 = vrot.lane.b32.xlu0 %v2774, 32
    %v2784 = vpop.permute.xlu0 %2783
    %v2786 = vsub.f32 %v2657, %v2784
    %v2787 = vsub.f32 %v2658, %v2784
    %v2788 = vsub.f32 %v2659, %v2784
    %v2789 = vsub.f32 %v2660, %v2784
    %v2790 = vsub.f32 %v2661, %v2784
    %v2791 = vsub.f32 %v2662, %v2784
    %v2792 = vsub.f32 %v2663, %v2784
    %v2793 = vsub.f32 %v2664, %v2784
    %v2794 = vadd.f32 %v2781, 1e-05
    %v2795 = vrsqrt.pop %v2794
    %v2796 = vlaneseq
    %v2797 = vshrl.u32 %v2796, 7
    %v2798 = vsub.s32 0, %v2797
    %v2799 = vrot.slane %v2795, %v2798
    %2801 = vrot.lane.b32.xlu0 %v2799, 16
    %v2802 = vpop.permute.xlu0 %2801
    %v2804 = vmul.f32 %v2786, %v2802
    %v2805 = vmul.f32 %v2787, %v2802
    %v2806 = vmul.f32 %v2788, %v2802
    %v2807 = vmul.f32 %v2789, %v2802
    %v2808 = vmul.f32 %v2790, %v2802
    %v2809 = vmul.f32 %v2791, %v2802
    %v2810 = vmul.f32 %v2792, %v2802
    %v2811 = vmul.f32 %v2793, %v2802
    %v2812 = vmul.f32 %v2804, %v2250
    %v2813 = vmul.f32 %v2805, %v2250
    %v2814 = vmul.f32 %v2806, %v2250
    %v2815 = vmul.f32 %v2807, %v2250
    %v2816 = vmul.f32 %v2808, %v2250
    %v2817 = vmul.f32 %v2809, %v2250
    %v2818 = vmul.f32 %v2810, %v2250
    %v2819 = vmul.f32 %v2811, %v2250
    %v2820 = vadd.f32 %v2812, %v2262
    %v2821 = vadd.f32 %v2813, %v2262
    %v2822 = vadd.f32 %v2814, %v2262
    %v2823 = vadd.f32 %v2815, %v2262
    %v2824 = vadd.f32 %v2816, %v2262
    %v2825 = vadd.f32 %v2817, %v2262
    %v2826 = vadd.f32 %v2818, %v2262
    %v2827 = vadd.f32 %v2819, %v2262
    %v2828 = vmul.f32 %v2820, %v92
    %v2829 = vmul.f32 %v2821, %v97
    %v2830 = vmul.f32 %v2822, %v102
    %v2831 = vmul.f32 %v2823, %v107
    %v2832 = vmul.f32 %v2824, %v112
    %v2833 = vmul.f32 %v2825, %v117
    %v2834 = vmul.f32 %v2826, %v122
    %v2835 = vmul.f32 %v2827, %v127
    %2844 = vrot.lane.b32.xlu0 %v2828, 96
    %v2845 = vpop.permute.xlu0 %2844
    %2846 = vrot.lane.b32.xlu0 %v2829, 96
    %v2847 = vpop.permute.xlu0 %2846
    %2848 = vrot.lane.b32.xlu0 %v2830, 96
    %v2849 = vpop.permute.xlu0 %2848
    %2850 = vrot.lane.b32.xlu0 %v2831, 96
    %v2851 = vpop.permute.xlu0 %2850
    %2852 = vrot.lane.b32.xlu0 %v2832, 96
    %v2853 = vpop.permute.xlu0 %2852
    %2854 = vrot.lane.b32.xlu0 %v2833, 96
    %v2855 = vpop.permute.xlu0 %2854
    %2856 = vrot.lane.b32.xlu0 %v2834, 96
    %v2857 = vpop.permute.xlu0 %2856
    %2858 = vrot.lane.b32.xlu0 %v2835, 96
    %v2859 = vpop.permute.xlu0 %2858
    %v2860 = vsel %vm137, %v2845, 0
    %v2862 = vsel %vm137, %v2847, 0
    %v2864 = vsel %vm137, %v2849, 0
    %v2866 = vsel %vm137, %v2851, 0
    %v2868 = vsel %vm137, %v2853, 0
    %v2870 = vsel %vm137, %v2855, 0
    %v2872 = vsel %vm137, %v2857, 0
    %v2874 = vsel %vm137, %v2859, 0
    %2876 = vmatprep.subr.mxu0 0.0
    %2877 = vmatpush1.msra.mxu0 0.0
    %2878 = vmatprep.subr.mxu0 0.0
    %2879 = vmatpush1.msra.mxu0 0.0
    %2880 = vmatprep.subr.mxu0 0.0
    %2881 = vmatpush1.msra.mxu0 0.0
    %2882 = vmatprep.subr.mxu0 0.0
    %2883 = vmatpush1.msra.mxu0 0.0
    %2884 = vmatprep.subr.mxu0 0.0
    %2885 = vmatpush1.msra.mxu0 0.0
    %2886 = vmatprep.subr.mxu0 0.0
    %2887 = vmatpush1.msra.mxu0 0.0
    %2888 = vmatprep.subr.mxu0 0.0
    %2889 = vmatpush1.msra.mxu0 0.0
    %2890 = vmatprep.subr.mxu0 0.0
    %2891 = vmatpush1.msra.mxu0 0.0
    %2892 = vmatprep.subr.mxu0 0.0
    %2893 = vmatpush1.msra.mxu0 0.0
    %2894 = vmatprep.subr.mxu0 0.0
    %2895 = vmatpush1.msra.mxu0 0.0
    %2896 = vmatprep.subr.mxu0 0.0
    %2897 = vmatpush1.msra.mxu0 0.0
    %2898 = vmatprep.subr.mxu0 0.0
    %2899 = vmatpush1.msra.mxu0 0.0
    %2900 = vmatprep.subr.mxu0 0.0
    %2901 = vmatpush1.msra.mxu0 0.0
    %2902 = vmatprep.subr.mxu0 0.0
    %2903 = vmatpush1.msra.mxu0 0.0
    %2904 = vmatprep.subr.mxu0 0.0
    %2905 = vmatpush1.msra.mxu0 %v44
    %2906 = vmatprep.subr.mxu0 0.0
    %2907 = vmatpush1.msra.mxu0 %v43
    %2908 = vmatprep.subr.mxu0 0.0
    %2909 = vmatpush2.msra.mxu0 0.0
    %2910 = vmatprep.subr.mxu0 0.0
    %2911 = vmatpush2.msra.mxu0 0.0
    %2912 = vmatprep.subr.mxu0 0.0
    %2913 = vmatpush2.msra.mxu0 0.0
    %2914 = vmatprep.subr.mxu0 0.0
    %2915 = vmatpush2.msra.mxu0 0.0
    %2916 = vmatprep.subr.mxu0 0.0
    %2917 = vmatpush2.msra.mxu0 0.0
    %2918 = vmatprep.subr.mxu0 0.0
    %2919 = vmatpush2.msra.mxu0 0.0
    %2920 = vmatprep.subr.mxu0 0.0
    %2921 = vmatpush2.msra.mxu0 0.0
    %2922 = vmatprep.subr.mxu0 0.0
    %2923 = vmatpush2.msra.mxu0 0.0
    %2924 = vmatprep.subr.mxu0 0.0
    %2925 = vmatpush2.msra.mxu0 0.0
    %2926 = vmatprep.subr.mxu0 0.0
    %2927 = vmatpush2.msra.mxu0 0.0
    %2928 = vmatprep.subr.mxu0 0.0
    %2929 = vmatpush2.msra.mxu0 0.0
    %2930 = vmatprep.subr.mxu0 0.0
    %2931 = vmatpush2.msra.mxu0 0.0
    %2932 = vmatprep.subr.mxu0 0.0
    %2933 = vmatpush2.msra.mxu0 0.0
    %2934 = vmatprep.subr.mxu0 0.0
    %2935 = vmatpush2.msra.mxu0 0.0
    %2936 = vmatprep.subr.mxu0 0.0
    %2937 = vmatpush2.msra.mxu0 0.0
    %2938 = vmatprep.subr.mxu0 0.0
    %2939 = vmatpush2.msra.mxu0 0.0
    %2940 = vmatprep.mubr.f32.mxu0 0.0
    %2941 = vmatmul.mubr.f32.gmra.mxu0 %v2860
    %v2942 = vpop.f32.mrf.mxu0
    %v2943 = vadd.f32 %v1707, %v2942
    %v2944 = vpop.f32.mrf.mxu0
    %2945 = vmatprep.mubr.f32.mxu0 0.0
    %2946 = vmatmul.mubr.f32.gmra.mxu0 %v2862
    %v2947 = vpop.f32.mrf.mxu0
    %v2948 = vadd.f32 %v1707, %v2947
    %v2949 = vpop.f32.mrf.mxu0
    %2950 = vmatprep.mubr.f32.mxu0 0.0
    %2951 = vmatmul.mubr.f32.gmra.mxu0 %v2864
    %v2952 = vpop.f32.mrf.mxu0
    %v2953 = vadd.f32 %v1707, %v2952
    %v2954 = vpop.f32.mrf.mxu0
    %2955 = vmatprep.mubr.f32.mxu0 0.0
    %2956 = vmatmul.mubr.f32.gmra.mxu0 %v2866
    %v2957 = vpop.f32.mrf.mxu0
    %v2958 = vadd.f32 %v1707, %v2957
    %v2959 = vpop.f32.mrf.mxu0
    %2960 = vmatprep.mubr.f32.mxu0 0.0
    %2961 = vmatmul.mubr.f32.gmra.mxu0 %v2868
    %v2962 = vpop.f32.mrf.mxu0
    %v2963 = vadd.f32 %v1707, %v2962
    %v2964 = vpop.f32.mrf.mxu0
    %2965 = vmatprep.mubr.f32.mxu0 0.0
    %2966 = vmatmul.mubr.f32.gmra.mxu0 %v2870
    %v2967 = vpop.f32.mrf.mxu0
    %v2968 = vadd.f32 %v1707, %v2967
    %v2969 = vpop.f32.mrf.mxu0
    %2970 = vmatprep.mubr.f32.mxu0 0.0
    %2971 = vmatmul.mubr.f32.gmra.mxu0 %v2872
    %v2972 = vpop.f32.mrf.mxu0
    %v2973 = vadd.f32 %v1707, %v2972
    %v2974 = vpop.f32.mrf.mxu0
    %2975 = vmatprep.mubr.f32.mxu0 0.0
    %2976 = vmatmul.mubr.f32.gmra.mxu0 %v2874
    %v2977 = vpop.f32.mrf.mxu0
    %v2978 = vadd.f32 %v1707, %v2977
    %v2979 = vpop.f32.mrf.mxu0
    %2980 = vdwg.mxu0
    %v2981 = vadd.f32 %v1666, %v2943
    %v2982 = vadd.f32 %v1671, %v2948
    %v2983 = vadd.f32 %v1676, %v2953
    %v2984 = vadd.f32 %v1681, %v2958
    %v2985 = vadd.f32 %v1686, %v2963
    %v2986 = vadd.f32 %v1691, %v2968
    %v2987 = vadd.f32 %v1696, %v2973
    %v2988 = vadd.f32 %v1701, %v2978
    %v2989 = vxor.u32 %v2981, 2147483648
    %v2990 = vxor.u32 %v2982, 2147483648
    %v2991 = vxor.u32 %v2983, 2147483648
    %v2992 = vxor.u32 %v2984, 2147483648
    %v2993 = vxor.u32 %v2985, 2147483648
    %v2994 = vxor.u32 %v2986, 2147483648
    %v2995 = vxor.u32 %v2987, 2147483648
    %v2996 = vxor.u32 %v2988, 2147483648
    %v2997 = vmul.f32 %v2989, 1.442695
    %v2998 = vpow.pop %v2997
    %v2999 = vmul.f32 %v2990, 1.442695
    %v3000 = vpow.pop %v2999
    %v3001 = vmul.f32 %v2991, 1.442695
    %v3002 = vpow.pop %v3001
    %v3003 = vmul.f32 %v2992, 1.442695
    %v3004 = vpow.pop %v3003
    %v3005 = vmul.f32 %v2993, 1.442695
    %v3006 = vpow.pop %v3005
    %v3007 = vmul.f32 %v2994, 1.442695
    %v3008 = vpow.pop %v3007
    %v3009 = vmul.f32 %v2995, 1.442695
    %v3010 = vpow.pop %v3009
    %v3011 = vmul.f32 %v2996, 1.442695
    %v3012 = vpow.pop %v3011
    %v3013 = vadd.f32 %v2998, 1.0
    %v3014 = vadd.f32 %v3000, 1.0
    %v3015 = vadd.f32 %v3002, 1.0
    %v3016 = vadd.f32 %v3004, 1.0
    %v3017 = vadd.f32 %v3006, 1.0
    %v3018 = vadd.f32 %v3008, 1.0
    %v3019 = vadd.f32 %v3010, 1.0
    %v3020 = vadd.f32 %v3012, 1.0
    %v3021 = vrcp.pop %v3013
    %v3022 = vmul.f32 1.0, %v3021
    %v3023 = vrcp.pop %v3014
    %v3024 = vmul.f32 1.0, %v3023
    %v3025 = vrcp.pop %v3015
    %v3026 = vmul.f32 1.0, %v3025
    %v3027 = vrcp.pop %v3016
    %v3028 = vmul.f32 1.0, %v3027
    %v3029 = vrcp.pop %v3017
    %v3030 = vmul.f32 1.0, %v3029
    %v3031 = vrcp.pop %v3018
    %v3032 = vmul.f32 1.0, %v3031
    %v3033 = vrcp.pop %v3019
    %v3034 = vmul.f32 1.0, %v3033
    %v3035 = vrcp.pop %v3020
    %v3036 = vmul.f32 1.0, %v3035
    %3045 = vrot.lane.b32.xlu0 %v2943, 96
    %v3046 = vpop.permute.xlu0 %3045
    %3047 = vrot.lane.b32.xlu0 %v2948, 96
    %v3048 = vpop.permute.xlu0 %3047
    %3049 = vrot.lane.b32.xlu0 %v2953, 96
    %v3050 = vpop.permute.xlu0 %3049
    %3051 = vrot.lane.b32.xlu0 %v2958, 96
    %v3052 = vpop.permute.xlu0 %3051
    %3053 = vrot.lane.b32.xlu0 %v2963, 96
    %v3054 = vpop.permute.xlu0 %3053
    %3055 = vrot.lane.b32.xlu0 %v2968, 96
    %v3056 = vpop.permute.xlu0 %3055
    %3057 = vrot.lane.b32.xlu0 %v2973, 96
    %v3058 = vpop.permute.xlu0 %3057
    %3059 = vrot.lane.b32.xlu0 %v2978, 96
    %v3060 = vpop.permute.xlu0 %3059
    %v3069 = vmul.f32 %v3022, %v3046
    %v3070 = vmul.f32 %v3024, %v3048
    %v3071 = vmul.f32 %v3026, %v3050
    %v3072 = vmul.f32 %v3028, %v3052
    %v3073 = vmul.f32 %v3030, %v3054
    %v3074 = vmul.f32 %v3032, %v3056
    %v3075 = vmul.f32 %v3034, %v3058
    %v3076 = vmul.f32 %v3036, %v3060
    %3085 = vrot.lane.b32.xlu0 %v3069, 32
    %v3086 = vpop.permute.xlu0 %3085
    %3087 = vrot.lane.b32.xlu0 %v3070, 32
    %v3088 = vpop.permute.xlu0 %3087
    %3089 = vrot.lane.b32.xlu0 %v3071, 32
    %v3090 = vpop.permute.xlu0 %3089
    %3091 = vrot.lane.b32.xlu0 %v3072, 32
    %v3092 = vpop.permute.xlu0 %3091
    %3093 = vrot.lane.b32.xlu0 %v3073, 32
    %v3094 = vpop.permute.xlu0 %3093
    %3095 = vrot.lane.b32.xlu0 %v3074, 32
    %v3096 = vpop.permute.xlu0 %3095
    %3097 = vrot.lane.b32.xlu0 %v3075, 32
    %v3098 = vpop.permute.xlu0 %3097
    %3099 = vrot.lane.b32.xlu0 %v3076, 32
    %v3100 = vpop.permute.xlu0 %3099
    %v3109 = vadd.f32 %v1666, %v3086
    %v3110 = vadd.f32 %v1671, %v3088
    %v3111 = vadd.f32 %v1676, %v3090
    %v3112 = vadd.f32 %v1681, %v3092
    %v3113 = vadd.f32 %v1686, %v3094
    %v3114 = vadd.f32 %v1691, %v3096
    %v3115 = vadd.f32 %v1696, %v3098
    %v3116 = vadd.f32 %v1701, %v3100
    %v3117 = vtanh.pop %v3109
    %v3118 = vtanh.pop %v3110
    %v3119 = vtanh.pop %v3111
    %v3120 = vtanh.pop %v3112
    %v3121 = vtanh.pop %v3113
    %v3122 = vtanh.pop %v3114
    %v3123 = vtanh.pop %v3115
    %v3124 = vtanh.pop %v3116
    %v3125 = vsub.f32 %v2828, %v3117
    %v3126 = vsub.f32 %v2829, %v3118
    %v3127 = vsub.f32 %v2830, %v3119
    %v3128 = vsub.f32 %v2831, %v3120
    %v3129 = vsub.f32 %v2832, %v3121
    %v3130 = vsub.f32 %v2833, %v3122
    %v3131 = vsub.f32 %v2834, %v3123
    %v3132 = vsub.f32 %v2835, %v3124
    %3141 = vrot.lane.b32.xlu0 %v3125, 112
    %v3142 = vpop.permute.xlu0 %3141
    %3143 = vrot.lane.b32.xlu0 %v3126, 112
    %v3144 = vpop.permute.xlu0 %3143
    %3145 = vrot.lane.b32.xlu0 %v3127, 112
    %v3146 = vpop.permute.xlu0 %3145
    %3147 = vrot.lane.b32.xlu0 %v3128, 112
    %v3148 = vpop.permute.xlu0 %3147
    %3149 = vrot.lane.b32.xlu0 %v3129, 112
    %v3150 = vpop.permute.xlu0 %3149
    %3151 = vrot.lane.b32.xlu0 %v3130, 112
    %v3152 = vpop.permute.xlu0 %3151
    %3153 = vrot.lane.b32.xlu0 %v3131, 112
    %v3154 = vpop.permute.xlu0 %3153
    %3155 = vrot.lane.b32.xlu0 %v3132, 112
    %v3156 = vpop.permute.xlu0 %3155
    %v3165 = vmul.f32 %v3022, %v3142
    %v3166 = vmul.f32 %v3024, %v3144
    %v3167 = vmul.f32 %v3026, %v3146
    %v3168 = vmul.f32 %v3028, %v3148
    %v3169 = vmul.f32 %v3030, %v3150
    %v3170 = vmul.f32 %v3032, %v3152
    %v3171 = vmul.f32 %v3034, %v3154
    %v3172 = vmul.f32 %v3036, %v3156
    %3181 = vrot.lane.b32.xlu0 %v3165, 16
    %v3182 = vpop.permute.xlu0 %3181
    %3183 = vrot.lane.b32.xlu0 %v3166, 16
    %v3184 = vpop.permute.xlu0 %3183
    %3185 = vrot.lane.b32.xlu0 %v3167, 16
    %v3186 = vpop.permute.xlu0 %3185
    %3187 = vrot.lane.b32.xlu0 %v3168, 16
    %v3188 = vpop.permute.xlu0 %3187
    %3189 = vrot.lane.b32.xlu0 %v3169, 16
    %v3190 = vpop.permute.xlu0 %3189
    %3191 = vrot.lane.b32.xlu0 %v3170, 16
    %v3192 = vpop.permute.xlu0 %3191
    %3193 = vrot.lane.b32.xlu0 %v3171, 16
    %v3194 = vpop.permute.xlu0 %3193
    %3195 = vrot.lane.b32.xlu0 %v3172, 16
    %v3196 = vpop.permute.xlu0 %3195
    %v3205 = vadd.f32 %v3117, %v3182
    %v3206 = vadd.f32 %v3118, %v3184
    %v3207 = vadd.f32 %v3119, %v3186
    %v3208 = vadd.f32 %v3120, %v3188
    %v3209 = vadd.f32 %v3121, %v3190
    %v3210 = vadd.f32 %v3122, %v3192
    %v3211 = vadd.f32 %v3123, %v3194
    %v3212 = vadd.f32 %v3124, %v3196
    %v3213 = vmul.f32 %v3205, %v92
    %v3214 = vmul.f32 %v3206, %v97
    %v3215 = vmul.f32 %v3207, %v102
    %v3216 = vmul.f32 %v3208, %v107
    %v3217 = vmul.f32 %v3209, %v112
    %v3218 = vmul.f32 %v3210, %v117
    %v3219 = vmul.f32 %v3211, %v122
    %v3220 = vmul.f32 %v3212, %v127
    %v3221 = vmul.f32 %v3213, %v92
    %v3222 = vmul.f32 %v3214, %v97
    %v3223 = vmul.f32 %v3215, %v102
    %v3224 = vmul.f32 %v3216, %v107
    %v3225 = vmul.f32 %v3217, %v112
    %v3226 = vmul.f32 %v3218, %v117
    %v3227 = vmul.f32 %v3219, %v122
    %v3228 = vmul.f32 %v3220, %v127
    %v3229 = vmul.f32 %v3221, %v3221
    %v3230 = vmul.f32 %v3222, %v3222
    %v3231 = vmul.f32 %v3223, %v3223
    %v3232 = vmul.f32 %v3224, %v3224
    %v3233 = vmul.f32 %v3225, %v3225
    %v3234 = vmul.f32 %v3226, %v3226
    %v3235 = vmul.f32 %v3227, %v3227
    %v3236 = vmul.f32 %v3228, %v3228
    %3245 = vrot.lane.b32.xlu0 %v3221, 96
    %v3246 = vpop.permute.xlu0 %3245
    %3247 = vrot.lane.b32.xlu0 %v3222, 96
    %v3248 = vpop.permute.xlu0 %3247
    %3249 = vrot.lane.b32.xlu0 %v3223, 96
    %v3250 = vpop.permute.xlu0 %3249
    %3251 = vrot.lane.b32.xlu0 %v3224, 96
    %v3252 = vpop.permute.xlu0 %3251
    %3253 = vrot.lane.b32.xlu0 %v3225, 96
    %v3254 = vpop.permute.xlu0 %3253
    %3255 = vrot.lane.b32.xlu0 %v3226, 96
    %v3256 = vpop.permute.xlu0 %3255
    %3257 = vrot.lane.b32.xlu0 %v3227, 96
    %v3258 = vpop.permute.xlu0 %3257
    %3259 = vrot.lane.b32.xlu0 %v3228, 96
    %v3260 = vpop.permute.xlu0 %3259
    %3277 = vrot.lane.b32.xlu0 %v3229, 112
    %v3278 = vpop.permute.xlu0 %3277
    %3279 = vrot.lane.b32.xlu0 %v3230, 112
    %v3280 = vpop.permute.xlu0 %3279
    %3281 = vrot.lane.b32.xlu0 %v3231, 112
    %v3282 = vpop.permute.xlu0 %3281
    %3283 = vrot.lane.b32.xlu0 %v3232, 112
    %v3284 = vpop.permute.xlu0 %3283
    %3285 = vrot.lane.b32.xlu0 %v3233, 112
    %v3286 = vpop.permute.xlu0 %3285
    %3287 = vrot.lane.b32.xlu0 %v3234, 112
    %v3288 = vpop.permute.xlu0 %3287
    %3289 = vrot.lane.b32.xlu0 %v3235, 112
    %v3290 = vpop.permute.xlu0 %3289
    %3291 = vrot.lane.b32.xlu0 %v3236, 112
    %v3292 = vpop.permute.xlu0 %3291
    %v3301 = vsel %vm137, %v3246, %v3278
    %v3302 = vsel %vm137, %v3248, %v3280
    %v3303 = vsel %vm137, %v3250, %v3282
    %v3304 = vsel %vm137, %v3252, %v3284
    %v3305 = vsel %vm137, %v3254, %v3286
    %v3306 = vsel %vm137, %v3256, %v3288
    %v3307 = vsel %vm137, %v3258, %v3290
    %v3308 = vsel %vm137, %v3260, %v3292
    %v3309 = vsel %vm146, %v3301, 0.0
    %v3310 = vsel %vm146, %v3302, 0.0
    %v3311 = vadd.f32 %v3309, %v3310
    %v3312 = vsel %vm146, %v3303, 0.0
    %v3313 = vadd.f32 %v3311, %v3312
    %v3314 = vsel %vm146, %v3304, 0.0
    %v3315 = vadd.f32 %v3313, %v3314
    %v3316 = vsel %vm146, %v3305, 0.0
    %v3317 = vadd.f32 %v3315, %v3316
    %v3318 = vsel %vm146, %v3306, 0.0
    %v3319 = vadd.f32 %v3317, %v3318
    %v3320 = vsel %vm146, %v3307, 0.0
    %v3321 = vadd.f32 %v3319, %v3320
    %v3322 = vsel %vm146, %v3308, 0.0
    %v3323 = vadd.f32 %v3321, %v3322
    %v3324 = vrot.slane %v3323, 4
    %v3325 = vadd.f32 %v3323, %v3324
    %v3326 = vrot.slane %v3325, 2
    %v3327 = vadd.f32 %v3325, %v3326
    %v3328 = vrot.slane %v3327, 1
    %v3329 = vadd.f32 %v3327, %v3328
    %v3330 = vmul.f32 %v3329, %v1503
    %v3331 = vmul.f32 %v3330, %v3330
    %3333 = vrot.lane.b32.xlu0 %v3331, 16
    %v3334 = vpop.permute.xlu0 %3333
    %v3336 = vsub.f32 %v3330, %v3334
    %v3337 = vmax.f32 %v3336, 0.0
    %3339 = vrot.lane.b32.xlu0 %v3330, 32
    %v3340 = vpop.permute.xlu0 %3339
    %v3342 = vsub.f32 %v3213, %v3340
    %v3343 = vsub.f32 %v3214, %v3340
    %v3344 = vsub.f32 %v3215, %v3340
    %v3345 = vsub.f32 %v3216, %v3340
    %v3346 = vsub.f32 %v3217, %v3340
    %v3347 = vsub.f32 %v3218, %v3340
    %v3348 = vsub.f32 %v3219, %v3340
    %v3349 = vsub.f32 %v3220, %v3340
    %v3350 = vadd.f32 %v3337, 1e-05
    %v3351 = vrsqrt.pop %v3350
    %v3352 = vlaneseq
    %v3353 = vshrl.u32 %v3352, 7
    %v3354 = vsub.s32 0, %v3353
    %v3355 = vrot.slane %v3351, %v3354
    %3357 = vrot.lane.b32.xlu0 %v3355, 16
    %v3358 = vpop.permute.xlu0 %3357
    %v3360 = vmul.f32 %v3342, %v3358
    %v3361 = vmul.f32 %v3343, %v3358
    %v3362 = vmul.f32 %v3344, %v3358
    %v3363 = vmul.f32 %v3345, %v3358
    %v3364 = vmul.f32 %v3346, %v3358
    %v3365 = vmul.f32 %v3347, %v3358
    %v3366 = vmul.f32 %v3348, %v3358
    %v3367 = vmul.f32 %v3349, %v3358
    %v3368 = vmul.f32 %v3360, %v2250
    %v3369 = vmul.f32 %v3361, %v2250
    %v3370 = vmul.f32 %v3362, %v2250
    %v3371 = vmul.f32 %v3363, %v2250
    %v3372 = vmul.f32 %v3364, %v2250
    %v3373 = vmul.f32 %v3365, %v2250
    %v3374 = vmul.f32 %v3366, %v2250
    %v3375 = vmul.f32 %v3367, %v2250
    %v3376 = vadd.f32 %v3368, %v2262
    %v3377 = vadd.f32 %v3369, %v2262
    %v3378 = vadd.f32 %v3370, %v2262
    %v3379 = vadd.f32 %v3371, %v2262
    %v3380 = vadd.f32 %v3372, %v2262
    %v3381 = vadd.f32 %v3373, %v2262
    %v3382 = vadd.f32 %v3374, %v2262
    %v3383 = vadd.f32 %v3375, %v2262
    %v3384 = vmul.f32 %v3376, %v92
    %v3385 = vmul.f32 %v3377, %v97
    %v3386 = vmul.f32 %v3378, %v102
    %v3387 = vmul.f32 %v3379, %v107
    %v3388 = vmul.f32 %v3380, %v112
    %v3389 = vmul.f32 %v3381, %v117
    %v3390 = vmul.f32 %v3382, %v122
    %v3391 = vmul.f32 %v3383, %v127
    %3400 = vrot.lane.b32.xlu0 %v3384, 96
    %v3401 = vpop.permute.xlu0 %3400
    %3402 = vrot.lane.b32.xlu0 %v3385, 96
    %v3403 = vpop.permute.xlu0 %3402
    %3404 = vrot.lane.b32.xlu0 %v3386, 96
    %v3405 = vpop.permute.xlu0 %3404
    %3406 = vrot.lane.b32.xlu0 %v3387, 96
    %v3407 = vpop.permute.xlu0 %3406
    %3408 = vrot.lane.b32.xlu0 %v3388, 96
    %v3409 = vpop.permute.xlu0 %3408
    %3410 = vrot.lane.b32.xlu0 %v3389, 96
    %v3411 = vpop.permute.xlu0 %3410
    %3412 = vrot.lane.b32.xlu0 %v3390, 96
    %v3413 = vpop.permute.xlu0 %3412
    %3414 = vrot.lane.b32.xlu0 %v3391, 96
    %v3415 = vpop.permute.xlu0 %3414
    %v3416 = vsel %vm137, %v3401, 0
    %v3418 = vsel %vm137, %v3403, 0
    %v3420 = vsel %vm137, %v3405, 0
    %v3422 = vsel %vm137, %v3407, 0
    %v3424 = vsel %vm137, %v3409, 0
    %v3426 = vsel %vm137, %v3411, 0
    %v3428 = vsel %vm137, %v3413, 0
    %v3430 = vsel %vm137, %v3415, 0
    %3432 = vmatprep.subr.mxu0 0.0
    %3433 = vmatpush1.msra.mxu0 0.0
    %3434 = vmatprep.subr.mxu0 0.0
    %3435 = vmatpush1.msra.mxu0 0.0
    %3436 = vmatprep.subr.mxu0 0.0
    %3437 = vmatpush1.msra.mxu0 0.0
    %3438 = vmatprep.subr.mxu0 0.0
    %3439 = vmatpush1.msra.mxu0 0.0
    %3440 = vmatprep.subr.mxu0 0.0
    %3441 = vmatpush1.msra.mxu0 0.0
    %3442 = vmatprep.subr.mxu0 0.0
    %3443 = vmatpush1.msra.mxu0 0.0
    %3444 = vmatprep.subr.mxu0 0.0
    %3445 = vmatpush1.msra.mxu0 0.0
    %3446 = vmatprep.subr.mxu0 0.0
    %3447 = vmatpush1.msra.mxu0 0.0
    %3448 = vmatprep.subr.mxu0 0.0
    %3449 = vmatpush1.msra.mxu0 0.0
    %3450 = vmatprep.subr.mxu0 0.0
    %3451 = vmatpush1.msra.mxu0 0.0
    %3452 = vmatprep.subr.mxu0 0.0
    %3453 = vmatpush1.msra.mxu0 0.0
    %3454 = vmatprep.subr.mxu0 0.0
    %3455 = vmatpush1.msra.mxu0 0.0
    %3456 = vmatprep.subr.mxu0 0.0
    %3457 = vmatpush1.msra.mxu0 0.0
    %3458 = vmatprep.subr.mxu0 0.0
    %3459 = vmatpush1.msra.mxu0 0.0
    %3460 = vmatprep.subr.mxu0 0.0
    %3461 = vmatpush1.msra.mxu0 %v44
    %3462 = vmatprep.subr.mxu0 0.0
    %3463 = vmatpush1.msra.mxu0 %v43
    %3464 = vmatprep.subr.mxu0 0.0
    %3465 = vmatpush2.msra.mxu0 0.0
    %3466 = vmatprep.subr.mxu0 0.0
    %3467 = vmatpush2.msra.mxu0 0.0
    %3468 = vmatprep.subr.mxu0 0.0
    %3469 = vmatpush2.msra.mxu0 0.0
    %3470 = vmatprep.subr.mxu0 0.0
    %3471 = vmatpush2.msra.mxu0 0.0
    %3472 = vmatprep.subr.mxu0 0.0
    %3473 = vmatpush2.msra.mxu0 0.0
    %3474 = vmatprep.subr.mxu0 0.0
    %3475 = vmatpush2.msra.mxu0 0.0
    %3476 = vmatprep.subr.mxu0 0.0
    %3477 = vmatpush2.msra.mxu0 0.0
    %3478 = vmatprep.subr.mxu0 0.0
    %3479 = vmatpush2.msra.mxu0 0.0
    %3480 = vmatprep.subr.mxu0 0.0
    %3481 = vmatpush2.msra.mxu0 0.0
    %3482 = vmatprep.subr.mxu0 0.0
    %3483 = vmatpush2.msra.mxu0 0.0
    %3484 = vmatprep.subr.mxu0 0.0
    %3485 = vmatpush2.msra.mxu0 0.0
    %3486 = vmatprep.subr.mxu0 0.0
    %3487 = vmatpush2.msra.mxu0 0.0
    %3488 = vmatprep.subr.mxu0 0.0
    %3489 = vmatpush2.msra.mxu0 0.0
    %3490 = vmatprep.subr.mxu0 0.0
    %3491 = vmatpush2.msra.mxu0 0.0
    %3492 = vmatprep.subr.mxu0 0.0
    %3493 = vmatpush2.msra.mxu0 0.0
    %3494 = vmatprep.subr.mxu0 0.0
    %3495 = vmatpush2.msra.mxu0 0.0
    %3496 = vmatprep.mubr.f32.mxu0 0.0
    %3497 = vmatmul.mubr.f32.gmra.mxu0 %v3416
    %v3498 = vpop.f32.mrf.mxu0
    %v3499 = vadd.f32 %v1707, %v3498
    %v3500 = vpop.f32.mrf.mxu0
    %3501 = vmatprep.mubr.f32.mxu0 0.0
    %3502 = vmatmul.mubr.f32.gmra.mxu0 %v3418
    %v3503 = vpop.f32.mrf.mxu0
    %v3504 = vadd.f32 %v1707, %v3503
    %v3505 = vpop.f32.mrf.mxu0
    %3506 = vmatprep.mubr.f32.mxu0 0.0
    %3507 = vmatmul.mubr.f32.gmra.mxu0 %v3420
    %v3508 = vpop.f32.mrf.mxu0
    %v3509 = vadd.f32 %v1707, %v3508
    %v3510 = vpop.f32.mrf.mxu0
    %3511 = vmatprep.mubr.f32.mxu0 0.0
    %3512 = vmatmul.mubr.f32.gmra.mxu0 %v3422
    %v3513 = vpop.f32.mrf.mxu0
    %v3514 = vadd.f32 %v1707, %v3513
    %v3515 = vpop.f32.mrf.mxu0
    %3516 = vmatprep.mubr.f32.mxu0 0.0
    %3517 = vmatmul.mubr.f32.gmra.mxu0 %v3424
    %v3518 = vpop.f32.mrf.mxu0
    %v3519 = vadd.f32 %v1707, %v3518
    %v3520 = vpop.f32.mrf.mxu0
    %3521 = vmatprep.mubr.f32.mxu0 0.0
    %3522 = vmatmul.mubr.f32.gmra.mxu0 %v3426
    %v3523 = vpop.f32.mrf.mxu0
    %v3524 = vadd.f32 %v1707, %v3523
    %v3525 = vpop.f32.mrf.mxu0
    %3526 = vmatprep.mubr.f32.mxu0 0.0
    %3527 = vmatmul.mubr.f32.gmra.mxu0 %v3428
    %v3528 = vpop.f32.mrf.mxu0
    %v3529 = vadd.f32 %v1707, %v3528
    %v3530 = vpop.f32.mrf.mxu0
    %3531 = vmatprep.mubr.f32.mxu0 0.0
    %3532 = vmatmul.mubr.f32.gmra.mxu0 %v3430
    %v3533 = vpop.f32.mrf.mxu0
    %v3534 = vadd.f32 %v1707, %v3533
    %v3535 = vpop.f32.mrf.mxu0
    %3536 = vdwg.mxu0
    %v3537 = vadd.f32 %v1666, %v3499
    %v3538 = vadd.f32 %v1671, %v3504
    %v3539 = vadd.f32 %v1676, %v3509
    %v3540 = vadd.f32 %v1681, %v3514
    %v3541 = vadd.f32 %v1686, %v3519
    %v3542 = vadd.f32 %v1691, %v3524
    %v3543 = vadd.f32 %v1696, %v3529
    %v3544 = vadd.f32 %v1701, %v3534
    %v3545 = vxor.u32 %v3537, 2147483648
    %v3546 = vxor.u32 %v3538, 2147483648
    %v3547 = vxor.u32 %v3539, 2147483648
    %v3548 = vxor.u32 %v3540, 2147483648
    %v3549 = vxor.u32 %v3541, 2147483648
    %v3550 = vxor.u32 %v3542, 2147483648
    %v3551 = vxor.u32 %v3543, 2147483648
    %v3552 = vxor.u32 %v3544, 2147483648
    %v3553 = vmul.f32 %v3545, 1.442695
    %v3554 = vpow.pop %v3553
    %v3555 = vmul.f32 %v3546, 1.442695
    %v3556 = vpow.pop %v3555
    %v3557 = vmul.f32 %v3547, 1.442695
    %v3558 = vpow.pop %v3557
    %v3559 = vmul.f32 %v3548, 1.442695
    %v3560 = vpow.pop %v3559
    %v3561 = vmul.f32 %v3549, 1.442695
    %v3562 = vpow.pop %v3561
    %v3563 = vmul.f32 %v3550, 1.442695
    %v3564 = vpow.pop %v3563
    %v3565 = vmul.f32 %v3551, 1.442695
    %v3566 = vpow.pop %v3565
    %v3567 = vmul.f32 %v3552, 1.442695
    %v3568 = vpow.pop %v3567
    %v3569 = vadd.f32 %v3554, 1.0
    %v3570 = vadd.f32 %v3556, 1.0
    %v3571 = vadd.f32 %v3558, 1.0
    %v3572 = vadd.f32 %v3560, 1.0
    %v3573 = vadd.f32 %v3562, 1.0
    %v3574 = vadd.f32 %v3564, 1.0
    %v3575 = vadd.f32 %v3566, 1.0
    %v3576 = vadd.f32 %v3568, 1.0
    %v3577 = vrcp.pop %v3569
    %v3578 = vmul.f32 1.0, %v3577
    %v3579 = vrcp.pop %v3570
    %v3580 = vmul.f32 1.0, %v3579
    %v3581 = vrcp.pop %v3571
    %v3582 = vmul.f32 1.0, %v3581
    %v3583 = vrcp.pop %v3572
    %v3584 = vmul.f32 1.0, %v3583
    %v3585 = vrcp.pop %v3573
    %v3586 = vmul.f32 1.0, %v3585
    %v3587 = vrcp.pop %v3574
    %v3588 = vmul.f32 1.0, %v3587
    %v3589 = vrcp.pop %v3575
    %v3590 = vmul.f32 1.0, %v3589
    %v3591 = vrcp.pop %v3576
    %v3592 = vmul.f32 1.0, %v3591
    %3601 = vrot.lane.b32.xlu0 %v3499, 96
    %v3602 = vpop.permute.xlu0 %3601
    %3603 = vrot.lane.b32.xlu0 %v3504, 96
    %v3604 = vpop.permute.xlu0 %3603
    %3605 = vrot.lane.b32.xlu0 %v3509, 96
    %v3606 = vpop.permute.xlu0 %3605
    %3607 = vrot.lane.b32.xlu0 %v3514, 96
    %v3608 = vpop.permute.xlu0 %3607
    %3609 = vrot.lane.b32.xlu0 %v3519, 96
    %v3610 = vpop.permute.xlu0 %3609
    %3611 = vrot.lane.b32.xlu0 %v3524, 96
    %v3612 = vpop.permute.xlu0 %3611
    %3613 = vrot.lane.b32.xlu0 %v3529, 96
    %v3614 = vpop.permute.xlu0 %3613
    %3615 = vrot.lane.b32.xlu0 %v3534, 96
    %v3616 = vpop.permute.xlu0 %3615
    %v3625 = vmul.f32 %v3578, %v3602
    %v3626 = vmul.f32 %v3580, %v3604
    %v3627 = vmul.f32 %v3582, %v3606
    %v3628 = vmul.f32 %v3584, %v3608
    %v3629 = vmul.f32 %v3586, %v3610
    %v3630 = vmul.f32 %v3588, %v3612
    %v3631 = vmul.f32 %v3590, %v3614
    %v3632 = vmul.f32 %v3592, %v3616
    %3641 = vrot.lane.b32.xlu0 %v3625, 32
    %v3642 = vpop.permute.xlu0 %3641
    %3643 = vrot.lane.b32.xlu0 %v3626, 32
    %v3644 = vpop.permute.xlu0 %3643
    %3645 = vrot.lane.b32.xlu0 %v3627, 32
    %v3646 = vpop.permute.xlu0 %3645
    %3647 = vrot.lane.b32.xlu0 %v3628, 32
    %v3648 = vpop.permute.xlu0 %3647
    %3649 = vrot.lane.b32.xlu0 %v3629, 32
    %v3650 = vpop.permute.xlu0 %3649
    %3651 = vrot.lane.b32.xlu0 %v3630, 32
    %v3652 = vpop.permute.xlu0 %3651
    %3653 = vrot.lane.b32.xlu0 %v3631, 32
    %v3654 = vpop.permute.xlu0 %3653
    %3655 = vrot.lane.b32.xlu0 %v3632, 32
    %v3656 = vpop.permute.xlu0 %3655
    %v3665 = vadd.f32 %v1666, %v3642
    %v3666 = vadd.f32 %v1671, %v3644
    %v3667 = vadd.f32 %v1676, %v3646
    %v3668 = vadd.f32 %v1681, %v3648
    %v3669 = vadd.f32 %v1686, %v3650
    %v3670 = vadd.f32 %v1691, %v3652
    %v3671 = vadd.f32 %v1696, %v3654
    %v3672 = vadd.f32 %v1701, %v3656
    %v3673 = vtanh.pop %v3665
    %v3674 = vtanh.pop %v3666
    %v3675 = vtanh.pop %v3667
    %v3676 = vtanh.pop %v3668
    %v3677 = vtanh.pop %v3669
    %v3678 = vtanh.pop %v3670
    %v3679 = vtanh.pop %v3671
    %v3680 = vtanh.pop %v3672
    %v3681 = vsub.f32 %v3384, %v3673
    %v3682 = vsub.f32 %v3385, %v3674
    %v3683 = vsub.f32 %v3386, %v3675
    %v3684 = vsub.f32 %v3387, %v3676
    %v3685 = vsub.f32 %v3388, %v3677
    %v3686 = vsub.f32 %v3389, %v3678
    %v3687 = vsub.f32 %v3390, %v3679
    %v3688 = vsub.f32 %v3391, %v3680
    %3697 = vrot.lane.b32.xlu0 %v3681, 112
    %v3698 = vpop.permute.xlu0 %3697
    %3699 = vrot.lane.b32.xlu0 %v3682, 112
    %v3700 = vpop.permute.xlu0 %3699
    %3701 = vrot.lane.b32.xlu0 %v3683, 112
    %v3702 = vpop.permute.xlu0 %3701
    %3703 = vrot.lane.b32.xlu0 %v3684, 112
    %v3704 = vpop.permute.xlu0 %3703
    %3705 = vrot.lane.b32.xlu0 %v3685, 112
    %v3706 = vpop.permute.xlu0 %3705
    %3707 = vrot.lane.b32.xlu0 %v3686, 112
    %v3708 = vpop.permute.xlu0 %3707
    %3709 = vrot.lane.b32.xlu0 %v3687, 112
    %v3710 = vpop.permute.xlu0 %3709
    %3711 = vrot.lane.b32.xlu0 %v3688, 112
    %v3712 = vpop.permute.xlu0 %3711
    %v3721 = vmul.f32 %v3578, %v3698
    %v3722 = vmul.f32 %v3580, %v3700
    %v3723 = vmul.f32 %v3582, %v3702
    %v3724 = vmul.f32 %v3584, %v3704
    %v3725 = vmul.f32 %v3586, %v3706
    %v3726 = vmul.f32 %v3588, %v3708
    %v3727 = vmul.f32 %v3590, %v3710
    %v3728 = vmul.f32 %v3592, %v3712
    %3737 = vrot.lane.b32.xlu0 %v3721, 16
    %v3738 = vpop.permute.xlu0 %3737
    %3739 = vrot.lane.b32.xlu0 %v3722, 16
    %v3740 = vpop.permute.xlu0 %3739
    %3741 = vrot.lane.b32.xlu0 %v3723, 16
    %v3742 = vpop.permute.xlu0 %3741
    %3743 = vrot.lane.b32.xlu0 %v3724, 16
    %v3744 = vpop.permute.xlu0 %3743
    %3745 = vrot.lane.b32.xlu0 %v3725, 16
    %v3746 = vpop.permute.xlu0 %3745
    %3747 = vrot.lane.b32.xlu0 %v3726, 16
    %v3748 = vpop.permute.xlu0 %3747
    %3749 = vrot.lane.b32.xlu0 %v3727, 16
    %v3750 = vpop.permute.xlu0 %3749
    %3751 = vrot.lane.b32.xlu0 %v3728, 16
    %v3752 = vpop.permute.xlu0 %3751
    %v3761 = vadd.f32 %v3673, %v3738
    %v3762 = vadd.f32 %v3674, %v3740
    %v3763 = vadd.f32 %v3675, %v3742
    %v3764 = vadd.f32 %v3676, %v3744
    %v3765 = vadd.f32 %v3677, %v3746
    %v3766 = vadd.f32 %v3678, %v3748
    %v3767 = vadd.f32 %v3679, %v3750
    %v3768 = vadd.f32 %v3680, %v3752
    %v3769 = vmul.f32 %v3761, %v92
    %v3770 = vmul.f32 %v3762, %v97
    %v3771 = vmul.f32 %v3763, %v102
    %v3772 = vmul.f32 %v3764, %v107
    %v3773 = vmul.f32 %v3765, %v112
    %v3774 = vmul.f32 %v3766, %v117
    %v3775 = vmul.f32 %v3767, %v122
    %v3776 = vmul.f32 %v3768, %v127
    %v3777 = vmul.f32 %v3769, %v92
    %v3778 = vmul.f32 %v3770, %v97
    %v3779 = vmul.f32 %v3771, %v102
    %v3780 = vmul.f32 %v3772, %v107
    %v3781 = vmul.f32 %v3773, %v112
    %v3782 = vmul.f32 %v3774, %v117
    %v3783 = vmul.f32 %v3775, %v122
    %v3784 = vmul.f32 %v3776, %v127
    %v3785 = vmul.f32 %v3777, %v3777
    %v3786 = vmul.f32 %v3778, %v3778
    %v3787 = vmul.f32 %v3779, %v3779
    %v3788 = vmul.f32 %v3780, %v3780
    %v3789 = vmul.f32 %v3781, %v3781
    %v3790 = vmul.f32 %v3782, %v3782
    %v3791 = vmul.f32 %v3783, %v3783
    %v3792 = vmul.f32 %v3784, %v3784
    %3801 = vrot.lane.b32.xlu0 %v3777, 96
    %v3802 = vpop.permute.xlu0 %3801
    %3803 = vrot.lane.b32.xlu0 %v3778, 96
    %v3804 = vpop.permute.xlu0 %3803
    %3805 = vrot.lane.b32.xlu0 %v3779, 96
    %v3806 = vpop.permute.xlu0 %3805
    %3807 = vrot.lane.b32.xlu0 %v3780, 96
    %v3808 = vpop.permute.xlu0 %3807
    %3809 = vrot.lane.b32.xlu0 %v3781, 96
    %v3810 = vpop.permute.xlu0 %3809
    %3811 = vrot.lane.b32.xlu0 %v3782, 96
    %v3812 = vpop.permute.xlu0 %3811
    %3813 = vrot.lane.b32.xlu0 %v3783, 96
    %v3814 = vpop.permute.xlu0 %3813
    %3815 = vrot.lane.b32.xlu0 %v3784, 96
    %v3816 = vpop.permute.xlu0 %3815
    %3833 = vrot.lane.b32.xlu0 %v3785, 112
    %v3834 = vpop.permute.xlu0 %3833
    %3835 = vrot.lane.b32.xlu0 %v3786, 112
    %v3836 = vpop.permute.xlu0 %3835
    %3837 = vrot.lane.b32.xlu0 %v3787, 112
    %v3838 = vpop.permute.xlu0 %3837
    %3839 = vrot.lane.b32.xlu0 %v3788, 112
    %v3840 = vpop.permute.xlu0 %3839
    %3841 = vrot.lane.b32.xlu0 %v3789, 112
    %v3842 = vpop.permute.xlu0 %3841
    %3843 = vrot.lane.b32.xlu0 %v3790, 112
    %v3844 = vpop.permute.xlu0 %3843
    %3845 = vrot.lane.b32.xlu0 %v3791, 112
    %v3846 = vpop.permute.xlu0 %3845
    %3847 = vrot.lane.b32.xlu0 %v3792, 112
    %v3848 = vpop.permute.xlu0 %3847
    %v3857 = vsel %vm137, %v3802, %v3834
    %v3858 = vsel %vm137, %v3804, %v3836
    %v3859 = vsel %vm137, %v3806, %v3838
    %v3860 = vsel %vm137, %v3808, %v3840
    %v3861 = vsel %vm137, %v3810, %v3842
    %v3862 = vsel %vm137, %v3812, %v3844
    %v3863 = vsel %vm137, %v3814, %v3846
    %v3864 = vsel %vm137, %v3816, %v3848
    %v3865 = vsel %vm146, %v3857, 0.0
    %v3866 = vsel %vm146, %v3858, 0.0
    %v3867 = vadd.f32 %v3865, %v3866
    %v3868 = vsel %vm146, %v3859, 0.0
    %v3869 = vadd.f32 %v3867, %v3868
    %v3870 = vsel %vm146, %v3860, 0.0
    %v3871 = vadd.f32 %v3869, %v3870
    %v3872 = vsel %vm146, %v3861, 0.0
    %v3873 = vadd.f32 %v3871, %v3872
    %v3874 = vsel %vm146, %v3862, 0.0
    %v3875 = vadd.f32 %v3873, %v3874
    %v3876 = vsel %vm146, %v3863, 0.0
    %v3877 = vadd.f32 %v3875, %v3876
    %v3878 = vsel %vm146, %v3864, 0.0
    %v3879 = vadd.f32 %v3877, %v3878
    %v3880 = vrot.slane %v3879, 4
    %v3881 = vadd.f32 %v3879, %v3880
    %v3882 = vrot.slane %v3881, 2
    %v3883 = vadd.f32 %v3881, %v3882
    %v3884 = vrot.slane %v3883, 1
    %v3885 = vadd.f32 %v3883, %v3884
    %v3886 = vmul.f32 %v3885, %v1503
    %v3887 = vmul.f32 %v3886, %v3886
    %3889 = vrot.lane.b32.xlu0 %v3887, 16
    %v3890 = vpop.permute.xlu0 %3889
    %v3892 = vsub.f32 %v3886, %v3890
    %v3893 = vmax.f32 %v3892, 0.0
    %3895 = vrot.lane.b32.xlu0 %v3886, 32
    %v3896 = vpop.permute.xlu0 %3895
    %v3898 = vsub.f32 %v3769, %v3896
    %v3899 = vsub.f32 %v3770, %v3896
    %v3900 = vsub.f32 %v3771, %v3896
    %v3901 = vsub.f32 %v3772, %v3896
    %v3902 = vsub.f32 %v3773, %v3896
    %v3903 = vsub.f32 %v3774, %v3896
    %v3904 = vsub.f32 %v3775, %v3896
    %v3905 = vsub.f32 %v3776, %v3896
    %v3906 = vadd.f32 %v3893, 1e-05
    %v3907 = vrsqrt.pop %v3906
    %v3908 = vlaneseq
    %v3909 = vshrl.u32 %v3908, 7
    %v3910 = vsub.s32 0, %v3909
    %v3911 = vrot.slane %v3907, %v3910
    %3913 = vrot.lane.b32.xlu0 %v3911, 16
    %v3914 = vpop.permute.xlu0 %3913
    %v3916 = vmul.f32 %v3898, %v3914
    %v3917 = vmul.f32 %v3899, %v3914
    %v3918 = vmul.f32 %v3900, %v3914
    %v3919 = vmul.f32 %v3901, %v3914
    %v3920 = vmul.f32 %v3902, %v3914
    %v3921 = vmul.f32 %v3903, %v3914
    %v3922 = vmul.f32 %v3904, %v3914
    %v3923 = vmul.f32 %v3905, %v3914
    %v3924 = vmul.f32 %v3916, %v2250
    %v3925 = vmul.f32 %v3917, %v2250
    %v3926 = vmul.f32 %v3918, %v2250
    %v3927 = vmul.f32 %v3919, %v2250
    %v3928 = vmul.f32 %v3920, %v2250
    %v3929 = vmul.f32 %v3921, %v2250
    %v3930 = vmul.f32 %v3922, %v2250
    %v3931 = vmul.f32 %v3923, %v2250
    %v3932 = vadd.f32 %v3924, %v2262
    %v3933 = vadd.f32 %v3925, %v2262
    %v3934 = vadd.f32 %v3926, %v2262
    %v3935 = vadd.f32 %v3927, %v2262
    %v3936 = vadd.f32 %v3928, %v2262
    %v3937 = vadd.f32 %v3929, %v2262
    %v3938 = vadd.f32 %v3930, %v2262
    %v3939 = vadd.f32 %v3931, %v2262
    %v3940 = vmul.f32 %v3932, %v92
    %v3941 = vmul.f32 %v3933, %v97
    %v3942 = vmul.f32 %v3934, %v102
    %v3943 = vmul.f32 %v3935, %v107
    %v3944 = vmul.f32 %v3936, %v112
    %v3945 = vmul.f32 %v3937, %v117
    %v3946 = vmul.f32 %v3938, %v122
    %v3947 = vmul.f32 %v3939, %v127
    %3956 = vrot.lane.b32.xlu0 %v3940, 96
    %v3957 = vpop.permute.xlu0 %3956
    %3958 = vrot.lane.b32.xlu0 %v3941, 96
    %v3959 = vpop.permute.xlu0 %3958
    %3960 = vrot.lane.b32.xlu0 %v3942, 96
    %v3961 = vpop.permute.xlu0 %3960
    %3962 = vrot.lane.b32.xlu0 %v3943, 96
    %v3963 = vpop.permute.xlu0 %3962
    %3964 = vrot.lane.b32.xlu0 %v3944, 96
    %v3965 = vpop.permute.xlu0 %3964
    %3966 = vrot.lane.b32.xlu0 %v3945, 96
    %v3967 = vpop.permute.xlu0 %3966
    %3968 = vrot.lane.b32.xlu0 %v3946, 96
    %v3969 = vpop.permute.xlu0 %3968
    %3970 = vrot.lane.b32.xlu0 %v3947, 96
    %v3971 = vpop.permute.xlu0 %3970
    %v3972 = vsel %vm137, %v3957, 0
    %v3974 = vsel %vm137, %v3959, 0
    %v3976 = vsel %vm137, %v3961, 0
    %v3978 = vsel %vm137, %v3963, 0
    %v3980 = vsel %vm137, %v3965, 0
    %v3982 = vsel %vm137, %v3967, 0
    %v3984 = vsel %vm137, %v3969, 0
    %v3986 = vsel %vm137, %v3971, 0
    %3988 = vmatprep.subr.mxu0 0.0
    %3989 = vmatpush1.msra.mxu0 0.0
    %3990 = vmatprep.subr.mxu0 0.0
    %3991 = vmatpush1.msra.mxu0 0.0
    %3992 = vmatprep.subr.mxu0 0.0
    %3993 = vmatpush1.msra.mxu0 0.0
    %3994 = vmatprep.subr.mxu0 0.0
    %3995 = vmatpush1.msra.mxu0 0.0
    %3996 = vmatprep.subr.mxu0 0.0
    %3997 = vmatpush1.msra.mxu0 0.0
    %3998 = vmatprep.subr.mxu0 0.0
    %3999 = vmatpush1.msra.mxu0 0.0
    %4000 = vmatprep.subr.mxu0 0.0
    %4001 = vmatpush1.msra.mxu0 0.0
    %4002 = vmatprep.subr.mxu0 0.0
    %4003 = vmatpush1.msra.mxu0 0.0
    %4004 = vmatprep.subr.mxu0 0.0
    %4005 = vmatpush1.msra.mxu0 0.0
    %4006 = vmatprep.subr.mxu0 0.0
    %4007 = vmatpush1.msra.mxu0 0.0
    %4008 = vmatprep.subr.mxu0 0.0
    %4009 = vmatpush1.msra.mxu0 0.0
    %4010 = vmatprep.subr.mxu0 0.0
    %4011 = vmatpush1.msra.mxu0 0.0
    %4012 = vmatprep.subr.mxu0 0.0
    %4013 = vmatpush1.msra.mxu0 0.0
    %4014 = vmatprep.subr.mxu0 0.0
    %4015 = vmatpush1.msra.mxu0 0.0
    %4016 = vmatprep.subr.mxu0 0.0
    %4017 = vmatpush1.msra.mxu0 %v44
    %4018 = vmatprep.subr.mxu0 0.0
    %4019 = vmatpush1.msra.mxu0 %v43
    %4020 = vmatprep.subr.mxu0 0.0
    %4021 = vmatpush2.msra.mxu0 0.0
    %4022 = vmatprep.subr.mxu0 0.0
    %4023 = vmatpush2.msra.mxu0 0.0
    %4024 = vmatprep.subr.mxu0 0.0
    %4025 = vmatpush2.msra.mxu0 0.0
    %4026 = vmatprep.subr.mxu0 0.0
    %4027 = vmatpush2.msra.mxu0 0.0
    %4028 = vmatprep.subr.mxu0 0.0
    %4029 = vmatpush2.msra.mxu0 0.0
    %4030 = vmatprep.subr.mxu0 0.0
    %4031 = vmatpush2.msra.mxu0 0.0
    %4032 = vmatprep.subr.mxu0 0.0
    %4033 = vmatpush2.msra.mxu0 0.0
    %4034 = vmatprep.subr.mxu0 0.0
    %4035 = vmatpush2.msra.mxu0 0.0
    %4036 = vmatprep.subr.mxu0 0.0
    %4037 = vmatpush2.msra.mxu0 0.0
    %4038 = vmatprep.subr.mxu0 0.0
    %4039 = vmatpush2.msra.mxu0 0.0
    %4040 = vmatprep.subr.mxu0 0.0
    %4041 = vmatpush2.msra.mxu0 0.0
    %4042 = vmatprep.subr.mxu0 0.0
    %4043 = vmatpush2.msra.mxu0 0.0
    %4044 = vmatprep.subr.mxu0 0.0
    %4045 = vmatpush2.msra.mxu0 0.0
    %4046 = vmatprep.subr.mxu0 0.0
    %4047 = vmatpush2.msra.mxu0 0.0
    %4048 = vmatprep.subr.mxu0 0.0
    %4049 = vmatpush2.msra.mxu0 0.0
    %4050 = vmatprep.subr.mxu0 0.0
    %4051 = vmatpush2.msra.mxu0 0.0
    %4052 = vmatprep.mubr.f32.mxu0 0.0
    %4053 = vmatmul.mubr.f32.gmra.mxu0 %v3972
    %v4054 = vpop.f32.mrf.mxu0
    %v4055 = vadd.f32 %v1707, %v4054
    %v4056 = vpop.f32.mrf.mxu0
    %4057 = vmatprep.mubr.f32.mxu0 0.0
    %4058 = vmatmul.mubr.f32.gmra.mxu0 %v3974
    %v4059 = vpop.f32.mrf.mxu0
    %v4060 = vadd.f32 %v1707, %v4059
    %v4061 = vpop.f32.mrf.mxu0
    %4062 = vmatprep.mubr.f32.mxu0 0.0
    %4063 = vmatmul.mubr.f32.gmra.mxu0 %v3976
    %v4064 = vpop.f32.mrf.mxu0
    %v4065 = vadd.f32 %v1707, %v4064
    %v4066 = vpop.f32.mrf.mxu0
    %4067 = vmatprep.mubr.f32.mxu0 0.0
    %4068 = vmatmul.mubr.f32.gmra.mxu0 %v3978
    %v4069 = vpop.f32.mrf.mxu0
    %v4070 = vadd.f32 %v1707, %v4069
    %v4071 = vpop.f32.mrf.mxu0
    %4072 = vmatprep.mubr.f32.mxu0 0.0
    %4073 = vmatmul.mubr.f32.gmra.mxu0 %v3980
    %v4074 = vpop.f32.mrf.mxu0
    %v4075 = vadd.f32 %v1707, %v4074
    %v4076 = vpop.f32.mrf.mxu0
    %4077 = vmatprep.mubr.f32.mxu0 0.0
    %4078 = vmatmul.mubr.f32.gmra.mxu0 %v3982
    %v4079 = vpop.f32.mrf.mxu0
    %v4080 = vadd.f32 %v1707, %v4079
    %v4081 = vpop.f32.mrf.mxu0
    %4082 = vmatprep.mubr.f32.mxu0 0.0
    %4083 = vmatmul.mubr.f32.gmra.mxu0 %v3984
    %v4084 = vpop.f32.mrf.mxu0
    %v4085 = vadd.f32 %v1707, %v4084
    %v4086 = vpop.f32.mrf.mxu0
    %4087 = vmatprep.mubr.f32.mxu0 0.0
    %4088 = vmatmul.mubr.f32.gmra.mxu0 %v3986
    %v4089 = vpop.f32.mrf.mxu0
    %v4090 = vadd.f32 %v1707, %v4089
    %v4091 = vpop.f32.mrf.mxu0
    %4092 = vdwg.mxu0
    %v4093 = vadd.f32 %v1666, %v4055
    %v4094 = vadd.f32 %v1671, %v4060
    %v4095 = vadd.f32 %v1676, %v4065
    %v4096 = vadd.f32 %v1681, %v4070
    %v4097 = vadd.f32 %v1686, %v4075
    %v4098 = vadd.f32 %v1691, %v4080
    %v4099 = vadd.f32 %v1696, %v4085
    %v4100 = vadd.f32 %v1701, %v4090
    %v4101 = vxor.u32 %v4093, 2147483648
    %v4102 = vxor.u32 %v4094, 2147483648
    %v4103 = vxor.u32 %v4095, 2147483648
    %v4104 = vxor.u32 %v4096, 2147483648
    %v4105 = vxor.u32 %v4097, 2147483648
    %v4106 = vxor.u32 %v4098, 2147483648
    %v4107 = vxor.u32 %v4099, 2147483648
    %v4108 = vxor.u32 %v4100, 2147483648
    %v4109 = vmul.f32 %v4101, 1.442695
    %v4110 = vpow.pop %v4109
    %v4111 = vmul.f32 %v4102, 1.442695
    %v4112 = vpow.pop %v4111
    %v4113 = vmul.f32 %v4103, 1.442695
    %v4114 = vpow.pop %v4113
    %v4115 = vmul.f32 %v4104, 1.442695
    %v4116 = vpow.pop %v4115
    %v4117 = vmul.f32 %v4105, 1.442695
    %v4118 = vpow.pop %v4117
    %v4119 = vmul.f32 %v4106, 1.442695
    %v4120 = vpow.pop %v4119
    %v4121 = vmul.f32 %v4107, 1.442695
    %v4122 = vpow.pop %v4121
    %v4123 = vmul.f32 %v4108, 1.442695
    %v4124 = vpow.pop %v4123
    %v4125 = vadd.f32 %v4110, 1.0
    %v4126 = vadd.f32 %v4112, 1.0
    %v4127 = vadd.f32 %v4114, 1.0
    %v4128 = vadd.f32 %v4116, 1.0
    %v4129 = vadd.f32 %v4118, 1.0
    %v4130 = vadd.f32 %v4120, 1.0
    %v4131 = vadd.f32 %v4122, 1.0
    %v4132 = vadd.f32 %v4124, 1.0
    %v4133 = vrcp.pop %v4125
    %v4134 = vmul.f32 1.0, %v4133
    %v4135 = vrcp.pop %v4126
    %v4136 = vmul.f32 1.0, %v4135
    %v4137 = vrcp.pop %v4127
    %v4138 = vmul.f32 1.0, %v4137
    %v4139 = vrcp.pop %v4128
    %v4140 = vmul.f32 1.0, %v4139
    %v4141 = vrcp.pop %v4129
    %v4142 = vmul.f32 1.0, %v4141
    %v4143 = vrcp.pop %v4130
    %v4144 = vmul.f32 1.0, %v4143
    %v4145 = vrcp.pop %v4131
    %v4146 = vmul.f32 1.0, %v4145
    %v4147 = vrcp.pop %v4132
    %v4148 = vmul.f32 1.0, %v4147
    %4157 = vrot.lane.b32.xlu0 %v4055, 96
    %v4158 = vpop.permute.xlu0 %4157
    %4159 = vrot.lane.b32.xlu0 %v4060, 96
    %v4160 = vpop.permute.xlu0 %4159
    %4161 = vrot.lane.b32.xlu0 %v4065, 96
    %v4162 = vpop.permute.xlu0 %4161
    %4163 = vrot.lane.b32.xlu0 %v4070, 96
    %v4164 = vpop.permute.xlu0 %4163
    %4165 = vrot.lane.b32.xlu0 %v4075, 96
    %v4166 = vpop.permute.xlu0 %4165
    %4167 = vrot.lane.b32.xlu0 %v4080, 96
    %v4168 = vpop.permute.xlu0 %4167
    %4169 = vrot.lane.b32.xlu0 %v4085, 96
    %v4170 = vpop.permute.xlu0 %4169
    %4171 = vrot.lane.b32.xlu0 %v4090, 96
    %v4172 = vpop.permute.xlu0 %4171
    %v4181 = vmul.f32 %v4134, %v4158
    %v4182 = vmul.f32 %v4136, %v4160
    %v4183 = vmul.f32 %v4138, %v4162
    %v4184 = vmul.f32 %v4140, %v4164
    %v4185 = vmul.f32 %v4142, %v4166
    %v4186 = vmul.f32 %v4144, %v4168
    %v4187 = vmul.f32 %v4146, %v4170
    %v4188 = vmul.f32 %v4148, %v4172
    %4197 = vrot.lane.b32.xlu0 %v4181, 32
    %v4198 = vpop.permute.xlu0 %4197
    %4199 = vrot.lane.b32.xlu0 %v4182, 32
    %v4200 = vpop.permute.xlu0 %4199
    %4201 = vrot.lane.b32.xlu0 %v4183, 32
    %v4202 = vpop.permute.xlu0 %4201
    %4203 = vrot.lane.b32.xlu0 %v4184, 32
    %v4204 = vpop.permute.xlu0 %4203
    %4205 = vrot.lane.b32.xlu0 %v4185, 32
    %v4206 = vpop.permute.xlu0 %4205
    %4207 = vrot.lane.b32.xlu0 %v4186, 32
    %v4208 = vpop.permute.xlu0 %4207
    %4209 = vrot.lane.b32.xlu0 %v4187, 32
    %v4210 = vpop.permute.xlu0 %4209
    %4211 = vrot.lane.b32.xlu0 %v4188, 32
    %v4212 = vpop.permute.xlu0 %4211
    %v4221 = vadd.f32 %v1666, %v4198
    %v4222 = vadd.f32 %v1671, %v4200
    %v4223 = vadd.f32 %v1676, %v4202
    %v4224 = vadd.f32 %v1681, %v4204
    %v4225 = vadd.f32 %v1686, %v4206
    %v4226 = vadd.f32 %v1691, %v4208
    %v4227 = vadd.f32 %v1696, %v4210
    %v4228 = vadd.f32 %v1701, %v4212
    %v4229 = vtanh.pop %v4221
    %v4230 = vtanh.pop %v4222
    %v4231 = vtanh.pop %v4223
    %v4232 = vtanh.pop %v4224
    %v4233 = vtanh.pop %v4225
    %v4234 = vtanh.pop %v4226
    %v4235 = vtanh.pop %v4227
    %v4236 = vtanh.pop %v4228
    %v4237 = vsub.f32 %v3940, %v4229
    %v4238 = vsub.f32 %v3941, %v4230
    %v4239 = vsub.f32 %v3942, %v4231
    %v4240 = vsub.f32 %v3943, %v4232
    %v4241 = vsub.f32 %v3944, %v4233
    %v4242 = vsub.f32 %v3945, %v4234
    %v4243 = vsub.f32 %v3946, %v4235
    %v4244 = vsub.f32 %v3947, %v4236
    %4253 = vrot.lane.b32.xlu0 %v4237, 112
    %v4254 = vpop.permute.xlu0 %4253
    %4255 = vrot.lane.b32.xlu0 %v4238, 112
    %v4256 = vpop.permute.xlu0 %4255
    %4257 = vrot.lane.b32.xlu0 %v4239, 112
    %v4258 = vpop.permute.xlu0 %4257
    %4259 = vrot.lane.b32.xlu0 %v4240, 112
    %v4260 = vpop.permute.xlu0 %4259
    %4261 = vrot.lane.b32.xlu0 %v4241, 112
    %v4262 = vpop.permute.xlu0 %4261
    %4263 = vrot.lane.b32.xlu0 %v4242, 112
    %v4264 = vpop.permute.xlu0 %4263
    %4265 = vrot.lane.b32.xlu0 %v4243, 112
    %v4266 = vpop.permute.xlu0 %4265
    %4267 = vrot.lane.b32.xlu0 %v4244, 112
    %v4268 = vpop.permute.xlu0 %4267
    %v4277 = vmul.f32 %v4134, %v4254
    %v4278 = vmul.f32 %v4136, %v4256
    %v4279 = vmul.f32 %v4138, %v4258
    %v4280 = vmul.f32 %v4140, %v4260
    %v4281 = vmul.f32 %v4142, %v4262
    %v4282 = vmul.f32 %v4144, %v4264
    %v4283 = vmul.f32 %v4146, %v4266
    %v4284 = vmul.f32 %v4148, %v4268
    %4293 = vrot.lane.b32.xlu0 %v4277, 16
    %v4294 = vpop.permute.xlu0 %4293
    %4295 = vrot.lane.b32.xlu0 %v4278, 16
    %v4296 = vpop.permute.xlu0 %4295
    %4297 = vrot.lane.b32.xlu0 %v4279, 16
    %v4298 = vpop.permute.xlu0 %4297
    %4299 = vrot.lane.b32.xlu0 %v4280, 16
    %v4300 = vpop.permute.xlu0 %4299
    %4301 = vrot.lane.b32.xlu0 %v4281, 16
    %v4302 = vpop.permute.xlu0 %4301
    %4303 = vrot.lane.b32.xlu0 %v4282, 16
    %v4304 = vpop.permute.xlu0 %4303
    %4305 = vrot.lane.b32.xlu0 %v4283, 16
    %v4306 = vpop.permute.xlu0 %4305
    %4307 = vrot.lane.b32.xlu0 %v4284, 16
    %v4308 = vpop.permute.xlu0 %4307
    %v4317 = vadd.f32 %v4229, %v4294
    %v4318 = vadd.f32 %v4230, %v4296
    %v4319 = vadd.f32 %v4231, %v4298
    %v4320 = vadd.f32 %v4232, %v4300
    %v4321 = vadd.f32 %v4233, %v4302
    %v4322 = vadd.f32 %v4234, %v4304
    %v4323 = vadd.f32 %v4235, %v4306
    %v4324 = vadd.f32 %v4236, %v4308
    %v4325 = vmul.f32 %v4317, %v92
    %v4326 = vmul.f32 %v4318, %v97
    %v4327 = vmul.f32 %v4319, %v102
    %v4328 = vmul.f32 %v4320, %v107
    %v4329 = vmul.f32 %v4321, %v112
    %v4330 = vmul.f32 %v4322, %v117
    %v4331 = vmul.f32 %v4323, %v122
    %v4332 = vmul.f32 %v4324, %v127
    %v4333 = vmul.f32 %v4325, %v92
    %v4334 = vmul.f32 %v4326, %v97
    %v4335 = vmul.f32 %v4327, %v102
    %v4336 = vmul.f32 %v4328, %v107
    %v4337 = vmul.f32 %v4329, %v112
    %v4338 = vmul.f32 %v4330, %v117
    %v4339 = vmul.f32 %v4331, %v122
    %v4340 = vmul.f32 %v4332, %v127
    %v4341 = vmul.f32 %v4333, %v4333
    %v4342 = vmul.f32 %v4334, %v4334
    %v4343 = vmul.f32 %v4335, %v4335
    %v4344 = vmul.f32 %v4336, %v4336
    %v4345 = vmul.f32 %v4337, %v4337
    %v4346 = vmul.f32 %v4338, %v4338
    %v4347 = vmul.f32 %v4339, %v4339
    %v4348 = vmul.f32 %v4340, %v4340
    %4357 = vrot.lane.b32.xlu0 %v4333, 96
    %v4358 = vpop.permute.xlu0 %4357
    %4359 = vrot.lane.b32.xlu0 %v4334, 96
    %v4360 = vpop.permute.xlu0 %4359
    %4361 = vrot.lane.b32.xlu0 %v4335, 96
    %v4362 = vpop.permute.xlu0 %4361
    %4363 = vrot.lane.b32.xlu0 %v4336, 96
    %v4364 = vpop.permute.xlu0 %4363
    %4365 = vrot.lane.b32.xlu0 %v4337, 96
    %v4366 = vpop.permute.xlu0 %4365
    %4367 = vrot.lane.b32.xlu0 %v4338, 96
    %v4368 = vpop.permute.xlu0 %4367
    %4369 = vrot.lane.b32.xlu0 %v4339, 96
    %v4370 = vpop.permute.xlu0 %4369
    %4371 = vrot.lane.b32.xlu0 %v4340, 96
    %v4372 = vpop.permute.xlu0 %4371
    %4389 = vrot.lane.b32.xlu0 %v4341, 112
    %v4390 = vpop.permute.xlu0 %4389
    %4391 = vrot.lane.b32.xlu0 %v4342, 112
    %v4392 = vpop.permute.xlu0 %4391
    %4393 = vrot.lane.b32.xlu0 %v4343, 112
    %v4394 = vpop.permute.xlu0 %4393
    %4395 = vrot.lane.b32.xlu0 %v4344, 112
    %v4396 = vpop.permute.xlu0 %4395
    %4397 = vrot.lane.b32.xlu0 %v4345, 112
    %v4398 = vpop.permute.xlu0 %4397
    %4399 = vrot.lane.b32.xlu0 %v4346, 112
    %v4400 = vpop.permute.xlu0 %4399
    %4401 = vrot.lane.b32.xlu0 %v4347, 112
    %v4402 = vpop.permute.xlu0 %4401
    %4403 = vrot.lane.b32.xlu0 %v4348, 112
    %v4404 = vpop.permute.xlu0 %4403
    %v4413 = vsel %vm137, %v4358, %v4390
    %v4414 = vsel %vm137, %v4360, %v4392
    %v4415 = vsel %vm137, %v4362, %v4394
    %v4416 = vsel %vm137, %v4364, %v4396
    %v4417 = vsel %vm137, %v4366, %v4398
    %v4418 = vsel %vm137, %v4368, %v4400
    %v4419 = vsel %vm137, %v4370, %v4402
    %v4420 = vsel %vm137, %v4372, %v4404
    %v4421 = vsel %vm146, %v4413, 0.0
    %v4422 = vsel %vm146, %v4414, 0.0
    %v4423 = vadd.f32 %v4421, %v4422
    %v4424 = vsel %vm146, %v4415, 0.0
    %v4425 = vadd.f32 %v4423, %v4424
    %v4426 = vsel %vm146, %v4416, 0.0
    %v4427 = vadd.f32 %v4425, %v4426
    %v4428 = vsel %vm146, %v4417, 0.0
    %v4429 = vadd.f32 %v4427, %v4428
    %v4430 = vsel %vm146, %v4418, 0.0
    %v4431 = vadd.f32 %v4429, %v4430
    %v4432 = vsel %vm146, %v4419, 0.0
    %v4433 = vadd.f32 %v4431, %v4432
    %v4434 = vsel %vm146, %v4420, 0.0
    %v4435 = vadd.f32 %v4433, %v4434
    %v4436 = vrot.slane %v4435, 4
    %v4437 = vadd.f32 %v4435, %v4436
    %v4438 = vrot.slane %v4437, 2
    %v4439 = vadd.f32 %v4437, %v4438
    %v4440 = vrot.slane %v4439, 1
    %v4441 = vadd.f32 %v4439, %v4440
    %v4442 = vmul.f32 %v4441, %v1503
    %v4443 = vmul.f32 %v4442, %v4442
    %4445 = vrot.lane.b32.xlu0 %v4443, 16
    %v4446 = vpop.permute.xlu0 %4445
    %v4448 = vsub.f32 %v4442, %v4446
    %v4449 = vmax.f32 %v4448, 0.0
    %4451 = vrot.lane.b32.xlu0 %v4442, 32
    %v4452 = vpop.permute.xlu0 %4451
    %v4454 = vsub.f32 %v4325, %v4452
    %v4455 = vsub.f32 %v4326, %v4452
    %v4456 = vsub.f32 %v4327, %v4452
    %v4457 = vsub.f32 %v4328, %v4452
    %v4458 = vsub.f32 %v4329, %v4452
    %v4459 = vsub.f32 %v4330, %v4452
    %v4460 = vsub.f32 %v4331, %v4452
    %v4461 = vsub.f32 %v4332, %v4452
    %v4462 = vadd.f32 %v4449, 1e-05
    %v4463 = vrsqrt.pop %v4462
    %v4464 = vlaneseq
    %v4465 = vshrl.u32 %v4464, 7
    %v4466 = vsub.s32 0, %v4465
    %v4467 = vrot.slane %v4463, %v4466
    %4469 = vrot.lane.b32.xlu0 %v4467, 16
    %v4470 = vpop.permute.xlu0 %4469
    %v4472 = vmul.f32 %v4454, %v4470
    %v4473 = vmul.f32 %v4455, %v4470
    %v4474 = vmul.f32 %v4456, %v4470
    %v4475 = vmul.f32 %v4457, %v4470
    %v4476 = vmul.f32 %v4458, %v4470
    %v4477 = vmul.f32 %v4459, %v4470
    %v4478 = vmul.f32 %v4460, %v4470
    %v4479 = vmul.f32 %v4461, %v4470
    %v4480 = vmul.f32 %v4472, %v2250
    %v4481 = vmul.f32 %v4473, %v2250
    %v4482 = vmul.f32 %v4474, %v2250
    %v4483 = vmul.f32 %v4475, %v2250
    %v4484 = vmul.f32 %v4476, %v2250
    %v4485 = vmul.f32 %v4477, %v2250
    %v4486 = vmul.f32 %v4478, %v2250
    %v4487 = vmul.f32 %v4479, %v2250
    %v4488 = vadd.f32 %v4480, %v2262
    %v4489 = vadd.f32 %v4481, %v2262
    %v4490 = vadd.f32 %v4482, %v2262
    %v4491 = vadd.f32 %v4483, %v2262
    %v4492 = vadd.f32 %v4484, %v2262
    %v4493 = vadd.f32 %v4485, %v2262
    %v4494 = vadd.f32 %v4486, %v2262
    %v4495 = vadd.f32 %v4487, %v2262
    %v4496 = vmul.f32 %v4488, %v92
    %v4497 = vmul.f32 %v4489, %v97
    %v4498 = vmul.f32 %v4490, %v102
    %v4499 = vmul.f32 %v4491, %v107
    %v4500 = vmul.f32 %v4492, %v112
    %v4501 = vmul.f32 %v4493, %v117
    %v4502 = vmul.f32 %v4494, %v122
    %v4503 = vmul.f32 %v4495, %v127
    %4512 = vrot.lane.b32.xlu0 %v4496, 96
    %v4513 = vpop.permute.xlu0 %4512
    %4514 = vrot.lane.b32.xlu0 %v4497, 96
    %v4515 = vpop.permute.xlu0 %4514
    %4516 = vrot.lane.b32.xlu0 %v4498, 96
    %v4517 = vpop.permute.xlu0 %4516
    %4518 = vrot.lane.b32.xlu0 %v4499, 96
    %v4519 = vpop.permute.xlu0 %4518
    %4520 = vrot.lane.b32.xlu0 %v4500, 96
    %v4521 = vpop.permute.xlu0 %4520
    %4522 = vrot.lane.b32.xlu0 %v4501, 96
    %v4523 = vpop.permute.xlu0 %4522
    %4524 = vrot.lane.b32.xlu0 %v4502, 96
    %v4525 = vpop.permute.xlu0 %4524
    %4526 = vrot.lane.b32.xlu0 %v4503, 96
    %v4527 = vpop.permute.xlu0 %4526
    %v4528 = vsel %vm137, %v4513, 0
    %v4530 = vsel %vm137, %v4515, 0
    %v4532 = vsel %vm137, %v4517, 0
    %v4534 = vsel %vm137, %v4519, 0
    %v4536 = vsel %vm137, %v4521, 0
    %v4538 = vsel %vm137, %v4523, 0
    %v4540 = vsel %vm137, %v4525, 0
    %v4542 = vsel %vm137, %v4527, 0
    %4544 = vmatprep.subr.mxu0 0.0
    %4545 = vmatpush1.msra.mxu0 0.0
    %4546 = vmatprep.subr.mxu0 0.0
    %4547 = vmatpush1.msra.mxu0 0.0
    %4548 = vmatprep.subr.mxu0 0.0
    %4549 = vmatpush1.msra.mxu0 0.0
    %4550 = vmatprep.subr.mxu0 0.0
    %4551 = vmatpush1.msra.mxu0 0.0
    %4552 = vmatprep.subr.mxu0 0.0
    %4553 = vmatpush1.msra.mxu0 0.0
    %4554 = vmatprep.subr.mxu0 0.0
    %4555 = vmatpush1.msra.mxu0 0.0
    %4556 = vmatprep.subr.mxu0 0.0
    %4557 = vmatpush1.msra.mxu0 0.0
    %4558 = vmatprep.subr.mxu0 0.0
    %4559 = vmatpush1.msra.mxu0 0.0
    %4560 = vmatprep.subr.mxu0 0.0
    %4561 = vmatpush1.msra.mxu0 0.0
    %4562 = vmatprep.subr.mxu0 0.0
    %4563 = vmatpush1.msra.mxu0 0.0
    %4564 = vmatprep.subr.mxu0 0.0
    %4565 = vmatpush1.msra.mxu0 0.0
    %4566 = vmatprep.subr.mxu0 0.0
    %4567 = vmatpush1.msra.mxu0 0.0
    %4568 = vmatprep.subr.mxu0 0.0
    %4569 = vmatpush1.msra.mxu0 0.0
    %4570 = vmatprep.subr.mxu0 0.0
    %4571 = vmatpush1.msra.mxu0 0.0
    %4572 = vmatprep.subr.mxu0 0.0
    %4573 = vmatpush1.msra.mxu0 %v44
    %4574 = vmatprep.subr.mxu0 0.0
    %4575 = vmatpush1.msra.mxu0 %v43
    %4576 = vmatprep.subr.mxu0 0.0
    %4577 = vmatpush2.msra.mxu0 0.0
    %4578 = vmatprep.subr.mxu0 0.0
    %4579 = vmatpush2.msra.mxu0 0.0
    %4580 = vmatprep.subr.mxu0 0.0
    %4581 = vmatpush2.msra.mxu0 0.0
    %4582 = vmatprep.subr.mxu0 0.0
    %4583 = vmatpush2.msra.mxu0 0.0
    %4584 = vmatprep.subr.mxu0 0.0
    %4585 = vmatpush2.msra.mxu0 0.0
    %4586 = vmatprep.subr.mxu0 0.0
    %4587 = vmatpush2.msra.mxu0 0.0
    %4588 = vmatprep.subr.mxu0 0.0
    %4589 = vmatpush2.msra.mxu0 0.0
    %4590 = vmatprep.subr.mxu0 0.0
    %4591 = vmatpush2.msra.mxu0 0.0
    %4592 = vmatprep.subr.mxu0 0.0
    %4593 = vmatpush2.msra.mxu0 0.0
    %4594 = vmatprep.subr.mxu0 0.0
    %4595 = vmatpush2.msra.mxu0 0.0
    %4596 = vmatprep.subr.mxu0 0.0
    %4597 = vmatpush2.msra.mxu0 0.0
    %4598 = vmatprep.subr.mxu0 0.0
    %4599 = vmatpush2.msra.mxu0 0.0
    %4600 = vmatprep.subr.mxu0 0.0
    %4601 = vmatpush2.msra.mxu0 0.0
    %4602 = vmatprep.subr.mxu0 0.0
    %4603 = vmatpush2.msra.mxu0 0.0
    %4604 = vmatprep.subr.mxu0 0.0
    %4605 = vmatpush2.msra.mxu0 0.0
    %4606 = vmatprep.subr.mxu0 0.0
    %4607 = vmatpush2.msra.mxu0 0.0
    %4608 = vmatprep.mubr.f32.mxu0 0.0
    %4609 = vmatmul.mubr.f32.gmra.mxu0 %v4528
    %v4610 = vpop.f32.mrf.mxu0
    %v4611 = vadd.f32 %v1707, %v4610
    %v4612 = vpop.f32.mrf.mxu0
    %4613 = vmatprep.mubr.f32.mxu0 0.0
    %4614 = vmatmul.mubr.f32.gmra.mxu0 %v4530
    %v4615 = vpop.f32.mrf.mxu0
    %v4616 = vadd.f32 %v1707, %v4615
    %v4617 = vpop.f32.mrf.mxu0
    %4618 = vmatprep.mubr.f32.mxu0 0.0
    %4619 = vmatmul.mubr.f32.gmra.mxu0 %v4532
    %v4620 = vpop.f32.mrf.mxu0
    %v4621 = vadd.f32 %v1707, %v4620
    %v4622 = vpop.f32.mrf.mxu0
    %4623 = vmatprep.mubr.f32.mxu0 0.0
    %4624 = vmatmul.mubr.f32.gmra.mxu0 %v4534
    %v4625 = vpop.f32.mrf.mxu0
    %v4626 = vadd.f32 %v1707, %v4625
    %v4627 = vpop.f32.mrf.mxu0
    %4628 = vmatprep.mubr.f32.mxu0 0.0
    %4629 = vmatmul.mubr.f32.gmra.mxu0 %v4536
    %v4630 = vpop.f32.mrf.mxu0
    %v4631 = vadd.f32 %v1707, %v4630
    %v4632 = vpop.f32.mrf.mxu0
    %4633 = vmatprep.mubr.f32.mxu0 0.0
    %4634 = vmatmul.mubr.f32.gmra.mxu0 %v4538
    %v4635 = vpop.f32.mrf.mxu0
    %v4636 = vadd.f32 %v1707, %v4635
    %v4637 = vpop.f32.mrf.mxu0
    %4638 = vmatprep.mubr.f32.mxu0 0.0
    %4639 = vmatmul.mubr.f32.gmra.mxu0 %v4540
    %v4640 = vpop.f32.mrf.mxu0
    %v4641 = vadd.f32 %v1707, %v4640
    %v4642 = vpop.f32.mrf.mxu0
    %4643 = vmatprep.mubr.f32.mxu0 0.0
    %4644 = vmatmul.mubr.f32.gmra.mxu0 %v4542
    %v4645 = vpop.f32.mrf.mxu0
    %v4646 = vadd.f32 %v1707, %v4645
    %v4647 = vpop.f32.mrf.mxu0
    %4648 = vdwg.mxu0
    %v4649 = vadd.f32 %v1666, %v4611
    %v4650 = vadd.f32 %v1671, %v4616
    %v4651 = vadd.f32 %v1676, %v4621
    %v4652 = vadd.f32 %v1681, %v4626
    %v4653 = vadd.f32 %v1686, %v4631
    %v4654 = vadd.f32 %v1691, %v4636
    %v4655 = vadd.f32 %v1696, %v4641
    %v4656 = vadd.f32 %v1701, %v4646
    %v4657 = vxor.u32 %v4649, 2147483648
    %v4658 = vxor.u32 %v4650, 2147483648
    %v4659 = vxor.u32 %v4651, 2147483648
    %v4660 = vxor.u32 %v4652, 2147483648
    %v4661 = vxor.u32 %v4653, 2147483648
    %v4662 = vxor.u32 %v4654, 2147483648
    %v4663 = vxor.u32 %v4655, 2147483648
    %v4664 = vxor.u32 %v4656, 2147483648
    %v4665 = vmul.f32 %v4657, 1.442695
    %v4666 = vpow.pop %v4665
    %v4667 = vmul.f32 %v4658, 1.442695
    %v4668 = vpow.pop %v4667
    %v4669 = vmul.f32 %v4659, 1.442695
    %v4670 = vpow.pop %v4669
    %v4671 = vmul.f32 %v4660, 1.442695
    %v4672 = vpow.pop %v4671
    %v4673 = vmul.f32 %v4661, 1.442695
    %v4674 = vpow.pop %v4673
    %v4675 = vmul.f32 %v4662, 1.442695
    %v4676 = vpow.pop %v4675
    %v4677 = vmul.f32 %v4663, 1.442695
    %v4678 = vpow.pop %v4677
    %v4679 = vmul.f32 %v4664, 1.442695
    %v4680 = vpow.pop %v4679
    %v4681 = vadd.f32 %v4666, 1.0
    %v4682 = vadd.f32 %v4668, 1.0
    %v4683 = vadd.f32 %v4670, 1.0
    %v4684 = vadd.f32 %v4672, 1.0
    %v4685 = vadd.f32 %v4674, 1.0
    %v4686 = vadd.f32 %v4676, 1.0
    %v4687 = vadd.f32 %v4678, 1.0
    %v4688 = vadd.f32 %v4680, 1.0
    %v4689 = vrcp.pop %v4681
    %v4690 = vmul.f32 1.0, %v4689
    %v4691 = vrcp.pop %v4682
    %v4692 = vmul.f32 1.0, %v4691
    %v4693 = vrcp.pop %v4683
    %v4694 = vmul.f32 1.0, %v4693
    %v4695 = vrcp.pop %v4684
    %v4696 = vmul.f32 1.0, %v4695
    %v4697 = vrcp.pop %v4685
    %v4698 = vmul.f32 1.0, %v4697
    %v4699 = vrcp.pop %v4686
    %v4700 = vmul.f32 1.0, %v4699
    %v4701 = vrcp.pop %v4687
    %v4702 = vmul.f32 1.0, %v4701
    %v4703 = vrcp.pop %v4688
    %v4704 = vmul.f32 1.0, %v4703
    %4713 = vrot.lane.b32.xlu0 %v4611, 96
    %v4714 = vpop.permute.xlu0 %4713
    %4715 = vrot.lane.b32.xlu0 %v4616, 96
    %v4716 = vpop.permute.xlu0 %4715
    %4717 = vrot.lane.b32.xlu0 %v4621, 96
    %v4718 = vpop.permute.xlu0 %4717
    %4719 = vrot.lane.b32.xlu0 %v4626, 96
    %v4720 = vpop.permute.xlu0 %4719
    %4721 = vrot.lane.b32.xlu0 %v4631, 96
    %v4722 = vpop.permute.xlu0 %4721
    %4723 = vrot.lane.b32.xlu0 %v4636, 96
    %v4724 = vpop.permute.xlu0 %4723
    %4725 = vrot.lane.b32.xlu0 %v4641, 96
    %v4726 = vpop.permute.xlu0 %4725
    %4727 = vrot.lane.b32.xlu0 %v4646, 96
    %v4728 = vpop.permute.xlu0 %4727
    %v4737 = vmul.f32 %v4690, %v4714
    %v4738 = vmul.f32 %v4692, %v4716
    %v4739 = vmul.f32 %v4694, %v4718
    %v4740 = vmul.f32 %v4696, %v4720
    %v4741 = vmul.f32 %v4698, %v4722
    %v4742 = vmul.f32 %v4700, %v4724
    %v4743 = vmul.f32 %v4702, %v4726
    %v4744 = vmul.f32 %v4704, %v4728
    %4753 = vrot.lane.b32.xlu0 %v4737, 32
    %v4754 = vpop.permute.xlu0 %4753
    %4755 = vrot.lane.b32.xlu0 %v4738, 32
    %v4756 = vpop.permute.xlu0 %4755
    %4757 = vrot.lane.b32.xlu0 %v4739, 32
    %v4758 = vpop.permute.xlu0 %4757
    %4759 = vrot.lane.b32.xlu0 %v4740, 32
    %v4760 = vpop.permute.xlu0 %4759
    %4761 = vrot.lane.b32.xlu0 %v4741, 32
    %v4762 = vpop.permute.xlu0 %4761
    %4763 = vrot.lane.b32.xlu0 %v4742, 32
    %v4764 = vpop.permute.xlu0 %4763
    %4765 = vrot.lane.b32.xlu0 %v4743, 32
    %v4766 = vpop.permute.xlu0 %4765
    %4767 = vrot.lane.b32.xlu0 %v4744, 32
    %v4768 = vpop.permute.xlu0 %4767
    %v4777 = vadd.f32 %v1666, %v4754
    %v4778 = vadd.f32 %v1671, %v4756
    %v4779 = vadd.f32 %v1676, %v4758
    %v4780 = vadd.f32 %v1681, %v4760
    %v4781 = vadd.f32 %v1686, %v4762
    %v4782 = vadd.f32 %v1691, %v4764
    %v4783 = vadd.f32 %v1696, %v4766
    %v4784 = vadd.f32 %v1701, %v4768
    %v4785 = vtanh.pop %v4777
    %v4786 = vtanh.pop %v4778
    %v4787 = vtanh.pop %v4779
    %v4788 = vtanh.pop %v4780
    %v4789 = vtanh.pop %v4781
    %v4790 = vtanh.pop %v4782
    %v4791 = vtanh.pop %v4783
    %v4792 = vtanh.pop %v4784
    %v4793 = vsub.f32 %v4496, %v4785
    %v4794 = vsub.f32 %v4497, %v4786
    %v4795 = vsub.f32 %v4498, %v4787
    %v4796 = vsub.f32 %v4499, %v4788
    %v4797 = vsub.f32 %v4500, %v4789
    %v4798 = vsub.f32 %v4501, %v4790
    %v4799 = vsub.f32 %v4502, %v4791
    %v4800 = vsub.f32 %v4503, %v4792
    %4809 = vrot.lane.b32.xlu0 %v4793, 112
    %v4810 = vpop.permute.xlu0 %4809
    %4811 = vrot.lane.b32.xlu0 %v4794, 112
    %v4812 = vpop.permute.xlu0 %4811
    %4813 = vrot.lane.b32.xlu0 %v4795, 112
    %v4814 = vpop.permute.xlu0 %4813
    %4815 = vrot.lane.b32.xlu0 %v4796, 112
    %v4816 = vpop.permute.xlu0 %4815
    %4817 = vrot.lane.b32.xlu0 %v4797, 112
    %v4818 = vpop.permute.xlu0 %4817
    %4819 = vrot.lane.b32.xlu0 %v4798, 112
    %v4820 = vpop.permute.xlu0 %4819
    %4821 = vrot.lane.b32.xlu0 %v4799, 112
    %v4822 = vpop.permute.xlu0 %4821
    %4823 = vrot.lane.b32.xlu0 %v4800, 112
    %v4824 = vpop.permute.xlu0 %4823
    %v4833 = vmul.f32 %v4690, %v4810
    %v4834 = vmul.f32 %v4692, %v4812
    %v4835 = vmul.f32 %v4694, %v4814
    %v4836 = vmul.f32 %v4696, %v4816
    %v4837 = vmul.f32 %v4698, %v4818
    %v4838 = vmul.f32 %v4700, %v4820
    %v4839 = vmul.f32 %v4702, %v4822
    %v4840 = vmul.f32 %v4704, %v4824
    %4849 = vrot.lane.b32.xlu0 %v4833, 16
    %v4850 = vpop.permute.xlu0 %4849
    %4851 = vrot.lane.b32.xlu0 %v4834, 16
    %v4852 = vpop.permute.xlu0 %4851
    %4853 = vrot.lane.b32.xlu0 %v4835, 16
    %v4854 = vpop.permute.xlu0 %4853
    %4855 = vrot.lane.b32.xlu0 %v4836, 16
    %v4856 = vpop.permute.xlu0 %4855
    %4857 = vrot.lane.b32.xlu0 %v4837, 16
    %v4858 = vpop.permute.xlu0 %4857
    %4859 = vrot.lane.b32.xlu0 %v4838, 16
    %v4860 = vpop.permute.xlu0 %4859
    %4861 = vrot.lane.b32.xlu0 %v4839, 16
    %v4862 = vpop.permute.xlu0 %4861
    %4863 = vrot.lane.b32.xlu0 %v4840, 16
    %v4864 = vpop.permute.xlu0 %4863
    %v4873 = vadd.f32 %v4785, %v4850
    %v4874 = vadd.f32 %v4786, %v4852
    %v4875 = vadd.f32 %v4787, %v4854
    %v4876 = vadd.f32 %v4788, %v4856
    %v4877 = vadd.f32 %v4789, %v4858
    %v4878 = vadd.f32 %v4790, %v4860
    %v4879 = vadd.f32 %v4791, %v4862
    %v4880 = vadd.f32 %v4792, %v4864
    %v4881 = vmul.f32 %v4873, %v92
    %v4882 = vmul.f32 %v4874, %v97
    %v4883 = vmul.f32 %v4875, %v102
    %v4884 = vmul.f32 %v4876, %v107
    %v4885 = vmul.f32 %v4877, %v112
    %v4886 = vmul.f32 %v4878, %v117
    %v4887 = vmul.f32 %v4879, %v122
    %v4888 = vmul.f32 %v4880, %v127
    %v4889 = vmul.f32 %v4881, %v92
    %v4890 = vmul.f32 %v4882, %v97
    %v4891 = vmul.f32 %v4883, %v102
    %v4892 = vmul.f32 %v4884, %v107
    %v4893 = vmul.f32 %v4885, %v112
    %v4894 = vmul.f32 %v4886, %v117
    %v4895 = vmul.f32 %v4887, %v122
    %v4896 = vmul.f32 %v4888, %v127
    %v4897 = vmul.f32 %v4889, %v4889
    %v4898 = vmul.f32 %v4890, %v4890
    %v4899 = vmul.f32 %v4891, %v4891
    %v4900 = vmul.f32 %v4892, %v4892
    %v4901 = vmul.f32 %v4893, %v4893
    %v4902 = vmul.f32 %v4894, %v4894
    %v4903 = vmul.f32 %v4895, %v4895
    %v4904 = vmul.f32 %v4896, %v4896
    %4913 = vrot.lane.b32.xlu0 %v4889, 96
    %v4914 = vpop.permute.xlu0 %4913
    %4915 = vrot.lane.b32.xlu0 %v4890, 96
    %v4916 = vpop.permute.xlu0 %4915
    %4917 = vrot.lane.b32.xlu0 %v4891, 96
    %v4918 = vpop.permute.xlu0 %4917
    %4919 = vrot.lane.b32.xlu0 %v4892, 96
    %v4920 = vpop.permute.xlu0 %4919
    %4921 = vrot.lane.b32.xlu0 %v4893, 96
    %v4922 = vpop.permute.xlu0 %4921
    %4923 = vrot.lane.b32.xlu0 %v4894, 96
    %v4924 = vpop.permute.xlu0 %4923
    %4925 = vrot.lane.b32.xlu0 %v4895, 96
    %v4926 = vpop.permute.xlu0 %4925
    %4927 = vrot.lane.b32.xlu0 %v4896, 96
    %v4928 = vpop.permute.xlu0 %4927
    %4945 = vrot.lane.b32.xlu0 %v4897, 112
    %v4946 = vpop.permute.xlu0 %4945
    %4947 = vrot.lane.b32.xlu0 %v4898, 112
    %v4948 = vpop.permute.xlu0 %4947
    %4949 = vrot.lane.b32.xlu0 %v4899, 112
    %v4950 = vpop.permute.xlu0 %4949
    %4951 = vrot.lane.b32.xlu0 %v4900, 112
    %v4952 = vpop.permute.xlu0 %4951
    %4953 = vrot.lane.b32.xlu0 %v4901, 112
    %v4954 = vpop.permute.xlu0 %4953
    %4955 = vrot.lane.b32.xlu0 %v4902, 112
    %v4956 = vpop.permute.xlu0 %4955
    %4957 = vrot.lane.b32.xlu0 %v4903, 112
    %v4958 = vpop.permute.xlu0 %4957
    %4959 = vrot.lane.b32.xlu0 %v4904, 112
    %v4960 = vpop.permute.xlu0 %4959
    %v4969 = vsel %vm137, %v4914, %v4946
    %v4970 = vsel %vm137, %v4916, %v4948
    %v4971 = vsel %vm137, %v4918, %v4950
    %v4972 = vsel %vm137, %v4920, %v4952
    %v4973 = vsel %vm137, %v4922, %v4954
    %v4974 = vsel %vm137, %v4924, %v4956
    %v4975 = vsel %vm137, %v4926, %v4958
    %v4976 = vsel %vm137, %v4928, %v4960
    %v4977 = vsel %vm146, %v4969, 0.0
    %v4978 = vsel %vm146, %v4970, 0.0
    %v4979 = vadd.f32 %v4977, %v4978
    %v4980 = vsel %vm146, %v4971, 0.0
    %v4981 = vadd.f32 %v4979, %v4980
    %v4982 = vsel %vm146, %v4972, 0.0
    %v4983 = vadd.f32 %v4981, %v4982
    %v4984 = vsel %vm146, %v4973, 0.0
    %v4985 = vadd.f32 %v4983, %v4984
    %v4986 = vsel %vm146, %v4974, 0.0
    %v4987 = vadd.f32 %v4985, %v4986
    %v4988 = vsel %vm146, %v4975, 0.0
    %v4989 = vadd.f32 %v4987, %v4988
    %v4990 = vsel %vm146, %v4976, 0.0
    %v4991 = vadd.f32 %v4989, %v4990
    %v4992 = vrot.slane %v4991, 4
    %v4993 = vadd.f32 %v4991, %v4992
    %v4994 = vrot.slane %v4993, 2
    %v4995 = vadd.f32 %v4993, %v4994
    %v4996 = vrot.slane %v4995, 1
    %v4997 = vadd.f32 %v4995, %v4996
    %v4998 = vmul.f32 %v4997, %v1503
    %v4999 = vmul.f32 %v4998, %v4998
    %5001 = vrot.lane.b32.xlu0 %v4999, 16
    %v5002 = vpop.permute.xlu0 %5001
    %v5004 = vsub.f32 %v4998, %v5002
    %v5005 = vmax.f32 %v5004, 0.0
    %5007 = vrot.lane.b32.xlu0 %v4998, 32
    %v5008 = vpop.permute.xlu0 %5007
    %v5010 = vsub.f32 %v4881, %v5008
    %v5011 = vsub.f32 %v4882, %v5008
    %v5012 = vsub.f32 %v4883, %v5008
    %v5013 = vsub.f32 %v4884, %v5008
    %v5014 = vsub.f32 %v4885, %v5008
    %v5015 = vsub.f32 %v4886, %v5008
    %v5016 = vsub.f32 %v4887, %v5008
    %v5017 = vsub.f32 %v4888, %v5008
    %v5018 = vadd.f32 %v5005, 1e-05
    %v5019 = vrsqrt.pop %v5018
    %v5020 = vlaneseq
    %v5021 = vshrl.u32 %v5020, 7
    %v5022 = vsub.s32 0, %v5021
    %v5023 = vrot.slane %v5019, %v5022
    %5025 = vrot.lane.b32.xlu0 %v5023, 16
    %v5026 = vpop.permute.xlu0 %5025
    %v5028 = vmul.f32 %v5010, %v5026
    %v5029 = vmul.f32 %v5011, %v5026
    %v5030 = vmul.f32 %v5012, %v5026
    %v5031 = vmul.f32 %v5013, %v5026
    %v5032 = vmul.f32 %v5014, %v5026
    %v5033 = vmul.f32 %v5015, %v5026
    %v5034 = vmul.f32 %v5016, %v5026
    %v5035 = vmul.f32 %v5017, %v5026
    %v5036 = vmul.f32 %v5028, %v2250
    %v5037 = vmul.f32 %v5029, %v2250
    %v5038 = vmul.f32 %v5030, %v2250
    %v5039 = vmul.f32 %v5031, %v2250
    %v5040 = vmul.f32 %v5032, %v2250
    %v5041 = vmul.f32 %v5033, %v2250
    %v5042 = vmul.f32 %v5034, %v2250
    %v5043 = vmul.f32 %v5035, %v2250
    %v5044 = vadd.f32 %v5036, %v2262
    %v5045 = vadd.f32 %v5037, %v2262
    %v5046 = vadd.f32 %v5038, %v2262
    %v5047 = vadd.f32 %v5039, %v2262
    %v5048 = vadd.f32 %v5040, %v2262
    %v5049 = vadd.f32 %v5041, %v2262
    %v5050 = vadd.f32 %v5042, %v2262
    %v5051 = vadd.f32 %v5043, %v2262
    %v5052 = vmul.f32 %v5044, %v92
    %v5053 = vmul.f32 %v5045, %v97
    %v5054 = vmul.f32 %v5046, %v102
    %v5055 = vmul.f32 %v5047, %v107
    %v5056 = vmul.f32 %v5048, %v112
    %v5057 = vmul.f32 %v5049, %v117
    %v5058 = vmul.f32 %v5050, %v122
    %v5059 = vmul.f32 %v5051, %v127
    %5068 = vrot.lane.b32.xlu0 %v5052, 96
    %v5069 = vpop.permute.xlu0 %5068
    %5070 = vrot.lane.b32.xlu0 %v5053, 96
    %v5071 = vpop.permute.xlu0 %5070
    %5072 = vrot.lane.b32.xlu0 %v5054, 96
    %v5073 = vpop.permute.xlu0 %5072
    %5074 = vrot.lane.b32.xlu0 %v5055, 96
    %v5075 = vpop.permute.xlu0 %5074
    %5076 = vrot.lane.b32.xlu0 %v5056, 96
    %v5077 = vpop.permute.xlu0 %5076
    %5078 = vrot.lane.b32.xlu0 %v5057, 96
    %v5079 = vpop.permute.xlu0 %5078
    %5080 = vrot.lane.b32.xlu0 %v5058, 96
    %v5081 = vpop.permute.xlu0 %5080
    %5082 = vrot.lane.b32.xlu0 %v5059, 96
    %v5083 = vpop.permute.xlu0 %5082
    %5092 = vrot.lane.b32.xlu0 %v15, 16
    %v5093 = vpop.permute.xlu0 %5092
    %5094 = vrot.lane.b32.xlu0 %v16, 16
    %v5095 = vpop.permute.xlu0 %5094
    %5096 = vrot.lane.b32.xlu0 %v17, 16
    %v5097 = vpop.permute.xlu0 %5096
    %5098 = vrot.lane.b32.xlu0 %v18, 16
    %v5099 = vpop.permute.xlu0 %5098
    %5100 = vrot.lane.b32.xlu0 %v19, 16
    %v5101 = vpop.permute.xlu0 %5100
    %5102 = vrot.lane.b32.xlu0 %v20, 16
    %v5103 = vpop.permute.xlu0 %5102
    %5104 = vrot.lane.b32.xlu0 %v21, 16
    %v5105 = vpop.permute.xlu0 %5104
    %5106 = vrot.lane.b32.xlu0 %v22, 16
    %v5107 = vpop.permute.xlu0 %5106
    %v5116 = vsel %vm137, %v5069, %v5093
    %v5117 = vsel %vm137, %v5071, %v5095
    %v5118 = vsel %vm137, %v5073, %v5097
    %v5119 = vsel %vm137, %v5075, %v5099
    %v5120 = vsel %vm137, %v5077, %v5101
    %v5121 = vsel %vm137, %v5079, %v5103
    %v5122 = vsel %vm137, %v5081, %v5105
    %v5123 = vsel %vm137, %v5083, %v5107
    %v5124 = vlaneseq
    %v5125 = vshrl.u32 %v5124, 7
    %v5126 = vsub.s32 0, %v5125
    %v5127 = vrot.slane %v51, %v5126
    %v5129 = vsel %vm146, %v5116, 0
    %v5132 = vsel %vm146, %v5117, 0
    %v5135 = vsel %vm146, %v5118, 0
    %v5138 = vsel %vm146, %v5119, 0
    %v5141 = vsel %vm146, %v5120, 0
    %v5144 = vsel %vm146, %v5121, 0
    %v5147 = vsel %vm146, %v5122, 0
    %v5150 = vsel %vm146, %v5123, 0
    %5152 = vmatprep.subr.mxu0 0.0
    %5153 = vmatpush1.msra.mxu0 0.0
    %5154 = vmatprep.subr.mxu0 0.0
    %5155 = vmatpush1.msra.mxu0 0.0
    %5156 = vmatprep.subr.mxu0 0.0
    %5157 = vmatpush1.msra.mxu0 0.0
    %5158 = vmatprep.subr.mxu0 0.0
    %5159 = vmatpush1.msra.mxu0 0.0
    %5160 = vmatprep.subr.mxu0 0.0
    %5161 = vmatpush1.msra.mxu0 0.0
    %5162 = vmatprep.subr.mxu0 0.0
    %5163 = vmatpush1.msra.mxu0 0.0
    %5164 = vmatprep.subr.mxu0 0.0
    %5165 = vmatpush1.msra.mxu0 0.0
    %5166 = vmatprep.subr.mxu0 0.0
    %5167 = vmatpush1.msra.mxu0 0.0
    %5168 = vmatprep.subr.mxu0 0.0
    %5169 = vmatpush1.msra.mxu0 0.0
    %5170 = vmatprep.subr.mxu0 0.0
    %5171 = vmatpush1.msra.mxu0 0.0
    %5172 = vmatprep.subr.mxu0 0.0
    %5173 = vmatpush1.msra.mxu0 0.0
    %5174 = vmatprep.subr.mxu0 0.0
    %5175 = vmatpush1.msra.mxu0 0.0
    %5176 = vmatprep.subr.mxu0 0.0
    %5177 = vmatpush1.msra.mxu0 %v48
    %5178 = vmatprep.subr.mxu0 0.0
    %5179 = vmatpush1.msra.mxu0 %v47
    %5180 = vmatprep.subr.mxu0 0.0
    %5181 = vmatpush1.msra.mxu0 %v46
    %5182 = vmatprep.subr.mxu0 0.0
    %5183 = vmatpush1.msra.mxu0 %v45
    %5184 = vmatprep.subr.mxu0 0.0
    %5185 = vmatpush2.msra.mxu0 0.0
    %5186 = vmatprep.subr.mxu0 0.0
    %5187 = vmatpush2.msra.mxu0 0.0
    %5188 = vmatprep.subr.mxu0 0.0
    %5189 = vmatpush2.msra.mxu0 0.0
    %5190 = vmatprep.subr.mxu0 0.0
    %5191 = vmatpush2.msra.mxu0 0.0
    %5192 = vmatprep.subr.mxu0 0.0
    %5193 = vmatpush2.msra.mxu0 0.0
    %5194 = vmatprep.subr.mxu0 0.0
    %5195 = vmatpush2.msra.mxu0 0.0
    %5196 = vmatprep.subr.mxu0 0.0
    %5197 = vmatpush2.msra.mxu0 0.0
    %5198 = vmatprep.subr.mxu0 0.0
    %5199 = vmatpush2.msra.mxu0 0.0
    %5200 = vmatprep.subr.mxu0 0.0
    %5201 = vmatpush2.msra.mxu0 0.0
    %5202 = vmatprep.subr.mxu0 0.0
    %5203 = vmatpush2.msra.mxu0 0.0
    %5204 = vmatprep.subr.mxu0 0.0
    %5205 = vmatpush2.msra.mxu0 0.0
    %5206 = vmatprep.subr.mxu0 0.0
    %5207 = vmatpush2.msra.mxu0 0.0
    %5208 = vmatprep.subr.mxu0 0.0
    %5209 = vmatpush2.msra.mxu0 0.0
    %5210 = vmatprep.subr.mxu0 0.0
    %5211 = vmatpush2.msra.mxu0 0.0
    %5212 = vmatprep.subr.mxu0 0.0
    %5213 = vmatpush2.msra.mxu0 0.0
    %5214 = vmatprep.subr.mxu0 0.0
    %5215 = vmatpush2.msra.mxu0 0.0
    %5216 = vmatprep.mubr.f32.mxu0 0.0
    %5217 = vmatmul.mubr.f32.gmra.mxu0 %v5129
    %v5218 = vpop.f32.mrf.mxu0
    %v5219 = vadd.f32 %v5127, %v5218
    %v5220 = vpop.f32.mrf.mxu0
    %5221 = vmatprep.mubr.f32.mxu0 0.0
    %5222 = vmatmul.mubr.f32.gmra.mxu0 %v5132
    %v5223 = vpop.f32.mrf.mxu0
    %v5224 = vadd.f32 %v5127, %v5223
    %v5225 = vpop.f32.mrf.mxu0
    %5226 = vmatprep.mubr.f32.mxu0 0.0
    %5227 = vmatmul.mubr.f32.gmra.mxu0 %v5135
    %v5228 = vpop.f32.mrf.mxu0
    %v5229 = vadd.f32 %v5127, %v5228
    %v5230 = vpop.f32.mrf.mxu0
    %5231 = vmatprep.mubr.f32.mxu0 0.0
    %5232 = vmatmul.mubr.f32.gmra.mxu0 %v5138
    %v5233 = vpop.f32.mrf.mxu0
    %v5234 = vadd.f32 %v5127, %v5233
    %v5235 = vpop.f32.mrf.mxu0
    %5236 = vmatprep.mubr.f32.mxu0 0.0
    %5237 = vmatmul.mubr.f32.gmra.mxu0 %v5141
    %v5238 = vpop.f32.mrf.mxu0
    %v5239 = vadd.f32 %v5127, %v5238
    %v5240 = vpop.f32.mrf.mxu0
    %5241 = vmatprep.mubr.f32.mxu0 0.0
    %5242 = vmatmul.mubr.f32.gmra.mxu0 %v5144
    %v5243 = vpop.f32.mrf.mxu0
    %v5244 = vadd.f32 %v5127, %v5243
    %v5245 = vpop.f32.mrf.mxu0
    %5246 = vmatprep.mubr.f32.mxu0 0.0
    %5247 = vmatmul.mubr.f32.gmra.mxu0 %v5147
    %v5248 = vpop.f32.mrf.mxu0
    %v5249 = vadd.f32 %v5127, %v5248
    %v5250 = vpop.f32.mrf.mxu0
    %5251 = vmatprep.mubr.f32.mxu0 0.0
    %5252 = vmatmul.mubr.f32.gmra.mxu0 %v5150
    %v5253 = vpop.f32.mrf.mxu0
    %v5254 = vadd.f32 %v5127, %v5253
    %v5255 = vpop.f32.mrf.mxu0
    %5256 = vdwg.mxu0
    %v5257 = vxor.u32 %v5219, 2147483648
    %v5258 = vxor.u32 %v5224, 2147483648
    %v5259 = vxor.u32 %v5229, 2147483648
    %v5260 = vxor.u32 %v5234, 2147483648
    %v5261 = vxor.u32 %v5239, 2147483648
    %v5262 = vxor.u32 %v5244, 2147483648
    %v5263 = vxor.u32 %v5249, 2147483648
    %v5264 = vxor.u32 %v5254, 2147483648
    %v5265 = vmul.f32 %v5257, 1.442695
    %v5266 = vpow.pop %v5265
    %v5267 = vmul.f32 %v5258, 1.442695
    %v5268 = vpow.pop %v5267
    %v5269 = vmul.f32 %v5259, 1.442695
    %v5270 = vpow.pop %v5269
    %v5271 = vmul.f32 %v5260, 1.442695
    %v5272 = vpow.pop %v5271
    %v5273 = vmul.f32 %v5261, 1.442695
    %v5274 = vpow.pop %v5273
    %v5275 = vmul.f32 %v5262, 1.442695
    %v5276 = vpow.pop %v5275
    %v5277 = vmul.f32 %v5263, 1.442695
    %v5278 = vpow.pop %v5277
    %v5279 = vmul.f32 %v5264, 1.442695
    %v5280 = vpow.pop %v5279
    %v5281 = vadd.f32 %v5266, 1.0
    %v5282 = vadd.f32 %v5268, 1.0
    %v5283 = vadd.f32 %v5270, 1.0
    %v5284 = vadd.f32 %v5272, 1.0
    %v5285 = vadd.f32 %v5274, 1.0
    %v5286 = vadd.f32 %v5276, 1.0
    %v5287 = vadd.f32 %v5278, 1.0
    %v5288 = vadd.f32 %v5280, 1.0
    %v5289 = vrcp.pop %v5281
    %v5290 = vmul.f32 1.0, %v5289
    %v5291 = vrcp.pop %v5282
    %v5292 = vmul.f32 1.0, %v5291
    %v5293 = vrcp.pop %v5283
    %v5294 = vmul.f32 1.0, %v5293
    %v5295 = vrcp.pop %v5284
    %v5296 = vmul.f32 1.0, %v5295
    %v5297 = vrcp.pop %v5285
    %v5298 = vmul.f32 1.0, %v5297
    %v5299 = vrcp.pop %v5286
    %v5300 = vmul.f32 1.0, %v5299
    %v5301 = vrcp.pop %v5287
    %v5302 = vmul.f32 1.0, %v5301
    %v5303 = vrcp.pop %v5288
    %v5304 = vmul.f32 1.0, %v5303
    %5313 = vrot.lane.b32.xlu0 %v5219, 120
    %v5314 = vpop.permute.xlu0 %5313
    %5315 = vrot.lane.b32.xlu0 %v5224, 120
    %v5316 = vpop.permute.xlu0 %5315
    %5317 = vrot.lane.b32.xlu0 %v5229, 120
    %v5318 = vpop.permute.xlu0 %5317
    %5319 = vrot.lane.b32.xlu0 %v5234, 120
    %v5320 = vpop.permute.xlu0 %5319
    %5321 = vrot.lane.b32.xlu0 %v5239, 120
    %v5322 = vpop.permute.xlu0 %5321
    %5323 = vrot.lane.b32.xlu0 %v5244, 120
    %v5324 = vpop.permute.xlu0 %5323
    %5325 = vrot.lane.b32.xlu0 %v5249, 120
    %v5326 = vpop.permute.xlu0 %5325
    %5327 = vrot.lane.b32.xlu0 %v5254, 120
    %v5328 = vpop.permute.xlu0 %5327
    %v5337 = vmul.f32 %v5290, %v5314
    %v5338 = vmul.f32 %v5292, %v5316
    %v5339 = vmul.f32 %v5294, %v5318
    %v5340 = vmul.f32 %v5296, %v5320
    %v5341 = vmul.f32 %v5298, %v5322
    %v5342 = vmul.f32 %v5300, %v5324
    %v5343 = vmul.f32 %v5302, %v5326
    %v5344 = vmul.f32 %v5304, %v5328
    %v5345 = vmul.f32 %v5337, %v92
    %v5346 = vmul.f32 %v5338, %v97
    %v5347 = vmul.f32 %v5339, %v102
    %v5348 = vmul.f32 %v5340, %v107
    %v5349 = vmul.f32 %v5341, %v112
    %v5350 = vmul.f32 %v5342, %v117
    %v5351 = vmul.f32 %v5343, %v122
    %v5352 = vmul.f32 %v5344, %v127
    %v5354 = vsel %vm164, %v64, 0
    %5356 = vmatprep.subr.mxu0 0.0
    %5357 = vmatpush1.msra.mxu0 0.0
    %5358 = vmatprep.subr.mxu0 0.0
    %5359 = vmatpush1.msra.mxu0 0.0
    %5360 = vmatprep.subr.mxu0 0.0
    %5361 = vmatpush1.msra.mxu0 0.0
    %5362 = vmatprep.subr.mxu0 0.0
    %5363 = vmatpush1.msra.mxu0 0.0
    %5364 = vmatprep.subr.mxu0 0.0
    %5365 = vmatpush1.msra.mxu0 0.0
    %5366 = vmatprep.subr.mxu0 0.0
    %5367 = vmatpush1.msra.mxu0 0.0
    %5368 = vmatprep.subr.mxu0 0.0
    %5369 = vmatpush1.msra.mxu0 0.0
    %5370 = vmatprep.subr.mxu0 0.0
    %5371 = vmatpush1.msra.mxu0 0.0
    %5372 = vmatprep.subr.mxu0 0.0
    %5373 = vmatpush1.msra.mxu0 %v5352
    %5374 = vmatprep.subr.mxu0 0.0
    %5375 = vmatpush1.msra.mxu0 %v5351
    %5376 = vmatprep.subr.mxu0 0.0
    %5377 = vmatpush1.msra.mxu0 %v5350
    %5378 = vmatprep.subr.mxu0 0.0
    %5379 = vmatpush1.msra.mxu0 %v5349
    %5380 = vmatprep.subr.mxu0 0.0
    %5381 = vmatpush1.msra.mxu0 %v5348
    %5382 = vmatprep.subr.mxu0 0.0
    %5383 = vmatpush1.msra.mxu0 %v5347
    %5384 = vmatprep.subr.mxu0 0.0
    %5385 = vmatpush1.msra.mxu0 %v5346
    %5386 = vmatprep.subr.mxu0 0.0
    %5387 = vmatpush1.msra.mxu0 %v5345
    %5388 = vmatprep.subr.mxu0 0.0
    %5389 = vmatpush2.msra.mxu0 0.0
    %5390 = vmatprep.subr.mxu0 0.0
    %5391 = vmatpush2.msra.mxu0 0.0
    %5392 = vmatprep.subr.mxu0 0.0
    %5393 = vmatpush2.msra.mxu0 0.0
    %5394 = vmatprep.subr.mxu0 0.0
    %5395 = vmatpush2.msra.mxu0 0.0
    %5396 = vmatprep.subr.mxu0 0.0
    %5397 = vmatpush2.msra.mxu0 0.0
    %5398 = vmatprep.subr.mxu0 0.0
    %5399 = vmatpush2.msra.mxu0 0.0
    %5400 = vmatprep.subr.mxu0 0.0
    %5401 = vmatpush2.msra.mxu0 0.0
    %5402 = vmatprep.subr.mxu0 0.0
    %5403 = vmatpush2.msra.mxu0 0.0
    %5404 = vmatprep.subr.mxu0 0.0
    %5405 = vmatpush2.msra.mxu0 0.0
    %5406 = vmatprep.subr.mxu0 0.0
    %5407 = vmatpush2.msra.mxu0 0.0
    %5408 = vmatprep.subr.mxu0 0.0
    %5409 = vmatpush2.msra.mxu0 0.0
    %5410 = vmatprep.subr.mxu0 0.0
    %5411 = vmatpush2.msra.mxu0 0.0
    %5412 = vmatprep.subr.mxu0 0.0
    %5413 = vmatpush2.msra.mxu0 0.0
    %5414 = vmatprep.subr.mxu0 0.0
    %5415 = vmatpush2.msra.mxu0 0.0
    %5416 = vmatprep.subr.mxu0 0.0
    %5417 = vmatpush2.msra.mxu0 0.0
    %5418 = vmatprep.subr.mxu0 0.0
    %5419 = vmatpush2.msra.mxu0 0.0
    %5420 = vmatprep.mubr.f32.mxu0 0.0
    %5421 = vmatmul.mubr.f32.gmra.mxu0 %v5354
    %v5422 = vpop.f32.mrf.mxu0
    %v5423 = vadd.f32 0.0, %v5422
    %v5424 = vpop.f32.mrf.mxu0
    %5425 = vdwg.mxu0
    %vm5426 = vcmask 64512
    %5427 = vst.msk [vmem:[#allocation2] sm:$0xff] %vm5426, %v5423
    // Predicated region
    $region14: #{tpu_custom_call.1} parent=1 // pred_check
      _
    $region15: #{tpu_custom_call.1} parent=1 // pred_check_branch
      %5429 = sbr.rel (0) target = $region17
    $region16: #{tpu_custom_call.1} parent=1 // pred_region
      %s5431 = ssub.s32 128, 128
      %5432 = vsyncadd [#allocation3], %s5431
      %s5434 = sshll.u32 [#allocation2], 4
      %s5435 = int_to_ptr.vmem [resolvable:$true] %s5434
      %5437 = dma.vmem_to_hbm [thread:$0]  %s5435, 128, %s3, [#allocation3]
    $region17: #{tpu_custom_call.1} parent=1 // pred_fallthru
      _
    // Predicated region
    $region18: #{tpu_custom_call.1} parent=1 // pred_check
      _
    $region19: #{tpu_custom_call.1} parent=1 // pred_check_branch
      %5439 = sbr.rel (0) target = $region21
    $region20: #{tpu_custom_call.1} parent=1 // pred_region
      %5440 = dma.done [#allocation3], 128
    $region21: #{tpu_custom_call.1} parent=1 // pred_fallthru
      _
    %5441 = vsyncpa [#allocation3], 1

</llo_original>
